<compile_context>
chip_gen: v7x
topology: tpu7x:2x2x1
jax: 0.10.0
libtpu: 0.0.40
codegen_flags: <defaults>
</compile_context>

<pallas_src>
import functools
import math

import jax
import jax.numpy as jnp
from jax.experimental import pallas as pl
from jax.experimental.pallas import tpu as pltpu


# ---------------------------------------------------------------------------
# In-kernel helpers (traced inside the Pallas kernel body)
# ---------------------------------------------------------------------------
def _layer_norm(a, gamma, beta, eps=1e-5):
    mean = jnp.mean(a, axis=-1, keepdims=True)
    var = jnp.mean((a - mean) ** 2, axis=-1, keepdims=True)
    return (a - mean) * jax.lax.rsqrt(var + eps) * gamma + beta


def _mha_block(xq2, xkv2, wqkv_ref, bcol, slot, wo_heads, bo_row,
               num_heads, bt, sq, skv):
    """Head-batched multi-head attention on one (bt, S) activation block.

    xq2:  (bt*sq,  D) bf16 flattened queries.
    xkv2: (bt*skv, D) bf16 flattened keys/values.
    wqkv_ref: (6, D, D) bf16 ref of stacked PyTorch (out,in) projection weights;
              `slot` selects wq (slot), wk (slot+1), wv (slot+2).
    bcol: (D, 6) f32 stacked projection biases (column layout).
    wo_heads: (H, hd, D) bf16 out-projection weight, split per head.
    bo_row: (1, D) f32 out-projection bias.
    Returns (bt*sq, D) f32.
    """
    d_model = xq2.shape[-1]
    hd = d_model // num_heads
    scale = 1.0 / math.sqrt(hd)

    def proj_t(idx, x2):
        # (x2 @ W.T + b).T == W @ x2.T + b[:, None]  -> (D, M) f32
        y = jax.lax.dot_general(wqkv_ref[idx], x2, (((1,), (1,)), ((), ())),
                                preferred_element_type=jnp.float32)
        return y + bcol[:, idx:idx + 1]

    # Projections on the flattened (bt*S, D) activations (large M for the MXU),
    # then viewed as (H, hd, tokens) -- a cheap major-dim split, no transpose.
    q_t = proj_t(slot + 0, xq2).reshape(num_heads, hd, bt * sq)
    k_t = proj_t(slot + 1, xkv2).reshape(num_heads, hd, bt * skv)
    v_t = proj_t(slot + 2, xkv2).reshape(num_heads, hd, bt * skv)

    outs = []
    for b in range(bt):  # static, small: attention never mixes batch elements
        qh = jnp.swapaxes(q_t[:, :, b * sq:(b + 1) * sq], 1, 2)        # (H, sq, hd)
        kh = k_t[:, :, b * skv:(b + 1) * skv]                          # (H, hd, skv)
        vh = v_t[:, :, b * skv:(b + 1) * skv]                          # (H, hd, skv)

        # scores: (H, sq, hd) . (H, hd, skv) -> (H, sq, skv), heads batched
        s = jax.lax.dot_general(
            qh.astype(jnp.bfloat16), kh.astype(jnp.bfloat16),
            (((2,), (1,)), ((0,), (0,))),
            preferred_element_type=jnp.float32) * scale
        s = s - jnp.max(s, axis=-1, keepdims=True)
        e = jnp.exp(s)
        p = e * pl.reciprocal(jnp.sum(e, axis=-1, keepdims=True), approx=True)

        # context: (H, sq, skv) . (H, hd, skv)^T -> (H, sq, hd)
        ctx = jax.lax.dot_general(
            p.astype(jnp.bfloat16), vh.astype(jnp.bfloat16),
            (((2,), (2,)), ((0,), (0,))),
            preferred_element_type=jnp.float32)

        # per-head out projection + sum over heads (replaces concat + big matmul)
        oh = jax.lax.dot_general(
            ctx.astype(jnp.bfloat16), wo_heads,
            (((2,), (1,)), ((0,), (0,))),
            preferred_element_type=jnp.float32)                        # (H, sq, D)
        outs.append(jnp.sum(oh, axis=0))                               # (sq, D) f32

    out = outs[0] if bt == 1 else jnp.concatenate(outs, axis=0)        # (bt*sq, D)
    return out + bo_row


# ---------------------------------------------------------------------------
# Fused decoder-layer kernel (block_b batch elements per grid step)
# ---------------------------------------------------------------------------
def decoder_layer_kernel(x_ref, vis_ref, wqkv_ref, wo1h_ref, woch_ref,
                         bcol_ref, vrow_ref, w1_ref, b1_ref, w2_ref, out_ref,
                         *, num_heads_mha, num_heads_cross):
    bt, s, d = x_ref.shape
    sv = vis_ref.shape[1]

    bcol = bcol_ref[...]   # (D, 6) f32: [bq1, bk1, bv1, bqc, bkc, bvc] columns
    vrow = vrow_ref[...]   # (9, D) f32: [bo1, g1, b1, boc, g2, b2, b_fc2, g3, b3]

    x2 = x_ref[...].reshape(bt * s, d)         # (bt*S, D)  bf16
    vis2 = vis_ref[...].reshape(bt * sv, d)    # (bt*Sv, D) bf16

    # --- self attention + residual + LN ---
    sa = _mha_block(x2, x2, wqkv_ref, bcol, 0, wo1h_ref[...], vrow[0:1],
                    num_heads_mha, bt, s, s)
    a1 = _layer_norm(sa + x2.astype(jnp.float32), vrow[1:2], vrow[2:3])
    a1_b = a1.astype(jnp.bfloat16)

    # --- cross attention (query = LN1 out, key/value = vision) + residual + LN ---
    ca = _mha_block(a1_b, vis2, wqkv_ref, bcol, 3, woch_ref[...], vrow[3:4],
                    num_heads_cross, bt, s, sv)
    a2 = _layer_norm(ca + a1, vrow[4:5], vrow[5:6])
    a2_b = a2.astype(jnp.bfloat16)

    # --- feed forward (fc1 -> relu -> fc2) + residual + LN ---
    h = jax.lax.dot_general(a2_b, w1_ref[...], (((1,), (1,)), ((), ())),
                            preferred_element_type=jnp.float32) + b1_ref[...]
    h = jnp.maximum(h, 0.0).astype(jnp.bfloat16)
    ff = jax.lax.dot_general(h, w2_ref[...], (((1,), (1,)), ((), ())),
                             preferred_element_type=jnp.float32) + vrow[6:7]
    out_ref[...] = _layer_norm(ff + a2, vrow[7:8], vrow[8:9]).reshape(bt, s, d)


# ---------------------------------------------------------------------------
# Wrapper: repack PyTorch-layout params and launch the kernel
# ---------------------------------------------------------------------------
def text_decoder_layer(x, vision_features, params, *, num_heads_mha,
                       num_heads_cross, block_b=None):
    B, S, D = x.shape
    Bv, Sv, Dv = vision_features.shape
    assert Bv == B and Dv == D, "cross-attn key/value must be d_model wide"
    assert D % num_heads_mha == 0 and D % num_heads_cross == 0
    F = params["fc1_w"].shape[0]

    if block_b is None:  # fold several batch elements into each grid step
        block_b = next(bb for bb in (8, 4, 2, 1) if B % bb == 0)
    bt = block_b
    assert B % bt == 0

    # ---- repack (host-side, free): stack weights / pack bias vectors, cast bf16
    f32 = jnp.float32
    wqkv = jnp.stack([params["mha1_wq"], params["mha1_wk"], params["mha1_wv"],
                      params["ca_wq"], params["ca_wk"], params["ca_wv"]],
                     axis=0).astype(jnp.bfloat16)                       # (6, D, D)
    wo1_heads = params["mha1_wo"].T.reshape(
        num_heads_mha, D // num_heads_mha, D).astype(jnp.bfloat16)      # (H1, hd1, D)
    woc_heads = params["ca_wo"].T.reshape(
        num_heads_cross, D // num_heads_cross, D).astype(jnp.bfloat16)  # (H2, hd2, D)
    bcol = jnp.stack([params["mha1_bq"], params["mha1_bk"], params["mha1_bv"],
                      params["ca_bq"], params["ca_bk"], params["ca_bv"]],
                     axis=1).astype(f32)                                # (D, 6)
    vrow = jnp.stack([params["mha1_bo"], params["ln1_g"], params["ln1_b"],
                      params["ca_bo"], params["ln2_g"], params["ln2_b"],
                      params["fc2_b"], params["ln3_g"], params["ln3_b"]],
                     axis=0).astype(f32)                                # (9, D)
    w1 = params["fc1_w"].astype(jnp.bfloat16)                           # (F, D)
    b1 = params["fc1_b"].reshape(1, F).astype(f32)                      # (1, F)
    w2 = params["fc2_w"].astype(jnp.bfloat16)                           # (D, F)

    consts = (wqkv, wo1_heads, woc_heads, bcol, vrow, w1, b1, w2)

    in_specs = [
        pl.BlockSpec((bt, S, D), lambda b: (b, 0, 0)),
        pl.BlockSpec((bt, Sv, D), lambda b: (b, 0, 0)),
    ]
    for c in consts:  # weights: full blocks, constant index map (VMEM-resident)
        in_specs.append(pl.BlockSpec(c.shape, lambda b, _n=c.ndim: (0,) * _n))

    # Explicit VMEM budget: weights + activation blocks + intermediates, 2x headroom.
    weight_bytes = sum(int(c.size) * c.dtype.itemsize for c in consts)
    act_bytes = (bt * S * D + bt * Sv * D) * 2 + bt * S * D * 4
    inter_bytes = 4 * (bt * S * F
                       + bt * (num_heads_mha * S * S + num_heads_cross * S * Sv)
                       + 10 * bt * S * D + 4 * bt * Sv * D)
    vmem_limit = int(min(100 * 2 ** 20,
                         max(32 * 2 ** 20,
                             2 * (weight_bytes + act_bytes + inter_bytes))))

    kernel = functools.partial(decoder_layer_kernel,
                               num_heads_mha=num_heads_mha,
                               num_heads_cross=num_heads_cross)

    return pl.pallas_call(
        kernel,
        grid=(B // bt,),
        in_specs=in_specs,
        out_specs=pl.BlockSpec((bt, S, D), lambda b: (b, 0, 0)),
        out_shape=jax.ShapeDtypeStruct((B, S, D), jnp.float32),
        compiler_params=pltpu.CompilerParams(
            dimension_semantics=("parallel",),  # batch blocks are independent
            vmem_limit_bytes=vmem_limit),
    )(x.astype(jnp.bfloat16), vision_features.astype(jnp.bfloat16), *consts)


# ---------------------------------------------------------------------------
# Parameters (PyTorch layout: Linear weights are (out, in), biases 1-D)
# ---------------------------------------------------------------------------
def init_params(key, d_model, d_ff):
    D, F = d_model, d_ff
    specs = [
        ("mha1_wq", (D, D)), ("mha1_wk", (D, D)), ("mha1_wv", (D, D)),
        ("mha1_bq", (D,)), ("mha1_bk", (D,)), ("mha1_bv", (D,)),
        ("mha1_wo", (D, D)), ("mha1_bo", (D,)),
        ("ln1_g", (D,)), ("ln1_b", (D,)),
        ("ca_wq", (D, D)), ("ca_wk", (D, D)), ("ca_wv", (D, D)),
        ("ca_bq", (D,)), ("ca_bk", (D,)), ("ca_bv", (D,)),
        ("ca_wo", (D, D)), ("ca_bo", (D,)),
        ("ln2_g", (D,)), ("ln2_b", (D,)),
        ("fc1_w", (F, D)), ("fc1_b", (F,)),
        ("fc2_w", (D, F)), ("fc2_b", (D,)),
        ("ln3_g", (D,)), ("ln3_b", (D,)),
    ]
    keys = jax.random.split(key, len(specs))
    params = {}
    for (name, shp), k in zip(specs, keys):
        if name.endswith("_g"):                      # LayerNorm gamma ~ 1
            v = 1.0 + 0.1 * jax.random.normal(k, shp, dtype=jnp.float32)
        elif len(shp) == 1:                          # biases / LN beta
            v = 0.05 * jax.random.normal(k, shp, dtype=jnp.float32)
        else:                                        # weight matrices
            v = (1.0 / math.sqrt(shp[-1])) * jax.random.normal(
                k, shp, dtype=jnp.float32)
        params[name] = v
    return params


# ---------------------------------------------------------------------------
# Pure-JAX f32 reference (PyTorch semantics) for the correctness check
# ---------------------------------------------------------------------------
def ref_forward(x, vis, p, num_heads_mha, num_heads_cross):
    def mha(xq, xkv, wq, bq, wk, bk, wv, bv, wo, bo, H):
        B, Sq, D = xq.shape
        Skv = xkv.shape[1]
        hd = D // H
        q = (xq @ wq.T + bq).reshape(B, Sq, H, hd)
        k = (xkv @ wk.T + bk).reshape(B, Skv, H, hd)
        v = (xkv @ wv.T + bv).reshape(B, Skv, H, hd)
        s = jnp.einsum("bqhd,bkhd->bhqk", q, k) / math.sqrt(hd)
        a = jax.nn.softmax(s, axis=-1)
        ctx = jnp.einsum("bhqk,bkhd->bqhd", a, v).reshape(B, Sq, D)
        return ctx @ wo.T + bo

    def ln(a, g, b, eps=1e-5):
        m = jnp.mean(a, axis=-1, keepdims=True)
        v = jnp.mean((a - m) ** 2, axis=-1, keepdims=True)
        return (a - m) * jax.lax.rsqrt(v + eps) * g + b

    sa = mha(x, x, p["mha1_wq"], p["mha1_bq"], p["mha1_wk"], p["mha1_bk"],
             p["mha1_wv"], p["mha1_bv"], p["mha1_wo"], p["mha1_bo"],
             num_heads_mha)
    a1 = ln(sa + x, p["ln1_g"], p["ln1_b"])
    ca = mha(a1, vis, p["ca_wq"], p["ca_bq"], p["ca_wk"], p["ca_bk"],
             p["ca_wv"], p["ca_bv"], p["ca_wo"], p["ca_bo"], num_heads_cross)
    a2 = ln(ca + a1, p["ln2_g"], p["ln2_b"])
    h = jax.nn.relu(a2 @ p["fc1_w"].T + p["fc1_b"])
    ff = h @ p["fc2_w"].T + p["fc2_b"]
    return ln(ff + a2, p["ln3_g"], p["ln3_b"])


if __name__ == "__main__":
    # Small shapes consistent with the module's forward pass.
    B, S, Sv = 2, 8, 16
    d_model, d_ff = 32, 64
    num_heads_mha, num_heads_cross = 4, 4
    # d_k, d_v, vit_dim only parameterize Linear layers unused by forward(); omitted.

    key = jax.random.PRNGKey(0)
    kx, kv, kp = jax.random.split(key, 3)
    x = jax.random.normal(kx, (B, S, d_model), dtype=jnp.float32)
    vision_features = jax.random.normal(kv, (B, Sv, d_model), dtype=jnp.float32)
    params = init_params(kp, d_model, d_ff)

    out = text_decoder_layer(x, vision_features, params,
                             num_heads_mha=num_heads_mha,
                             num_heads_cross=num_heads_cross)
    out = jax.block_until_ready(out)

    ref = jax.block_until_ready(
        ref_forward(x, vision_features, params, num_heads_mha, num_heads_cross))
    err = float(jnp.max(jnp.abs(out - ref)))
    assert out.shape == (B, S, d_model)
    # bf16 matmuls vs f32 reference -> mixed-precision tolerance.
    assert jnp.allclose(out, ref, rtol=5e-2, atol=5e-2), f"max abs err {err}"

    print("KERNEL_OK")
</pallas_src>

<mosaic_0001>
module attributes {stable_mosaic.version = 11 : i64} {
  func.func @decoder_layer_kernel(%arg0: i32, %arg1: memref<2x8x32xbf16, #tpu.memory_space<vmem>>, %arg2: memref<2x16x32xbf16, #tpu.memory_space<vmem>>, %arg3: memref<6x32x32xbf16, #tpu.memory_space<vmem>>, %arg4: memref<4x8x32xbf16, #tpu.memory_space<vmem>>, %arg5: memref<4x8x32xbf16, #tpu.memory_space<vmem>>, %arg6: memref<32x6xf32, #tpu.memory_space<vmem>>, %arg7: memref<9x32xf32, #tpu.memory_space<vmem>>, %arg8: memref<64x32xbf16, #tpu.memory_space<vmem>>, %arg9: memref<1x64xf32, #tpu.memory_space<vmem>>, %arg10: memref<32x64xbf16, #tpu.memory_space<vmem>>, %arg11: memref<2x8x32xf32, #tpu.memory_space<vmem>>) attributes {dimension_semantics = [#tpu.dimension_semantics<parallel>], iteration_bounds = array<i64: 1>, scalar_prefetch = 0 : i64, scratch_operands = 0 : i64, tpu.core_type = #tpu.core_type<tc>, window_params = [{transform_indices = @transform_0, window_bounds = array<i64: 2, 8, 32>}, {transform_indices = @transform_1, window_bounds = array<i64: 2, 16, 32>}, {pipeline_mode = #tpu.pipeline_mode<synchronous>, transform_indices = @transform_2, window_bounds = array<i64: 6, 32, 32>}, {pipeline_mode = #tpu.pipeline_mode<synchronous>, transform_indices = @transform_3, window_bounds = array<i64: 4, 8, 32>}, {pipeline_mode = #tpu.pipeline_mode<synchronous>, transform_indices = @transform_4, window_bounds = array<i64: 4, 8, 32>}, {pipeline_mode = #tpu.pipeline_mode<synchronous>, transform_indices = @transform_5, window_bounds = array<i64: 32, 6>}, {pipeline_mode = #tpu.pipeline_mode<synchronous>, transform_indices = @transform_6, window_bounds = array<i64: 9, 32>}, {pipeline_mode = #tpu.pipeline_mode<synchronous>, transform_indices = @transform_7, window_bounds = array<i64: 64, 32>}, {pipeline_mode = #tpu.pipeline_mode<synchronous>, transform_indices = @transform_8, window_bounds = array<i64: 1, 64>}, {pipeline_mode = #tpu.pipeline_mode<synchronous>, transform_indices = @transform_9, window_bounds = array<i64: 32, 64>}, {transform_indices = @transform_10, window_bounds = array<i64: 2, 8, 32>}]} {
    %c0 = arith.constant 0 : index
    %c0_0 = arith.constant 0 : index
    %0 = vector.load %arg6[%c0, %c0_0] : memref<32x6xf32, #tpu.memory_space<vmem>>, vector<32x6xf32>
    %c0_1 = arith.constant 0 : index
    %c0_2 = arith.constant 0 : index
    %1 = vector.load %arg7[%c0_1, %c0_2] : memref<9x32xf32, #tpu.memory_space<vmem>>, vector<9x32xf32>
    %c0_3 = arith.constant 0 : index
    %c0_4 = arith.constant 0 : index
    %c0_5 = arith.constant 0 : index
    %2 = vector.load %arg1[%c0_3, %c0_4, %c0_5] : memref<2x8x32xbf16, #tpu.memory_space<vmem>>, vector<2x8x32xbf16>
    %3 = vector.shape_cast %2 : vector<2x8x32xbf16> to vector<16x32xbf16>
    %c0_6 = arith.constant 0 : index
    %c0_7 = arith.constant 0 : index
    %c0_8 = arith.constant 0 : index
    %4 = vector.load %arg2[%c0_6, %c0_7, %c0_8] : memref<2x16x32xbf16, #tpu.memory_space<vmem>>, vector<2x16x32xbf16>
    %5 = vector.shape_cast %4 : vector<2x16x32xbf16> to vector<32x32xbf16>
    %c0_9 = arith.constant 0 : index
    %c0_10 = arith.constant 0 : index
    %c0_11 = arith.constant 0 : index
    %6 = vector.load %arg4[%c0_9, %c0_10, %c0_11] : memref<4x8x32xbf16, #tpu.memory_space<vmem>>, vector<4x8x32xbf16>
    %7 = vector.extract_strided_slice %1 {offsets = [0, 0], sizes = [1, 32], strides = [1, 1]} : vector<9x32xf32> to vector<1x32xf32>
    %c0_12 = arith.constant 0 : index
    %c0_13 = arith.constant 0 : index
    %c0_14 = arith.constant 0 : index
    %8 = vector.load %arg3[%c0_12, %c0_13, %c0_14] : memref<6x32x32xbf16, #tpu.memory_space<vmem>>, vector<1x32x32xbf16>
    %9 = vector.shape_cast %8 : vector<1x32x32xbf16> to vector<32x32xbf16>
    %cst = arith.constant dense<0.000000e+00> : vector<32x16xf32>
    %10 = tpu.matmul %9, %3, %cst {dimension_numbers = #tpu.dot_dimension_numbers<[1], [1], [0], [0], [0, 0, 1, 0], [], []>} : vector<32x32xbf16>, vector<16x32xbf16>, vector<32x16xf32> -> vector<32x16xf32>
    %11 = vector.extract_strided_slice %0 {offsets = [0, 0], sizes = [32, 1], strides = [1, 1]} : vector<32x6xf32> to vector<32x1xf32>
    %12 = vector.broadcast %11 : vector<32x1xf32> to vector<32x16xf32>
    %13 = arith.addf %10, %12 : vector<32x16xf32>
    %14 = vector.shape_cast %13 : vector<32x16xf32> to vector<4x8x16xf32>
    %c1 = arith.constant 1 : index
    %c0_15 = arith.constant 0 : index
    %c0_16 = arith.constant 0 : index
    %15 = vector.load %arg3[%c1, %c0_15, %c0_16] : memref<6x32x32xbf16, #tpu.memory_space<vmem>>, vector<1x32x32xbf16>
    %16 = vector.shape_cast %15 : vector<1x32x32xbf16> to vector<32x32xbf16>
    %cst_17 = arith.constant dense<0.000000e+00> : vector<32x16xf32>
    %17 = tpu.matmul %16, %3, %cst_17 {dimension_numbers = #tpu.dot_dimension_numbers<[1], [1], [0], [0], [0, 0, 1, 0], [], []>} : vector<32x32xbf16>, vector<16x32xbf16>, vector<32x16xf32> -> vector<32x16xf32>
    %18 = vector.extract_strided_slice %0 {offsets = [0, 1], sizes = [32, 1], strides = [1, 1]} : vector<32x6xf32> to vector<32x1xf32>
    %19 = vector.broadcast %18 : vector<32x1xf32> to vector<32x16xf32>
    %20 = arith.addf %17, %19 : vector<32x16xf32>
    %21 = vector.shape_cast %20 : vector<32x16xf32> to vector<4x8x16xf32>
    %c2 = arith.constant 2 : index
    %c0_18 = arith.constant 0 : index
    %c0_19 = arith.constant 0 : index
    %22 = vector.load %arg3[%c2, %c0_18, %c0_19] : memref<6x32x32xbf16, #tpu.memory_space<vmem>>, vector<1x32x32xbf16>
    %23 = vector.shape_cast %22 : vector<1x32x32xbf16> to vector<32x32xbf16>
    %cst_20 = arith.constant dense<0.000000e+00> : vector<32x16xf32>
    %24 = tpu.matmul %23, %3, %cst_20 {dimension_numbers = #tpu.dot_dimension_numbers<[1], [1], [0], [0], [0, 0, 1, 0], [], []>} : vector<32x32xbf16>, vector<16x32xbf16>, vector<32x16xf32> -> vector<32x16xf32>
    %25 = vector.extract_strided_slice %0 {offsets = [0, 2], sizes = [32, 1], strides = [1, 1]} : vector<32x6xf32> to vector<32x1xf32>
    %26 = vector.broadcast %25 : vector<32x1xf32> to vector<32x16xf32>
    %27 = arith.addf %24, %26 : vector<32x16xf32>
    %28 = vector.shape_cast %27 : vector<32x16xf32> to vector<4x8x16xf32>
    %29 = vector.extract_strided_slice %14 {offsets = [0, 0, 0], sizes = [4, 8, 8], strides = [1, 1, 1]} : vector<4x8x16xf32> to vector<4x8x8xf32>
    %30 = tpu.transpose %29, [0, 2, 1] : vector<4x8x8xf32> -> vector<4x8x8xf32>
    %31 = vector.extract_strided_slice %21 {offsets = [0, 0, 0], sizes = [4, 8, 8], strides = [1, 1, 1]} : vector<4x8x16xf32> to vector<4x8x8xf32>
    %32 = vector.extract_strided_slice %28 {offsets = [0, 0, 0], sizes = [4, 8, 8], strides = [1, 1, 1]} : vector<4x8x16xf32> to vector<4x8x8xf32>
    %33 = arith.truncf %30 : vector<4x8x8xf32> to vector<4x8x8xbf16>
    %34 = arith.truncf %31 : vector<4x8x8xf32> to vector<4x8x8xbf16>
    %cst_21 = arith.constant dense<0.000000e+00> : vector<4x8x8xf32>
    %35 = tpu.matmul %33, %34, %cst_21 {dimension_numbers = #tpu.dot_dimension_numbers<[2], [1], [1], [2], [0, 0, 0, 1, 1, 2], [0], [0]>} : vector<4x8x8xbf16>, vector<4x8x8xbf16>, vector<4x8x8xf32> -> vector<4x8x8xf32>
    %cst_22 = arith.constant 0.353553385 : f32
    %36 = vector.broadcast %cst_22 : f32 to vector<4x8x8xf32>
    %37 = arith.mulf %35, %36 : vector<4x8x8xf32>
    %cst_23 = arith.constant dense<0xFF800000> : vector<4x8xf32>
    %38 = vector.multi_reduction <maximumf>, %37, %cst_23 [2] : vector<4x8x8xf32> to vector<4x8xf32>
    %39 = vector.shape_cast %38 : vector<4x8xf32> to vector<4x8x1xf32>
    %40 = vector.broadcast %39 : vector<4x8x1xf32> to vector<4x8x8xf32>
    %41 = arith.subf %37, %40 : vector<4x8x8xf32>
    %42 = math.exp %41 : vector<4x8x8xf32>
    %cst_24 = arith.constant dense<0.000000e+00> : vector<4x8xf32>
    %43 = vector.multi_reduction <add>, %42, %cst_24 [2] : vector<4x8x8xf32> to vector<4x8xf32>
    %44 = vector.shape_cast %43 : vector<4x8xf32> to vector<4x8x1xf32>
    %45 = tpu.reciprocal %44 {approx = true} : vector<4x8x1xf32> -> vector<4x8x1xf32>
    %46 = vector.broadcast %45 : vector<4x8x1xf32> to vector<4x8x8xf32>
    %47 = arith.mulf %42, %46 : vector<4x8x8xf32>
    %48 = arith.truncf %47 : vector<4x8x8xf32> to vector<4x8x8xbf16>
    %49 = arith.truncf %32 : vector<4x8x8xf32> to vector<4x8x8xbf16>
    %cst_25 = arith.constant dense<0.000000e+00> : vector<4x8x8xf32>
    %50 = tpu.matmul %48, %49, %cst_25 {dimension_numbers = #tpu.dot_dimension_numbers<[2], [2], [1], [1], [0, 0, 0, 1, 1, 1], [0], [0]>} : vector<4x8x8xbf16>, vector<4x8x8xbf16>, vector<4x8x8xf32> -> vector<4x8x8xf32>
    %51 = arith.truncf %50 : vector<4x8x8xf32> to vector<4x8x8xbf16>
    %cst_26 = arith.constant dense<0.000000e+00> : vector<4x8x32xf32>
    %52 = tpu.matmul %51, %6, %cst_26 {dimension_numbers = #tpu.dot_dimension_numbers<[2], [1], [1], [2], [0, 0, 0, 1, 1, 2], [0], [0]>} : vector<4x8x8xbf16>, vector<4x8x32xbf16>, vector<4x8x32xf32> -> vector<4x8x32xf32>
    %cst_27 = arith.constant dense<0.000000e+00> : vector<8x32xf32>
    %53 = vector.multi_reduction <add>, %52, %cst_27 [0] : vector<4x8x32xf32> to vector<8x32xf32>
    %54 = vector.extract_strided_slice %14 {offsets = [0, 0, 8], sizes = [4, 8, 8], strides = [1, 1, 1]} : vector<4x8x16xf32> to vector<4x8x8xf32>
    %55 = tpu.transpose %54, [0, 2, 1] : vector<4x8x8xf32> -> vector<4x8x8xf32>
    %56 = vector.extract_strided_slice %21 {offsets = [0, 0, 8], sizes = [4, 8, 8], strides = [1, 1, 1]} : vector<4x8x16xf32> to vector<4x8x8xf32>
    %57 = vector.extract_strided_slice %28 {offsets = [0, 0, 8], sizes = [4, 8, 8], strides = [1, 1, 1]} : vector<4x8x16xf32> to vector<4x8x8xf32>
    %58 = arith.truncf %55 : vector<4x8x8xf32> to vector<4x8x8xbf16>
    %59 = arith.truncf %56 : vector<4x8x8xf32> to vector<4x8x8xbf16>
    %cst_28 = arith.constant dense<0.000000e+00> : vector<4x8x8xf32>
    %60 = tpu.matmul %58, %59, %cst_28 {dimension_numbers = #tpu.dot_dimension_numbers<[2], [1], [1], [2], [0, 0, 0, 1, 1, 2], [0], [0]>} : vector<4x8x8xbf16>, vector<4x8x8xbf16>, vector<4x8x8xf32> -> vector<4x8x8xf32>
    %cst_29 = arith.constant 0.353553385 : f32
    %61 = vector.broadcast %cst_29 : f32 to vector<4x8x8xf32>
    %62 = arith.mulf %60, %61 : vector<4x8x8xf32>
    %cst_30 = arith.constant dense<0xFF800000> : vector<4x8xf32>
    %63 = vector.multi_reduction <maximumf>, %62, %cst_30 [2] : vector<4x8x8xf32> to vector<4x8xf32>
    %64 = vector.shape_cast %63 : vector<4x8xf32> to vector<4x8x1xf32>
    %65 = vector.broadcast %64 : vector<4x8x1xf32> to vector<4x8x8xf32>
    %66 = arith.subf %62, %65 : vector<4x8x8xf32>
    %67 = math.exp %66 : vector<4x8x8xf32>
    %cst_31 = arith.constant dense<0.000000e+00> : vector<4x8xf32>
    %68 = vector.multi_reduction <add>, %67, %cst_31 [2] : vector<4x8x8xf32> to vector<4x8xf32>
    %69 = vector.shape_cast %68 : vector<4x8xf32> to vector<4x8x1xf32>
    %70 = tpu.reciprocal %69 {approx = true} : vector<4x8x1xf32> -> vector<4x8x1xf32>
    %71 = vector.broadcast %70 : vector<4x8x1xf32> to vector<4x8x8xf32>
    %72 = arith.mulf %67, %71 : vector<4x8x8xf32>
    %73 = arith.truncf %72 : vector<4x8x8xf32> to vector<4x8x8xbf16>
    %74 = arith.truncf %57 : vector<4x8x8xf32> to vector<4x8x8xbf16>
    %cst_32 = arith.constant dense<0.000000e+00> : vector<4x8x8xf32>
    %75 = tpu.matmul %73, %74, %cst_32 {dimension_numbers = #tpu.dot_dimension_numbers<[2], [2], [1], [1], [0, 0, 0, 1, 1, 1], [0], [0]>} : vector<4x8x8xbf16>, vector<4x8x8xbf16>, vector<4x8x8xf32> -> vector<4x8x8xf32>
    %76 = arith.truncf %75 : vector<4x8x8xf32> to vector<4x8x8xbf16>
    %cst_33 = arith.constant dense<0.000000e+00> : vector<4x8x32xf32>
    %77 = tpu.matmul %76, %6, %cst_33 {dimension_numbers = #tpu.dot_dimension_numbers<[2], [1], [1], [2], [0, 0, 0, 1, 1, 2], [0], [0]>} : vector<4x8x8xbf16>, vector<4x8x32xbf16>, vector<4x8x32xf32> -> vector<4x8x32xf32>
    %cst_34 = arith.constant dense<0.000000e+00> : vector<8x32xf32>
    %78 = vector.multi_reduction <add>, %77, %cst_34 [0] : vector<4x8x32xf32> to vector<8x32xf32>
    %79 = tpu.concatenate %53, %78 in 0 : vector<8x32xf32>, vector<8x32xf32> -> vector<16x32xf32>
    %80 = vector.broadcast %7 : vector<1x32xf32> to vector<16x32xf32>
    %81 = arith.addf %79, %80 : vector<16x32xf32>
    %82 = arith.extf %3 : vector<16x32xbf16> to vector<16x32xf32>
    %83 = arith.addf %81, %82 : vector<16x32xf32>
    %84 = vector.extract_strided_slice %1 {offsets = [1, 0], sizes = [1, 32], strides = [1, 1]} : vector<9x32xf32> to vector<1x32xf32>
    %85 = vector.extract_strided_slice %1 {offsets = [2, 0], sizes = [1, 32], strides = [1, 1]} : vector<9x32xf32> to vector<1x32xf32>
    %cst_35 = arith.constant dense<0.000000e+00> : vector<16xf32>
    %86 = vector.multi_reduction <add>, %83, %cst_35 [1] : vector<16x32xf32> to vector<16xf32>
    %87 = vector.shape_cast %86 : vector<16xf32> to vector<16x1xf32>
    %cst_36 = arith.constant 3.200000e+01 : f32
    %88 = vector.broadcast %cst_36 : f32 to vector<16x1xf32>
    %89 = arith.divf %87, %88 : vector<16x1xf32>
    %90 = vector.broadcast %89 : vector<16x1xf32> to vector<16x32xf32>
    %91 = arith.subf %83, %90 : vector<16x32xf32>
    %92 = arith.mulf %91, %91 : vector<16x32xf32>
    %cst_37 = arith.constant dense<0.000000e+00> : vector<16xf32>
    %93 = vector.multi_reduction <add>, %92, %cst_37 [1] : vector<16x32xf32> to vector<16xf32>
    %94 = vector.shape_cast %93 : vector<16xf32> to vector<16x1xf32>
    %cst_38 = arith.constant 3.200000e+01 : f32
    %95 = vector.broadcast %cst_38 : f32 to vector<16x1xf32>
    %96 = arith.divf %94, %95 : vector<16x1xf32>
    %97 = vector.broadcast %89 : vector<16x1xf32> to vector<16x32xf32>
    %98 = arith.subf %83, %97 : vector<16x32xf32>
    %cst_39 = arith.constant 9.99999974E-6 : f32
    %99 = vector.broadcast %cst_39 : f32 to vector<16x1xf32>
    %100 = arith.addf %96, %99 : vector<16x1xf32>
    %101 = math.rsqrt %100 : vector<16x1xf32>
    %102 = vector.broadcast %101 : vector<16x1xf32> to vector<16x32xf32>
    %103 = arith.mulf %98, %102 : vector<16x32xf32>
    %104 = vector.broadcast %84 : vector<1x32xf32> to vector<16x32xf32>
    %105 = arith.mulf %103, %104 : vector<16x32xf32>
    %106 = vector.broadcast %85 : vector<1x32xf32> to vector<16x32xf32>
    %107 = arith.addf %105, %106 : vector<16x32xf32>
    %108 = arith.truncf %107 : vector<16x32xf32> to vector<16x32xbf16>
    %c0_40 = arith.constant 0 : index
    %c0_41 = arith.constant 0 : index
    %c0_42 = arith.constant 0 : index
    %109 = vector.load %arg5[%c0_40, %c0_41, %c0_42] : memref<4x8x32xbf16, #tpu.memory_space<vmem>>, vector<4x8x32xbf16>
    %110 = vector.extract_strided_slice %1 {offsets = [3, 0], sizes = [1, 32], strides = [1, 1]} : vector<9x32xf32> to vector<1x32xf32>
    %c3 = arith.constant 3 : index
    %c0_43 = arith.constant 0 : index
    %c0_44 = arith.constant 0 : index
    %111 = vector.load %arg3[%c3, %c0_43, %c0_44] : memref<6x32x32xbf16, #tpu.memory_space<vmem>>, vector<1x32x32xbf16>
    %112 = vector.shape_cast %111 : vector<1x32x32xbf16> to vector<32x32xbf16>
    %cst_45 = arith.constant dense<0.000000e+00> : vector<32x16xf32>
    %113 = tpu.matmul %112, %108, %cst_45 {dimension_numbers = #tpu.dot_dimension_numbers<[1], [1], [0], [0], [0, 0, 1, 0], [], []>} : vector<32x32xbf16>, vector<16x32xbf16>, vector<32x16xf32> -> vector<32x16xf32>
    %114 = vector.extract_strided_slice %0 {offsets = [0, 3], sizes = [32, 1], strides = [1, 1]} : vector<32x6xf32> to vector<32x1xf32>
    %115 = vector.broadcast %114 : vector<32x1xf32> to vector<32x16xf32>
    %116 = arith.addf %113, %115 : vector<32x16xf32>
    %117 = vector.shape_cast %116 : vector<32x16xf32> to vector<4x8x16xf32>
    %c4 = arith.constant 4 : index
    %c0_46 = arith.constant 0 : index
    %c0_47 = arith.constant 0 : index
    %118 = vector.load %arg3[%c4, %c0_46, %c0_47] : memref<6x32x32xbf16, #tpu.memory_space<vmem>>, vector<1x32x32xbf16>
    %119 = vector.shape_cast %118 : vector<1x32x32xbf16> to vector<32x32xbf16>
    %cst_48 = arith.constant dense<0.000000e+00> : vector<32x32xf32>
    %120 = tpu.matmul %119, %5, %cst_48 {dimension_numbers = #tpu.dot_dimension_numbers<[1], [1], [0], [0], [0, 0, 1, 0], [], []>} : vector<32x32xbf16>, vector<32x32xbf16>, vector<32x32xf32> -> vector<32x32xf32>
    %121 = vector.extract_strided_slice %0 {offsets = [0, 4], sizes = [32, 1], strides = [1, 1]} : vector<32x6xf32> to vector<32x1xf32>
    %122 = vector.broadcast %121 : vector<32x1xf32> to vector<32x32xf32>
    %123 = arith.addf %120, %122 : vector<32x32xf32>
    %124 = vector.shape_cast %123 : vector<32x32xf32> to vector<4x8x32xf32>
    %c5 = arith.constant 5 : index
    %c0_49 = arith.constant 0 : index
    %c0_50 = arith.constant 0 : index
    %125 = vector.load %arg3[%c5, %c0_49, %c0_50] : memref<6x32x32xbf16, #tpu.memory_space<vmem>>, vector<1x32x32xbf16>
    %126 = vector.shape_cast %125 : vector<1x32x32xbf16> to vector<32x32xbf16>
    %cst_51 = arith.constant dense<0.000000e+00> : vector<32x32xf32>
    %127 = tpu.matmul %126, %5, %cst_51 {dimension_numbers = #tpu.dot_dimension_numbers<[1], [1], [0], [0], [0, 0, 1, 0], [], []>} : vector<32x32xbf16>, vector<32x32xbf16>, vector<32x32xf32> -> vector<32x32xf32>
    %128 = vector.extract_strided_slice %0 {offsets = [0, 5], sizes = [32, 1], strides = [1, 1]} : vector<32x6xf32> to vector<32x1xf32>
    %129 = vector.broadcast %128 : vector<32x1xf32> to vector<32x32xf32>
    %130 = arith.addf %127, %129 : vector<32x32xf32>
    %131 = vector.shape_cast %130 : vector<32x32xf32> to vector<4x8x32xf32>
    %132 = vector.extract_strided_slice %117 {offsets = [0, 0, 0], sizes = [4, 8, 8], strides = [1, 1, 1]} : vector<4x8x16xf32> to vector<4x8x8xf32>
    %133 = tpu.transpose %132, [0, 2, 1] : vector<4x8x8xf32> -> vector<4x8x8xf32>
    %134 = vector.extract_strided_slice %124 {offsets = [0, 0, 0], sizes = [4, 8, 16], strides = [1, 1, 1]} : vector<4x8x32xf32> to vector<4x8x16xf32>
    %135 = vector.extract_strided_slice %131 {offsets = [0, 0, 0], sizes = [4, 8, 16], strides = [1, 1, 1]} : vector<4x8x32xf32> to vector<4x8x16xf32>
    %136 = arith.truncf %133 : vector<4x8x8xf32> to vector<4x8x8xbf16>
    %137 = arith.truncf %134 : vector<4x8x16xf32> to vector<4x8x16xbf16>
    %cst_52 = arith.constant dense<0.000000e+00> : vector<4x8x16xf32>
    %138 = tpu.matmul %136, %137, %cst_52 {dimension_numbers = #tpu.dot_dimension_numbers<[2], [1], [1], [2], [0, 0, 0, 1, 1, 2], [0], [0]>} : vector<4x8x8xbf16>, vector<4x8x16xbf16>, vector<4x8x16xf32> -> vector<4x8x16xf32>
    %cst_53 = arith.constant 0.353553385 : f32
    %139 = vector.broadcast %cst_53 : f32 to vector<4x8x16xf32>
    %140 = arith.mulf %138, %139 : vector<4x8x16xf32>
    %cst_54 = arith.constant dense<0xFF800000> : vector<4x8xf32>
    %141 = vector.multi_reduction <maximumf>, %140, %cst_54 [2] : vector<4x8x16xf32> to vector<4x8xf32>
    %142 = vector.shape_cast %141 : vector<4x8xf32> to vector<4x8x1xf32>
    %143 = vector.broadcast %142 : vector<4x8x1xf32> to vector<4x8x16xf32>
    %144 = arith.subf %140, %143 : vector<4x8x16xf32>
    %145 = math.exp %144 : vector<4x8x16xf32>
    %cst_55 = arith.constant dense<0.000000e+00> : vector<4x8xf32>
    %146 = vector.multi_reduction <add>, %145, %cst_55 [2] : vector<4x8x16xf32> to vector<4x8xf32>
    %147 = vector.shape_cast %146 : vector<4x8xf32> to vector<4x8x1xf32>
    %148 = tpu.reciprocal %147 {approx = true} : vector<4x8x1xf32> -> vector<4x8x1xf32>
    %149 = vector.broadcast %148 : vector<4x8x1xf32> to vector<4x8x16xf32>
    %150 = arith.mulf %145, %149 : vector<4x8x16xf32>
    %151 = arith.truncf %150 : vector<4x8x16xf32> to vector<4x8x16xbf16>
    %152 = arith.truncf %135 : vector<4x8x16xf32> to vector<4x8x16xbf16>
    %cst_56 = arith.constant dense<0.000000e+00> : vector<4x8x8xf32>
    %153 = tpu.matmul %151, %152, %cst_56 {dimension_numbers = #tpu.dot_dimension_numbers<[2], [2], [1], [1], [0, 0, 0, 1, 1, 1], [0], [0]>} : vector<4x8x16xbf16>, vector<4x8x16xbf16>, vector<4x8x8xf32> -> vector<4x8x8xf32>
    %154 = arith.truncf %153 : vector<4x8x8xf32> to vector<4x8x8xbf16>
    %cst_57 = arith.constant dense<0.000000e+00> : vector<4x8x32xf32>
    %155 = tpu.matmul %154, %109, %cst_57 {dimension_numbers = #tpu.dot_dimension_numbers<[2], [1], [1], [2], [0, 0, 0, 1, 1, 2], [0], [0]>} : vector<4x8x8xbf16>, vector<4x8x32xbf16>, vector<4x8x32xf32> -> vector<4x8x32xf32>
    %cst_58 = arith.constant dense<0.000000e+00> : vector<8x32xf32>
    %156 = vector.multi_reduction <add>, %155, %cst_58 [0] : vector<4x8x32xf32> to vector<8x32xf32>
    %157 = vector.extract_strided_slice %117 {offsets = [0, 0, 8], sizes = [4, 8, 8], strides = [1, 1, 1]} : vector<4x8x16xf32> to vector<4x8x8xf32>
    %158 = tpu.transpose %157, [0, 2, 1] : vector<4x8x8xf32> -> vector<4x8x8xf32>
    %159 = vector.extract_strided_slice %124 {offsets = [0, 0, 16], sizes = [4, 8, 16], strides = [1, 1, 1]} : vector<4x8x32xf32> to vector<4x8x16xf32>
    %160 = vector.extract_strided_slice %131 {offsets = [0, 0, 16], sizes = [4, 8, 16], strides = [1, 1, 1]} : vector<4x8x32xf32> to vector<4x8x16xf32>
    %161 = arith.truncf %158 : vector<4x8x8xf32> to vector<4x8x8xbf16>
    %162 = arith.truncf %159 : vector<4x8x16xf32> to vector<4x8x16xbf16>
    %cst_59 = arith.constant dense<0.000000e+00> : vector<4x8x16xf32>
    %163 = tpu.matmul %161, %162, %cst_59 {dimension_numbers = #tpu.dot_dimension_numbers<[2], [1], [1], [2], [0, 0, 0, 1, 1, 2], [0], [0]>} : vector<4x8x8xbf16>, vector<4x8x16xbf16>, vector<4x8x16xf32> -> vector<4x8x16xf32>
    %cst_60 = arith.constant 0.353553385 : f32
    %164 = vector.broadcast %cst_60 : f32 to vector<4x8x16xf32>
    %165 = arith.mulf %163, %164 : vector<4x8x16xf32>
    %cst_61 = arith.constant dense<0xFF800000> : vector<4x8xf32>
    %166 = vector.multi_reduction <maximumf>, %165, %cst_61 [2] : vector<4x8x16xf32> to vector<4x8xf32>
    %167 = vector.shape_cast %166 : vector<4x8xf32> to vector<4x8x1xf32>
    %168 = vector.broadcast %167 : vector<4x8x1xf32> to vector<4x8x16xf32>
    %169 = arith.subf %165, %168 : vector<4x8x16xf32>
    %170 = math.exp %169 : vector<4x8x16xf32>
    %cst_62 = arith.constant dense<0.000000e+00> : vector<4x8xf32>
    %171 = vector.multi_reduction <add>, %170, %cst_62 [2] : vector<4x8x16xf32> to vector<4x8xf32>
    %172 = vector.shape_cast %171 : vector<4x8xf32> to vector<4x8x1xf32>
    %173 = tpu.reciprocal %172 {approx = true} : vector<4x8x1xf32> -> vector<4x8x1xf32>
    %174 = vector.broadcast %173 : vector<4x8x1xf32> to vector<4x8x16xf32>
    %175 = arith.mulf %170, %174 : vector<4x8x16xf32>
    %176 = arith.truncf %175 : vector<4x8x16xf32> to vector<4x8x16xbf16>
    %177 = arith.truncf %160 : vector<4x8x16xf32> to vector<4x8x16xbf16>
    %cst_63 = arith.constant dense<0.000000e+00> : vector<4x8x8xf32>
    %178 = tpu.matmul %176, %177, %cst_63 {dimension_numbers = #tpu.dot_dimension_numbers<[2], [2], [1], [1], [0, 0, 0, 1, 1, 1], [0], [0]>} : vector<4x8x16xbf16>, vector<4x8x16xbf16>, vector<4x8x8xf32> -> vector<4x8x8xf32>
    %179 = arith.truncf %178 : vector<4x8x8xf32> to vector<4x8x8xbf16>
    %cst_64 = arith.constant dense<0.000000e+00> : vector<4x8x32xf32>
    %180 = tpu.matmul %179, %109, %cst_64 {dimension_numbers = #tpu.dot_dimension_numbers<[2], [1], [1], [2], [0, 0, 0, 1, 1, 2], [0], [0]>} : vector<4x8x8xbf16>, vector<4x8x32xbf16>, vector<4x8x32xf32> -> vector<4x8x32xf32>
    %cst_65 = arith.constant dense<0.000000e+00> : vector<8x32xf32>
    %181 = vector.multi_reduction <add>, %180, %cst_65 [0] : vector<4x8x32xf32> to vector<8x32xf32>
    %182 = tpu.concatenate %156, %181 in 0 : vector<8x32xf32>, vector<8x32xf32> -> vector<16x32xf32>
    %183 = vector.broadcast %110 : vector<1x32xf32> to vector<16x32xf32>
    %184 = arith.addf %182, %183 : vector<16x32xf32>
    %185 = arith.addf %184, %107 : vector<16x32xf32>
    %186 = vector.extract_strided_slice %1 {offsets = [4, 0], sizes = [1, 32], strides = [1, 1]} : vector<9x32xf32> to vector<1x32xf32>
    %187 = vector.extract_strided_slice %1 {offsets = [5, 0], sizes = [1, 32], strides = [1, 1]} : vector<9x32xf32> to vector<1x32xf32>
    %cst_66 = arith.constant dense<0.000000e+00> : vector<16xf32>
    %188 = vector.multi_reduction <add>, %185, %cst_66 [1] : vector<16x32xf32> to vector<16xf32>
    %189 = vector.shape_cast %188 : vector<16xf32> to vector<16x1xf32>
    %cst_67 = arith.constant 3.200000e+01 : f32
    %190 = vector.broadcast %cst_67 : f32 to vector<16x1xf32>
    %191 = arith.divf %189, %190 : vector<16x1xf32>
    %192 = vector.broadcast %191 : vector<16x1xf32> to vector<16x32xf32>
    %193 = arith.subf %185, %192 : vector<16x32xf32>
    %194 = arith.mulf %193, %193 : vector<16x32xf32>
    %cst_68 = arith.constant dense<0.000000e+00> : vector<16xf32>
    %195 = vector.multi_reduction <add>, %194, %cst_68 [1] : vector<16x32xf32> to vector<16xf32>
    %196 = vector.shape_cast %195 : vector<16xf32> to vector<16x1xf32>
    %cst_69 = arith.constant 3.200000e+01 : f32
    %197 = vector.broadcast %cst_69 : f32 to vector<16x1xf32>
    %198 = arith.divf %196, %197 : vector<16x1xf32>
    %199 = vector.broadcast %191 : vector<16x1xf32> to vector<16x32xf32>
    %200 = arith.subf %185, %199 : vector<16x32xf32>
    %cst_70 = arith.constant 9.99999974E-6 : f32
    %201 = vector.broadcast %cst_70 : f32 to vector<16x1xf32>
    %202 = arith.addf %198, %201 : vector<16x1xf32>
    %203 = math.rsqrt %202 : vector<16x1xf32>
    %204 = vector.broadcast %203 : vector<16x1xf32> to vector<16x32xf32>
    %205 = arith.mulf %200, %204 : vector<16x32xf32>
    %206 = vector.broadcast %186 : vector<1x32xf32> to vector<16x32xf32>
    %207 = arith.mulf %205, %206 : vector<16x32xf32>
    %208 = vector.broadcast %187 : vector<1x32xf32> to vector<16x32xf32>
    %209 = arith.addf %207, %208 : vector<16x32xf32>
    %210 = arith.truncf %209 : vector<16x32xf32> to vector<16x32xbf16>
    %c0_71 = arith.constant 0 : index
    %c0_72 = arith.constant 0 : index
    %211 = vector.load %arg8[%c0_71, %c0_72] : memref<64x32xbf16, #tpu.memory_space<vmem>>, vector<64x32xbf16>
    %cst_73 = arith.constant dense<0.000000e+00> : vector<16x64xf32>
    %212 = tpu.matmul %210, %211, %cst_73 {dimension_numbers = #tpu.dot_dimension_numbers<[1], [1], [0], [0], [0, 0, 1, 0], [], []>} : vector<16x32xbf16>, vector<64x32xbf16>, vector<16x64xf32> -> vector<16x64xf32>
    %c0_74 = arith.constant 0 : index
    %c0_75 = arith.constant 0 : index
    %213 = vector.load %arg9[%c0_74, %c0_75] : memref<1x64xf32, #tpu.memory_space<vmem>>, vector<1x64xf32>
    %214 = vector.broadcast %213 : vector<1x64xf32> to vector<16x64xf32>
    %215 = arith.addf %212, %214 : vector<16x64xf32>
    %cst_76 = arith.constant 0.000000e+00 : f32
    %216 = vector.broadcast %cst_76 : f32 to vector<16x64xf32>
    %217 = arith.maximumf %215, %216 : vector<16x64xf32>
    %218 = arith.truncf %217 : vector<16x64xf32> to vector<16x64xbf16>
    %c0_77 = arith.constant 0 : index
    %c0_78 = arith.constant 0 : index
    %219 = vector.load %arg10[%c0_77, %c0_78] : memref<32x64xbf16, #tpu.memory_space<vmem>>, vector<32x64xbf16>
    %cst_79 = arith.constant dense<0.000000e+00> : vector<16x32xf32>
    %220 = tpu.matmul %218, %219, %cst_79 {dimension_numbers = #tpu.dot_dimension_numbers<[1], [1], [0], [0], [0, 0, 1, 0], [], []>} : vector<16x64xbf16>, vector<32x64xbf16>, vector<16x32xf32> -> vector<16x32xf32>
    %221 = vector.extract_strided_slice %1 {offsets = [6, 0], sizes = [1, 32], strides = [1, 1]} : vector<9x32xf32> to vector<1x32xf32>
    %222 = vector.broadcast %221 : vector<1x32xf32> to vector<16x32xf32>
    %223 = arith.addf %220, %222 : vector<16x32xf32>
    %224 = arith.addf %223, %209 : vector<16x32xf32>
    %225 = vector.extract_strided_slice %1 {offsets = [7, 0], sizes = [1, 32], strides = [1, 1]} : vector<9x32xf32> to vector<1x32xf32>
    %226 = vector.extract_strided_slice %1 {offsets = [8, 0], sizes = [1, 32], strides = [1, 1]} : vector<9x32xf32> to vector<1x32xf32>
    %cst_80 = arith.constant dense<0.000000e+00> : vector<16xf32>
    %227 = vector.multi_reduction <add>, %224, %cst_80 [1] : vector<16x32xf32> to vector<16xf32>
    %228 = vector.shape_cast %227 : vector<16xf32> to vector<16x1xf32>
    %cst_81 = arith.constant 3.200000e+01 : f32
    %229 = vector.broadcast %cst_81 : f32 to vector<16x1xf32>
    %230 = arith.divf %228, %229 : vector<16x1xf32>
    %231 = vector.broadcast %230 : vector<16x1xf32> to vector<16x32xf32>
    %232 = arith.subf %224, %231 : vector<16x32xf32>
    %233 = arith.mulf %232, %232 : vector<16x32xf32>
    %cst_82 = arith.constant dense<0.000000e+00> : vector<16xf32>
    %234 = vector.multi_reduction <add>, %233, %cst_82 [1] : vector<16x32xf32> to vector<16xf32>
    %235 = vector.shape_cast %234 : vector<16xf32> to vector<16x1xf32>
    %cst_83 = arith.constant 3.200000e+01 : f32
    %236 = vector.broadcast %cst_83 : f32 to vector<16x1xf32>
    %237 = arith.divf %235, %236 : vector<16x1xf32>
    %238 = vector.broadcast %230 : vector<16x1xf32> to vector<16x32xf32>
    %239 = arith.subf %224, %238 : vector<16x32xf32>
    %cst_84 = arith.constant 9.99999974E-6 : f32
    %240 = vector.broadcast %cst_84 : f32 to vector<16x1xf32>
    %241 = arith.addf %237, %240 : vector<16x1xf32>
    %242 = math.rsqrt %241 : vector<16x1xf32>
    %243 = vector.broadcast %242 : vector<16x1xf32> to vector<16x32xf32>
    %244 = arith.mulf %239, %243 : vector<16x32xf32>
    %245 = vector.broadcast %225 : vector<1x32xf32> to vector<16x32xf32>
    %246 = arith.mulf %244, %245 : vector<16x32xf32>
    %247 = vector.broadcast %226 : vector<1x32xf32> to vector<16x32xf32>
    %248 = arith.addf %246, %247 : vector<16x32xf32>
    %249 = vector.shape_cast %248 : vector<16x32xf32> to vector<2x8x32xf32>
    %c0_85 = arith.constant 0 : index
    %c0_86 = arith.constant 0 : index
    %c0_87 = arith.constant 0 : index
    %250 = vector.load %arg11[%c0_85, %c0_86, %c0_87] : memref<2x8x32xf32, #tpu.memory_space<vmem>>, vector<2x8x32xf32>
    tpu.vector_store %arg11[%c0_85, %c0_86, %c0_87], %249 {strides = array<i32>} : memref<2x8x32xf32, #tpu.memory_space<vmem>>, vector<2x8x32xf32>,
    return
  }
  func.func @transform_0(%arg0: i32) -> (i32, i32, i32) {
    %c0_i32 = arith.constant 0 : i32
    %c0_i32_0 = arith.constant 0 : i32
    %c0_i32_1 = arith.constant 0 : i32
    return %arg0, %c0_i32, %c0_i32_0 : i32, i32, i32
  }
  func.func @transform_1(%arg0: i32) -> (i32, i32, i32) {
    %c0_i32 = arith.constant 0 : i32
    %c0_i32_0 = arith.constant 0 : i32
    %c0_i32_1 = arith.constant 0 : i32
    return %arg0, %c0_i32, %c0_i32_0 : i32, i32, i32
  }
  func.func @transform_2(%arg0: i32) -> (i32, i32, i32) {
    %c0_i32 = arith.constant 0 : i32
    %c0_i32_0 = arith.constant 0 : i32
    %c0_i32_1 = arith.constant 0 : i32
    %c0_i32_2 = arith.constant 0 : i32
    return %c0_i32, %c0_i32_0, %c0_i32_1 : i32, i32, i32
  }
  func.func @transform_3(%arg0: i32) -> (i32, i32, i32) {
    %c0_i32 = arith.constant 0 : i32
    %c0_i32_0 = arith.constant 0 : i32
    %c0_i32_1 = arith.constant 0 : i32
    %c0_i32_2 = arith.constant 0 : i32
    return %c0_i32, %c0_i32_0, %c0_i32_1 : i32, i32, i32
  }
  func.func @transform_4(%arg0: i32) -> (i32, i32, i32) {
    %c0_i32 = arith.constant 0 : i32
    %c0_i32_0 = arith.constant 0 : i32
    %c0_i32_1 = arith.constant 0 : i32
    %c0_i32_2 = arith.constant 0 : i32
    return %c0_i32, %c0_i32_0, %c0_i32_1 : i32, i32, i32
  }
  func.func @transform_5(%arg0: i32) -> (i32, i32) {
    %c0_i32 = arith.constant 0 : i32
    %c0_i32_0 = arith.constant 0 : i32
    %c0_i32_1 = arith.constant 0 : i32
    return %c0_i32, %c0_i32_0 : i32, i32
  }
  func.func @transform_6(%arg0: i32) -> (i32, i32) {
    %c0_i32 = arith.constant 0 : i32
    %c0_i32_0 = arith.constant 0 : i32
    %c0_i32_1 = arith.constant 0 : i32
    return %c0_i32, %c0_i32_0 : i32, i32
  }
  func.func @transform_7(%arg0: i32) -> (i32, i32) {
    %c0_i32 = arith.constant 0 : i32
    %c0_i32_0 = arith.constant 0 : i32
    %c0_i32_1 = arith.constant 0 : i32
    return %c0_i32, %c0_i32_0 : i32, i32
  }
  func.func @transform_8(%arg0: i32) -> (i32, i32) {
    %c0_i32 = arith.constant 0 : i32
    %c0_i32_0 = arith.constant 0 : i32
    %c0_i32_1 = arith.constant 0 : i32
    return %c0_i32, %c0_i32_0 : i32, i32
  }
  func.func @transform_9(%arg0: i32) -> (i32, i32) {
    %c0_i32 = arith.constant 0 : i32
    %c0_i32_0 = arith.constant 0 : i32
    %c0_i32_1 = arith.constant 0 : i32
    return %c0_i32, %c0_i32_0 : i32, i32
  }
  func.func @transform_10(%arg0: i32) -> (i32, i32, i32) {
    %c0_i32 = arith.constant 0 : i32
    %c0_i32_0 = arith.constant 0 : i32
    %c0_i32_1 = arith.constant 0 : i32
    return %arg0, %c0_i32, %c0_i32_0 : i32, i32, i32
  }
}

</mosaic_0001>

<llo_original>
// kernel: tpu_custom_call.1
$region0: #{tpu_custom_call.1}
  #allocation0 [shape = 'u32[]', space=smem, size = 0x4, offset = 0x4, fixed_abs, tag = 'smem constant byte address 0x4 - core index']
  #allocation1 [shape = 'u32[144,128]{1,0:T(1,128)}', space=vmem, size = 0x12000, scoped, tag = 'internal scratch']
  %s0 = inlined_call_operand.hbm [shape: bf16[2,8,32], index: 0, kind: input, shape index: {}]
  %s1 = inlined_call_operand.vmem [shape: bf16[2,16,32], index: 1, kind: input, shape index: {}]
  %s2 = inlined_call_operand.hbm [shape: bf16[6,32,32], index: 2, kind: input, shape index: {}]
  %s3 = inlined_call_operand.vmem [shape: bf16[4,8,32], index: 3, kind: input, shape index: {}]
  %s4 = inlined_call_operand.vmem [shape: bf16[4,8,32], index: 4, kind: input, shape index: {}]
  %s5 = inlined_call_operand.vmem [shape: f32[32,6], index: 5, kind: input, shape index: {}]
  %s6 = inlined_call_operand.vmem [shape: f32[9,32], index: 6, kind: input, shape index: {}]
  %s7 = inlined_call_operand.vmem [shape: bf16[64,32], index: 7, kind: input, shape index: {}]
  %s8 = inlined_call_operand.vmem [shape: f32[1,64], index: 8, kind: input, shape index: {}]
  %s9 = inlined_call_operand.vmem [shape: bf16[32,64], index: 9, kind: input, shape index: {}]
  %s10 = inlined_call_operand.hbm [shape: f32[2,8,32], index: 10, kind: output, shape index: {}]
  %s11 = sld [smem:[#allocation0]]
  $region58: #{tpu_custom_call.1} parent=0
    _
  %s13 = ssub.s32 1, %s11
  %s14 = scalar_select 0, %s13, %s11
  $region1: #{tpu_custom_call.1} parent=0
    #allocation2 [shape = 'u8[4096]{0}', space=vmem, size = 0x1000, scoped, tag = 'input window, operand 0, single buffered']
    #allocation3 [shape = 's32[1]{0}', space=sflag, size = 0x4, scoped, tag = 'scoped memory for tpu_custom_call.1']
    #allocation4 [shape = 's32[1]{0}', space=sflag, size = 0x4, scoped, tag = 'scoped memory for tpu_custom_call.1']
    #allocation5 [shape = 'u8[49152]{0}', space=vmem, size = 0xc000, scoped, tag = 'input window, operand 2, single buffered']
    #allocation6 [shape = 's32[1]{0}', space=sflag, size = 0x4, scoped, tag = 'scoped memory for tpu_custom_call.1']
    #allocation7 [shape = 'u8[8192]{0}', space=vmem, size = 0x2000, scoped, tag = 'output window, operand 0, single buffered']
    %15 = vsyncpa [#allocation3], 0
    %16 = vsyncpa [#allocation6], 0
    %17 = vsyncpa [#allocation4], 0
    // Predicated region
    $region2: #{tpu_custom_call.1} parent=1 // pred_check
      _
    $region3: #{tpu_custom_call.1} parent=1 // pred_check_branch
      %19 = sbr.rel (0) target = $region5
    $region4: #{tpu_custom_call.1} parent=1 // pred_region
      %s21 = ssub.s32 128, 128
      %22 = vsyncadd [#allocation3], %s21
      %s23 = sshll.u32 [#allocation2], 4
      %s24 = int_to_ptr.vmem [resolvable:$true] %s23
      %29 = dma.hbm_to_vmem [thread:$0]  %s0, 128, %s24, [#allocation3], 64, 64, 4
    $region5: #{tpu_custom_call.1} parent=1 // pred_fallthru
      _
    // Predicated region
    $region6: #{tpu_custom_call.1} parent=1 // pred_check
      _
    $region7: #{tpu_custom_call.1} parent=1 // pred_check_branch
      %31 = sbr.rel (0) target = $region9
    $region8: #{tpu_custom_call.1} parent=1 // pred_region
      _
    $region9: #{tpu_custom_call.1} parent=1 // pred_fallthru
      _
    // Predicated region
    $region10: #{tpu_custom_call.1} parent=1 // pred_check
      _
    $region11: #{tpu_custom_call.1} parent=1 // pred_check_branch
      %33 = sbr.rel (0) target = $region13
    $region12: #{tpu_custom_call.1} parent=1 // pred_region
      %s35 = ssub.s32 1536, 1536
      %36 = vsyncadd [#allocation6], %s35
      %s37 = sshll.u32 [#allocation5], 4
      %s38 = int_to_ptr.vmem [resolvable:$true] %s37
      %43 = dma.hbm_to_vmem [thread:$0]  %s2, 1536, %s38, [#allocation6], 64, 64, 4
    $region13: #{tpu_custom_call.1} parent=1 // pred_fallthru
      _
    // Predicated region
    $region14: #{tpu_custom_call.1} parent=1 // pred_check
      _
    $region15: #{tpu_custom_call.1} parent=1 // pred_check_branch
      %45 = sbr.rel (0) target = $region17
    $region16: #{tpu_custom_call.1} parent=1 // pred_region
      _
    $region17: #{tpu_custom_call.1} parent=1 // pred_fallthru
      _
    // Predicated region
    $region18: #{tpu_custom_call.1} parent=1 // pred_check
      _
    $region19: #{tpu_custom_call.1} parent=1 // pred_check_branch
      %47 = sbr.rel (0) target = $region21
    $region20: #{tpu_custom_call.1} parent=1 // pred_region
      _
    $region21: #{tpu_custom_call.1} parent=1 // pred_fallthru
      _
    // Predicated region
    $region22: #{tpu_custom_call.1} parent=1 // pred_check
      _
    $region23: #{tpu_custom_call.1} parent=1 // pred_check_branch
      %49 = sbr.rel (0) target = $region25
    $region24: #{tpu_custom_call.1} parent=1 // pred_region
      _
    $region25: #{tpu_custom_call.1} parent=1 // pred_fallthru
      _
    // Predicated region
    $region26: #{tpu_custom_call.1} parent=1 // pred_check
      _
    $region27: #{tpu_custom_call.1} parent=1 // pred_check_branch
      %51 = sbr.rel (0) target = $region29
    $region28: #{tpu_custom_call.1} parent=1 // pred_region
      _
    $region29: #{tpu_custom_call.1} parent=1 // pred_fallthru
      _
    // Predicated region
    $region30: #{tpu_custom_call.1} parent=1 // pred_check
      _
    $region31: #{tpu_custom_call.1} parent=1 // pred_check_branch
      %53 = sbr.rel (0) target = $region33
    $region32: #{tpu_custom_call.1} parent=1 // pred_region
      _
    $region33: #{tpu_custom_call.1} parent=1 // pred_fallthru
      _
    // Predicated region
    $region34: #{tpu_custom_call.1} parent=1 // pred_check
      _
    $region35: #{tpu_custom_call.1} parent=1 // pred_check_branch
      %55 = sbr.rel (0) target = $region37
    $region36: #{tpu_custom_call.1} parent=1 // pred_region
      _
    $region37: #{tpu_custom_call.1} parent=1 // pred_fallthru
      _
    // Predicated region
    $region38: #{tpu_custom_call.1} parent=1 // pred_check
      _
    $region39: #{tpu_custom_call.1} parent=1 // pred_check_branch
      %57 = sbr.rel (0) target = $region41
    $region40: #{tpu_custom_call.1} parent=1 // pred_region
      _
    $region41: #{tpu_custom_call.1} parent=1 // pred_fallthru
      _
    // Predicated region
    $region42: #{tpu_custom_call.1} parent=1 // pred_check
      _
    $region43: #{tpu_custom_call.1} parent=1 // pred_check_branch
      %59 = sbr.rel (0) target = $region45
    $region44: #{tpu_custom_call.1} parent=1 // pred_region
      %60 = dma.done [#allocation3], 128
    $region45: #{tpu_custom_call.1} parent=1 // pred_fallthru
      _
    // Predicated region
    $region46: #{tpu_custom_call.1} parent=1 // pred_check
      _
    $region47: #{tpu_custom_call.1} parent=1 // pred_check_branch
      %62 = sbr.rel (0) target = $region49
    $region48: #{tpu_custom_call.1} parent=1 // pred_region
      %63 = dma.done [#allocation6], 1536
    $region49: #{tpu_custom_call.1} parent=1 // pred_fallthru
      _
    %v65 = vld [vmem:[%s5] sm:$0xff]
    %v66 = vld [vmem:[%s5 + $0x8] sm:$0xff]
    %v67 = vld [vmem:[%s5 + $0x10] sm:$0xff]
    %v68 = vld [vmem:[%s5 + $0x18] sm:$0xff]
    %v69 = vld [vmem:[%s6] sm:$0xff]
    %v70 = vld [vmem:[%s6 + $0x8] sm:$0x1]
    %v71 = vld [vmem:[#allocation2] sm:$0xf]
    %v72 = vld [vmem:[#allocation2 + $0x4] sm:$0xf]
    %v73 = vld [vmem:[%s1] sm:$0xf]
    %v74 = vld [vmem:[%s1 + $0x4] sm:$0xf]
    %v75 = vld [vmem:[%s1 + $0x8] sm:$0xf]
    %v76 = vld [vmem:[%s1 + $0xc] sm:$0xf]
    %v77 = vld [vmem:[%s3] sm:$0xf]
    %v78 = vld [vmem:[%s3 + $0x4] sm:$0xf]
    %v79 = vld [vmem:[%s3 + $0x8] sm:$0xf]
    %v80 = vld [vmem:[%s3 + $0xc] sm:$0xf]
    %v81 = vld [vmem:[#allocation5] sm:$0xf]
    %v82 = vld [vmem:[#allocation5 + $0x4] sm:$0xf]
    %v83 = vld [vmem:[#allocation5 + $0x8] sm:$0xf]
    %v84 = vld [vmem:[#allocation5 + $0xc] sm:$0xf]
    %86 = vset.pattern.permute.xlu0 0
    %87 = vperm.xlu0 %86, %v65
    %v88 = vpop.permute.xlu0 %87
    %91 = vset.pattern.permute.xlu0 0
    %92 = vperm.xlu0 %91, %v66
    %v93 = vpop.permute.xlu0 %92
    %96 = vset.pattern.permute.xlu0 0
    %97 = vperm.xlu0 %96, %v67
    %v98 = vpop.permute.xlu0 %97
    %101 = vset.pattern.permute.xlu0 0
    %102 = vperm.xlu0 %101, %v68
    %v103 = vpop.permute.xlu0 %102
    %v109 = vunpack.c.l.b16 %v81
    %v110 = vunpack.c.l.b16 %v82
    %v111 = vunpack.c.l.b16 %v83
    %v112 = vunpack.c.l.b16 %v84
    %v113 = vpack.c.b16 %v110, %v109
    %v114 = vpack.c.b16 %v112, %v111
    %v117 = vunpack.c.l.b16 %v71
    %v118 = vunpack.c.l.b16 %v72
    %v119 = vpack.c.b16 %v118, %v117
    %vm120 = vcmask 261120
    %v122 = vsel %vm120, %v113, 0
    %v125 = vsel %vm120, %v114, 0
    %v128 = vsel %vm120, %v119, 0
    %130 = vmatprep.subr.bf16.mxu0 0
    %131 = vmatpush1.bf16.xpose.msra.mxu0 %v128
    %132 = vmatprep.subr.bf16.mxu0 0
    %133 = vmatpush1.bf16.xpose.msra.mxu0 0
    %134 = vmatprep.subr.bf16.mxu0 0
    %135 = vmatpush1.bf16.xpose.msra.mxu0 0
    %136 = vmatprep.subr.bf16.mxu0 0
    %137 = vmatpush1.bf16.xpose.msra.mxu0 0
    %138 = vmatprep.subr.bf16.mxu0 0
    %139 = vmatpush1.bf16.xpose.msra.mxu0 0
    %140 = vmatprep.subr.bf16.mxu0 0
    %141 = vmatpush1.bf16.xpose.msra.mxu0 0
    %142 = vmatprep.subr.bf16.mxu0 0
    %143 = vmatpush1.bf16.xpose.msra.mxu0 0
    %144 = vmatprep.subr.bf16.mxu0 0
    %145 = vmatpush1.bf16.xpose.msra.mxu0 0
    %146 = vmatprep.subr.bf16.mxu0 0
    %147 = vmatpush1.bf16.xpose.msra.mxu0 0
    %148 = vmatprep.subr.bf16.mxu0 0
    %149 = vmatpush1.bf16.xpose.msra.mxu0 0
    %150 = vmatprep.subr.bf16.mxu0 0
    %151 = vmatpush1.bf16.xpose.msra.mxu0 0
    %152 = vmatprep.subr.bf16.mxu0 0
    %153 = vmatpush1.bf16.xpose.msra.mxu0 0
    %154 = vmatprep.subr.bf16.mxu0 0
    %155 = vmatpush1.bf16.xpose.msra.mxu0 0
    %156 = vmatprep.subr.bf16.mxu0 0
    %157 = vmatpush1.bf16.xpose.msra.mxu0 0
    %158 = vmatprep.subr.bf16.mxu0 0
    %159 = vmatpush1.bf16.xpose.msra.mxu0 0
    %160 = vmatprep.subr.bf16.mxu0 0
    %161 = vmatpush1.bf16.xpose.msra.mxu0 0
    %162 = vmatprep.mubr.bf16.mxu0 0
    %163 = vmatmul.mubr.bf16.gmra.mrb[0].mxu0 %v122
    %v164 = vpop.f32.mrb[0].mxu0
    %v165 = vadd.f32 %v88, %v164
    %v166 = vpop.f32.mrb[0].mxu0
    %v167 = vpop.f32.mrb[0].mxu0
    %v168 = vadd.f32 %v93, %v167
    %v169 = vpop.f32.mrb[0].mxu0
    %170 = vmatprep.mubr.bf16.mxu0 0
    %171 = vmatmul.mubr.bf16.gmra.mrb[0].mxu0 %v125
    %v172 = vpop.f32.mrb[0].mxu0
    %v173 = vadd.f32 %v98, %v172
    %v174 = vpop.f32.mrb[0].mxu0
    %v175 = vpop.f32.mrb[0].mxu0
    %v176 = vadd.f32 %v103, %v175
    %v177 = vpop.f32.mrb[0].mxu0
    %178 = vdwg.mxu0
    %s179 = scalar_lea.vmem [#allocation5], 16
    %v180 = vld [vmem:[%s179] sm:$0xf]
    %v181 = vld [vmem:[%s179 + $0x4] sm:$0xf]
    %v182 = vld [vmem:[%s179 + $0x8] sm:$0xf]
    %v183 = vld [vmem:[%s179 + $0xc] sm:$0xf]
    %184 = vset.pattern.permute.xlu0 1
    %185 = vperm.xlu0 %184, %v65
    %v186 = vpop.permute.xlu0 %185
    %188 = vset.pattern.permute.xlu0 1
    %189 = vperm.xlu0 %188, %v66
    %v190 = vpop.permute.xlu0 %189
    %192 = vset.pattern.permute.xlu0 1
    %193 = vperm.xlu0 %192, %v67
    %v194 = vpop.permute.xlu0 %193
    %196 = vset.pattern.permute.xlu0 1
    %197 = vperm.xlu0 %196, %v68
    %v198 = vpop.permute.xlu0 %197
    %v204 = vunpack.c.l.b16 %v180
    %v205 = vunpack.c.l.b16 %v181
    %v206 = vunpack.c.l.b16 %v182
    %v207 = vunpack.c.l.b16 %v183
    %v208 = vpack.c.b16 %v205, %v204
    %v209 = vpack.c.b16 %v207, %v206
    %v211 = vsel %vm120, %v208, 0
    %v214 = vsel %vm120, %v209, 0
    %216 = vmatprep.subr.bf16.mxu0 0
    %217 = vmatpush1.bf16.xpose.msra.mxu0 %v128
    %218 = vmatprep.subr.bf16.mxu0 0
    %219 = vmatpush1.bf16.xpose.msra.mxu0 0
    %220 = vmatprep.subr.bf16.mxu0 0
    %221 = vmatpush1.bf16.xpose.msra.mxu0 0
    %222 = vmatprep.subr.bf16.mxu0 0
    %223 = vmatpush1.bf16.xpose.msra.mxu0 0
    %224 = vmatprep.subr.bf16.mxu0 0
    %225 = vmatpush1.bf16.xpose.msra.mxu0 0
    %226 = vmatprep.subr.bf16.mxu0 0
    %227 = vmatpush1.bf16.xpose.msra.mxu0 0
    %228 = vmatprep.subr.bf16.mxu0 0
    %229 = vmatpush1.bf16.xpose.msra.mxu0 0
    %230 = vmatprep.subr.bf16.mxu0 0
    %231 = vmatpush1.bf16.xpose.msra.mxu0 0
    %232 = vmatprep.subr.bf16.mxu0 0
    %233 = vmatpush1.bf16.xpose.msra.mxu0 0
    %234 = vmatprep.subr.bf16.mxu0 0
    %235 = vmatpush1.bf16.xpose.msra.mxu0 0
    %236 = vmatprep.subr.bf16.mxu0 0
    %237 = vmatpush1.bf16.xpose.msra.mxu0 0
    %238 = vmatprep.subr.bf16.mxu0 0
    %239 = vmatpush1.bf16.xpose.msra.mxu0 0
    %240 = vmatprep.subr.bf16.mxu0 0
    %241 = vmatpush1.bf16.xpose.msra.mxu0 0
    %242 = vmatprep.subr.bf16.mxu0 0
    %243 = vmatpush1.bf16.xpose.msra.mxu0 0
    %244 = vmatprep.subr.bf16.mxu0 0
    %245 = vmatpush1.bf16.xpose.msra.mxu0 0
    %246 = vmatprep.subr.bf16.mxu0 0
    %247 = vmatpush1.bf16.xpose.msra.mxu0 0
    %248 = vmatprep.mubr.bf16.mxu0 0
    %249 = vmatmul.mubr.bf16.gmra.mrb[0].mxu0 %v211
    %v250 = vpop.f32.mrb[0].mxu0
    %v251 = vadd.f32 %v186, %v250
    %v252 = vpop.f32.mrb[0].mxu0
    %v253 = vpop.f32.mrb[0].mxu0
    %v254 = vadd.f32 %v190, %v253
    %v255 = vpop.f32.mrb[0].mxu0
    %256 = vmatprep.mubr.bf16.mxu0 0
    %257 = vmatmul.mubr.bf16.gmra.mrb[0].mxu0 %v214
    %v258 = vpop.f32.mrb[0].mxu0
    %v259 = vadd.f32 %v194, %v258
    %v260 = vpop.f32.mrb[0].mxu0
    %v261 = vpop.f32.mrb[0].mxu0
    %v262 = vadd.f32 %v198, %v261
    %v263 = vpop.f32.mrb[0].mxu0
    %264 = vdwg.mxu0
    %s265 = scalar_lea.vmem [#allocation5], 32
    %v266 = vld [vmem:[%s265] sm:$0xf]
    %v267 = vld [vmem:[%s265 + $0x4] sm:$0xf]
    %v268 = vld [vmem:[%s265 + $0x8] sm:$0xf]
    %v269 = vld [vmem:[%s265 + $0xc] sm:$0xf]
    %270 = vset.pattern.permute.xlu0 2
    %271 = vperm.xlu0 %270, %v65
    %v272 = vpop.permute.xlu0 %271
    %274 = vset.pattern.permute.xlu0 2
    %275 = vperm.xlu0 %274, %v66
    %v276 = vpop.permute.xlu0 %275
    %278 = vset.pattern.permute.xlu0 2
    %279 = vperm.xlu0 %278, %v67
    %v280 = vpop.permute.xlu0 %279
    %282 = vset.pattern.permute.xlu0 2
    %283 = vperm.xlu0 %282, %v68
    %v284 = vpop.permute.xlu0 %283
    %v290 = vunpack.c.l.b16 %v266
    %v291 = vunpack.c.l.b16 %v267
    %v292 = vunpack.c.l.b16 %v268
    %v293 = vunpack.c.l.b16 %v269
    %v294 = vpack.c.b16 %v291, %v290
    %v295 = vpack.c.b16 %v293, %v292
    %v297 = vsel %vm120, %v294, 0
    %v300 = vsel %vm120, %v295, 0
    %302 = vmatprep.subr.bf16.mxu0 0
    %303 = vmatpush1.bf16.xpose.msra.mxu0 %v128
    %304 = vmatprep.subr.bf16.mxu0 0
    %305 = vmatpush1.bf16.xpose.msra.mxu0 0
    %306 = vmatprep.subr.bf16.mxu0 0
    %307 = vmatpush1.bf16.xpose.msra.mxu0 0
    %308 = vmatprep.subr.bf16.mxu0 0
    %309 = vmatpush1.bf16.xpose.msra.mxu0 0
    %310 = vmatprep.subr.bf16.mxu0 0
    %311 = vmatpush1.bf16.xpose.msra.mxu0 0
    %312 = vmatprep.subr.bf16.mxu0 0
    %313 = vmatpush1.bf16.xpose.msra.mxu0 0
    %314 = vmatprep.subr.bf16.mxu0 0
    %315 = vmatpush1.bf16.xpose.msra.mxu0 0
    %316 = vmatprep.subr.bf16.mxu0 0
    %317 = vmatpush1.bf16.xpose.msra.mxu0 0
    %318 = vmatprep.subr.bf16.mxu0 0
    %319 = vmatpush1.bf16.xpose.msra.mxu0 0
    %320 = vmatprep.subr.bf16.mxu0 0
    %321 = vmatpush1.bf16.xpose.msra.mxu0 0
    %322 = vmatprep.subr.bf16.mxu0 0
    %323 = vmatpush1.bf16.xpose.msra.mxu0 0
    %324 = vmatprep.subr.bf16.mxu0 0
    %325 = vmatpush1.bf16.xpose.msra.mxu0 0
    %326 = vmatprep.subr.bf16.mxu0 0
    %327 = vmatpush1.bf16.xpose.msra.mxu0 0
    %328 = vmatprep.subr.bf16.mxu0 0
    %329 = vmatpush1.bf16.xpose.msra.mxu0 0
    %330 = vmatprep.subr.bf16.mxu0 0
    %331 = vmatpush1.bf16.xpose.msra.mxu0 0
    %332 = vmatprep.subr.bf16.mxu0 0
    %333 = vmatpush1.bf16.xpose.msra.mxu0 0
    %334 = vmatprep.mubr.bf16.mxu0 0
    %335 = vmatmul.mubr.bf16.gmra.mrb[0].mxu0 %v297
    %v336 = vpop.f32.mrb[0].mxu0
    %v337 = vadd.f32 %v272, %v336
    %v338 = vpop.f32.mrb[0].mxu0
    %v339 = vpop.f32.mrb[0].mxu0
    %v340 = vadd.f32 %v276, %v339
    %v341 = vpop.f32.mrb[0].mxu0
    %342 = vmatprep.mubr.bf16.mxu0 0
    %343 = vmatmul.mubr.bf16.gmra.mrb[0].mxu0 %v300
    %v344 = vpop.f32.mrb[0].mxu0
    %v345 = vadd.f32 %v280, %v344
    %v346 = vpop.f32.mrb[0].mxu0
    %v347 = vpop.f32.mrb[0].mxu0
    %v348 = vadd.f32 %v284, %v347
    %v349 = vpop.f32.mrb[0].mxu0
    %350 = vdwg.mxu0
    %351 = vxpose.xlu0.b32.start [1/16] %v165, 128
    %352 = vxpose.xlu0.b32.cont [2/16] 0.0, 128
    %353 = vxpose.xlu0.b32.cont [3/16] 0.0, 128
    %354 = vxpose.xlu0.b32.cont [4/16] 0.0, 128
    %355 = vxpose.xlu0.b32.cont [5/16] 0.0, 128
    %356 = vxpose.xlu0.b32.cont [6/16] 0.0, 128
    %357 = vxpose.xlu0.b32.cont [7/16] 0.0, 128
    %358 = vxpose.xlu0.b32.cont [8/16] 0.0, 128
    %359 = vxpose.xlu0.b32.cont [9/16] 0.0, 128
    %360 = vxpose.xlu0.b32.cont [10/16] 0.0, 128
    %361 = vxpose.xlu0.b32.cont [11/16] 0.0, 128
    %362 = vxpose.xlu0.b32.cont [12/16] 0.0, 128
    %363 = vxpose.xlu0.b32.cont [13/16] 0.0, 128
    %364 = vxpose.xlu0.b32.cont [14/16] 0.0, 128
    %365 = vxpose.xlu0.b32.cont [15/16] 0.0, 128
    %366 = vxpose.xlu0.b32.end [16/16] 0.0, 128
    %v367 = vpop.trf.xlu0
    %v368 = vpop.trf.xlu0
    %v369 = vpop.trf.xlu0
    %v370 = vpop.trf.xlu0
    %v371 = vpop.trf.xlu0
    %v372 = vpop.trf.xlu0
    %v373 = vpop.trf.xlu0
    %v374 = vpop.trf.xlu0
    %v375 = vpop.trf.xlu0
    %v376 = vpop.trf.xlu0
    %v377 = vpop.trf.xlu0
    %v378 = vpop.trf.xlu0
    %v379 = vpop.trf.xlu0
    %v380 = vpop.trf.xlu0
    %v381 = vpop.trf.xlu0
    %v382 = vpop.trf.xlu0
    %383 = vxpose.xlu0.b32.start [1/16] %v168, 128
    %384 = vxpose.xlu0.b32.cont [2/16] 0.0, 128
    %385 = vxpose.xlu0.b32.cont [3/16] 0.0, 128
    %386 = vxpose.xlu0.b32.cont [4/16] 0.0, 128
    %387 = vxpose.xlu0.b32.cont [5/16] 0.0, 128
    %388 = vxpose.xlu0.b32.cont [6/16] 0.0, 128
    %389 = vxpose.xlu0.b32.cont [7/16] 0.0, 128
    %390 = vxpose.xlu0.b32.cont [8/16] 0.0, 128
    %391 = vxpose.xlu0.b32.cont [9/16] 0.0, 128
    %392 = vxpose.xlu0.b32.cont [10/16] 0.0, 128
    %393 = vxpose.xlu0.b32.cont [11/16] 0.0, 128
    %394 = vxpose.xlu0.b32.cont [12/16] 0.0, 128
    %395 = vxpose.xlu0.b32.cont [13/16] 0.0, 128
    %396 = vxpose.xlu0.b32.cont [14/16] 0.0, 128
    %397 = vxpose.xlu0.b32.cont [15/16] 0.0, 128
    %398 = vxpose.xlu0.b32.end [16/16] 0.0, 128
    %v399 = vpop.trf.xlu0
    %v400 = vpop.trf.xlu0
    %v401 = vpop.trf.xlu0
    %v402 = vpop.trf.xlu0
    %v403 = vpop.trf.xlu0
    %v404 = vpop.trf.xlu0
    %v405 = vpop.trf.xlu0
    %v406 = vpop.trf.xlu0
    %v407 = vpop.trf.xlu0
    %v408 = vpop.trf.xlu0
    %v409 = vpop.trf.xlu0
    %v410 = vpop.trf.xlu0
    %v411 = vpop.trf.xlu0
    %v412 = vpop.trf.xlu0
    %v413 = vpop.trf.xlu0
    %v414 = vpop.trf.xlu0
    %415 = vxpose.xlu0.b32.start [1/16] %v173, 128
    %416 = vxpose.xlu0.b32.cont [2/16] 0.0, 128
    %417 = vxpose.xlu0.b32.cont [3/16] 0.0, 128
    %418 = vxpose.xlu0.b32.cont [4/16] 0.0, 128
    %419 = vxpose.xlu0.b32.cont [5/16] 0.0, 128
    %420 = vxpose.xlu0.b32.cont [6/16] 0.0, 128
    %421 = vxpose.xlu0.b32.cont [7/16] 0.0, 128
    %422 = vxpose.xlu0.b32.cont [8/16] 0.0, 128
    %423 = vxpose.xlu0.b32.cont [9/16] 0.0, 128
    %424 = vxpose.xlu0.b32.cont [10/16] 0.0, 128
    %425 = vxpose.xlu0.b32.cont [11/16] 0.0, 128
    %426 = vxpose.xlu0.b32.cont [12/16] 0.0, 128
    %427 = vxpose.xlu0.b32.cont [13/16] 0.0, 128
    %428 = vxpose.xlu0.b32.cont [14/16] 0.0, 128
    %429 = vxpose.xlu0.b32.cont [15/16] 0.0, 128
    %430 = vxpose.xlu0.b32.end [16/16] 0.0, 128
    %v431 = vpop.trf.xlu0
    %v432 = vpop.trf.xlu0
    %v433 = vpop.trf.xlu0
    %v434 = vpop.trf.xlu0
    %v435 = vpop.trf.xlu0
    %v436 = vpop.trf.xlu0
    %v437 = vpop.trf.xlu0
    %v438 = vpop.trf.xlu0
    %v439 = vpop.trf.xlu0
    %v440 = vpop.trf.xlu0
    %v441 = vpop.trf.xlu0
    %v442 = vpop.trf.xlu0
    %v443 = vpop.trf.xlu0
    %v444 = vpop.trf.xlu0
    %v445 = vpop.trf.xlu0
    %v446 = vpop.trf.xlu0
    %447 = vxpose.xlu0.b32.start [1/16] %v176, 128
    %448 = vxpose.xlu0.b32.cont [2/16] 0.0, 128
    %449 = vxpose.xlu0.b32.cont [3/16] 0.0, 128
    %450 = vxpose.xlu0.b32.cont [4/16] 0.0, 128
    %451 = vxpose.xlu0.b32.cont [5/16] 0.0, 128
    %452 = vxpose.xlu0.b32.cont [6/16] 0.0, 128
    %453 = vxpose.xlu0.b32.cont [7/16] 0.0, 128
    %454 = vxpose.xlu0.b32.cont [8/16] 0.0, 128
    %455 = vxpose.xlu0.b32.cont [9/16] 0.0, 128
    %456 = vxpose.xlu0.b32.cont [10/16] 0.0, 128
    %457 = vxpose.xlu0.b32.cont [11/16] 0.0, 128
    %458 = vxpose.xlu0.b32.cont [12/16] 0.0, 128
    %459 = vxpose.xlu0.b32.cont [13/16] 0.0, 128
    %460 = vxpose.xlu0.b32.cont [14/16] 0.0, 128
    %461 = vxpose.xlu0.b32.cont [15/16] 0.0, 128
    %462 = vxpose.xlu0.b32.end [16/16] 0.0, 128
    %v463 = vpop.trf.xlu0
    %v464 = vpop.trf.xlu0
    %v465 = vpop.trf.xlu0
    %v466 = vpop.trf.xlu0
    %v467 = vpop.trf.xlu0
    %v468 = vpop.trf.xlu0
    %v469 = vpop.trf.xlu0
    %v470 = vpop.trf.xlu0
    %v471 = vpop.trf.xlu0
    %v472 = vpop.trf.xlu0
    %v473 = vpop.trf.xlu0
    %v474 = vpop.trf.xlu0
    %v475 = vpop.trf.xlu0
    %v476 = vpop.trf.xlu0
    %v477 = vpop.trf.xlu0
    %v478 = vpop.trf.xlu0
    %v479 = vpack.c.bf16 %v367, %v367
    %v480 = vpack.c.bf16 %v399, %v399
    %v481 = vpack.c.bf16 %v431, %v431
    %v482 = vpack.c.bf16 %v463, %v463
    %v483 = vpack.c.bf16 %v251, %v251
    %v484 = vpack.c.bf16 %v254, %v254
    %v485 = vpack.c.bf16 %v259, %v259
    %v486 = vpack.c.bf16 %v262, %v262
    %vm487 = vcmask 64512
    %v489 = vsel %vm487, %v479, 0
    %vm491 = vcmask 1043456
    %v493 = vsel %vm491, %v483, 0
    %495 = vmatprep.subr.bf16.mxu0 0
    %496 = vmatpush1.bf16.msra.mxu0 %v493
    %497 = vmatprep.subr.bf16.mxu0 0
    %498 = vmatpush1.bf16.msra.mxu0 0
    %499 = vmatprep.subr.bf16.mxu0 0
    %500 = vmatpush1.bf16.msra.mxu0 0
    %501 = vmatprep.subr.bf16.mxu0 0
    %502 = vmatpush1.bf16.msra.mxu0 0
    %503 = vmatprep.subr.bf16.mxu0 0
    %504 = vmatpush1.bf16.msra.mxu0 0
    %505 = vmatprep.subr.bf16.mxu0 0
    %506 = vmatpush1.bf16.msra.mxu0 0
    %507 = vmatprep.subr.bf16.mxu0 0
    %508 = vmatpush1.bf16.msra.mxu0 0
    %509 = vmatprep.subr.bf16.mxu0 0
    %510 = vmatpush1.bf16.msra.mxu0 0
    %511 = vmatprep.subr.bf16.mxu0 0
    %512 = vmatpush1.bf16.msra.mxu0 0
    %513 = vmatprep.subr.bf16.mxu0 0
    %514 = vmatpush1.bf16.msra.mxu0 0
    %515 = vmatprep.subr.bf16.mxu0 0
    %516 = vmatpush1.bf16.msra.mxu0 0
    %517 = vmatprep.subr.bf16.mxu0 0
    %518 = vmatpush1.bf16.msra.mxu0 0
    %519 = vmatprep.subr.bf16.mxu0 0
    %520 = vmatpush1.bf16.msra.mxu0 0
    %521 = vmatprep.subr.bf16.mxu0 0
    %522 = vmatpush1.bf16.msra.mxu0 0
    %523 = vmatprep.subr.bf16.mxu0 0
    %524 = vmatpush1.bf16.msra.mxu0 0
    %525 = vmatprep.subr.bf16.mxu0 0
    %526 = vmatpush1.bf16.msra.mxu0 0
    %527 = vmatprep.mubr.bf16.mxu0 0
    %528 = vmatmul.mubr.bf16.gmra.mrb[0].mxu0 %v489
    %v529 = vpop.f32.mrb[0].mxu0
    %v530 = vadd.f32 0.0, %v529
    %v531 = vpop.f32.mrb[0].mxu0
    %v532 = vpop.f32.mrb[0].mxu0
    %v533 = vpop.f32.mrb[0].mxu0
    %534 = vdwg.mxu0
    %v536 = vsel %vm487, %v480, 0
    %v539 = vsel %vm491, %v484, 0
    %541 = vmatprep.subr.bf16.mxu0 0
    %542 = vmatpush1.bf16.msra.mxu0 %v539
    %543 = vmatprep.subr.bf16.mxu0 0
    %544 = vmatpush1.bf16.msra.mxu0 0
    %545 = vmatprep.subr.bf16.mxu0 0
    %546 = vmatpush1.bf16.msra.mxu0 0
    %547 = vmatprep.subr.bf16.mxu0 0
    %548 = vmatpush1.bf16.msra.mxu0 0
    %549 = vmatprep.subr.bf16.mxu0 0
    %550 = vmatpush1.bf16.msra.mxu0 0
    %551 = vmatprep.subr.bf16.mxu0 0
    %552 = vmatpush1.bf16.msra.mxu0 0
    %553 = vmatprep.subr.bf16.mxu0 0
    %554 = vmatpush1.bf16.msra.mxu0 0
    %555 = vmatprep.subr.bf16.mxu0 0
    %556 = vmatpush1.bf16.msra.mxu0 0
    %557 = vmatprep.subr.bf16.mxu0 0
    %558 = vmatpush1.bf16.msra.mxu0 0
    %559 = vmatprep.subr.bf16.mxu0 0
    %560 = vmatpush1.bf16.msra.mxu0 0
    %561 = vmatprep.subr.bf16.mxu0 0
    %562 = vmatpush1.bf16.msra.mxu0 0
    %563 = vmatprep.subr.bf16.mxu0 0
    %564 = vmatpush1.bf16.msra.mxu0 0
    %565 = vmatprep.subr.bf16.mxu0 0
    %566 = vmatpush1.bf16.msra.mxu0 0
    %567 = vmatprep.subr.bf16.mxu0 0
    %568 = vmatpush1.bf16.msra.mxu0 0
    %569 = vmatprep.subr.bf16.mxu0 0
    %570 = vmatpush1.bf16.msra.mxu0 0
    %571 = vmatprep.subr.bf16.mxu0 0
    %572 = vmatpush1.bf16.msra.mxu0 0
    %573 = vmatprep.mubr.bf16.mxu0 0
    %574 = vmatmul.mubr.bf16.gmra.mrb[0].mxu0 %v536
    %v575 = vpop.f32.mrb[0].mxu0
    %v576 = vadd.f32 0.0, %v575
    %v577 = vpop.f32.mrb[0].mxu0
    %v578 = vpop.f32.mrb[0].mxu0
    %v579 = vpop.f32.mrb[0].mxu0
    %580 = vdwg.mxu0
    %v582 = vsel %vm487, %v481, 0
    %v585 = vsel %vm491, %v485, 0
    %587 = vmatprep.subr.bf16.mxu0 0
    %588 = vmatpush1.bf16.msra.mxu0 %v585
    %589 = vmatprep.subr.bf16.mxu0 0
    %590 = vmatpush1.bf16.msra.mxu0 0
    %591 = vmatprep.subr.bf16.mxu0 0
    %592 = vmatpush1.bf16.msra.mxu0 0
    %593 = vmatprep.subr.bf16.mxu0 0
    %594 = vmatpush1.bf16.msra.mxu0 0
    %595 = vmatprep.subr.bf16.mxu0 0
    %596 = vmatpush1.bf16.msra.mxu0 0
    %597 = vmatprep.subr.bf16.mxu0 0
    %598 = vmatpush1.bf16.msra.mxu0 0
    %599 = vmatprep.subr.bf16.mxu0 0
    %600 = vmatpush1.bf16.msra.mxu0 0
    %601 = vmatprep.subr.bf16.mxu0 0
    %602 = vmatpush1.bf16.msra.mxu0 0
    %603 = vmatprep.subr.bf16.mxu0 0
    %604 = vmatpush1.bf16.msra.mxu0 0
    %605 = vmatprep.subr.bf16.mxu0 0
    %606 = vmatpush1.bf16.msra.mxu0 0
    %607 = vmatprep.subr.bf16.mxu0 0
    %608 = vmatpush1.bf16.msra.mxu0 0
    %609 = vmatprep.subr.bf16.mxu0 0
    %610 = vmatpush1.bf16.msra.mxu0 0
    %611 = vmatprep.subr.bf16.mxu0 0
    %612 = vmatpush1.bf16.msra.mxu0 0
    %613 = vmatprep.subr.bf16.mxu0 0
    %614 = vmatpush1.bf16.msra.mxu0 0
    %615 = vmatprep.subr.bf16.mxu0 0
    %616 = vmatpush1.bf16.msra.mxu0 0
    %617 = vmatprep.subr.bf16.mxu0 0
    %618 = vmatpush1.bf16.msra.mxu0 0
    %619 = vmatprep.mubr.bf16.mxu0 0
    %620 = vmatmul.mubr.bf16.gmra.mrb[0].mxu0 %v582
    %v621 = vpop.f32.mrb[0].mxu0
    %v622 = vadd.f32 0.0, %v621
    %v623 = vpop.f32.mrb[0].mxu0
    %v624 = vpop.f32.mrb[0].mxu0
    %v625 = vpop.f32.mrb[0].mxu0
    %626 = vdwg.mxu0
    %v628 = vsel %vm487, %v482, 0
    %v631 = vsel %vm491, %v486, 0
    %633 = vmatprep.subr.bf16.mxu0 0
    %634 = vmatpush1.bf16.msra.mxu0 %v631
    %635 = vmatprep.subr.bf16.mxu0 0
    %636 = vmatpush1.bf16.msra.mxu0 0
    %637 = vmatprep.subr.bf16.mxu0 0
    %638 = vmatpush1.bf16.msra.mxu0 0
    %639 = vmatprep.subr.bf16.mxu0 0
    %640 = vmatpush1.bf16.msra.mxu0 0
    %641 = vmatprep.subr.bf16.mxu0 0
    %642 = vmatpush1.bf16.msra.mxu0 0
    %643 = vmatprep.subr.bf16.mxu0 0
    %644 = vmatpush1.bf16.msra.mxu0 0
    %645 = vmatprep.subr.bf16.mxu0 0
    %646 = vmatpush1.bf16.msra.mxu0 0
    %647 = vmatprep.subr.bf16.mxu0 0
    %648 = vmatpush1.bf16.msra.mxu0 0
    %649 = vmatprep.subr.bf16.mxu0 0
    %650 = vmatpush1.bf16.msra.mxu0 0
    %651 = vmatprep.subr.bf16.mxu0 0
    %652 = vmatpush1.bf16.msra.mxu0 0
    %653 = vmatprep.subr.bf16.mxu0 0
    %654 = vmatpush1.bf16.msra.mxu0 0
    %655 = vmatprep.subr.bf16.mxu0 0
    %656 = vmatpush1.bf16.msra.mxu0 0
    %657 = vmatprep.subr.bf16.mxu0 0
    %658 = vmatpush1.bf16.msra.mxu0 0
    %659 = vmatprep.subr.bf16.mxu0 0
    %660 = vmatpush1.bf16.msra.mxu0 0
    %661 = vmatprep.subr.bf16.mxu0 0
    %662 = vmatpush1.bf16.msra.mxu0 0
    %663 = vmatprep.subr.bf16.mxu0 0
    %664 = vmatpush1.bf16.msra.mxu0 0
    %665 = vmatprep.mubr.bf16.mxu0 0
    %666 = vmatmul.mubr.bf16.gmra.mrb[0].mxu0 %v628
    %v667 = vpop.f32.mrb[0].mxu0
    %v668 = vadd.f32 0.0, %v667
    %v669 = vpop.f32.mrb[0].mxu0
    %v670 = vpop.f32.mrb[0].mxu0
    %v671 = vpop.f32.mrb[0].mxu0
    %672 = vdwg.mxu0
    %v673 = vmul.f32 %v530, 0.35355338
    %v674 = vmul.f32 %v576, 0.35355338
    %v675 = vmul.f32 %v622, 0.35355338
    %v676 = vmul.f32 %v668, 0.35355338
    %v677 = vsel %vm487, %v673, -inf
    %678 = vmax.xlane.f32.xlu0 %v677
    %v679 = vpop.xlane.xlu0 %678
    %v680 = vsel %vm487, %v674, -inf
    %681 = vmax.xlane.f32.xlu0 %v680
    %v682 = vpop.xlane.xlu0 %681
    %v683 = vsel %vm487, %v675, -inf
    %684 = vmax.xlane.f32.xlu0 %v683
    %v685 = vpop.xlane.xlu0 %684
    %v686 = vsel %vm487, %v676, -inf
    %687 = vmax.xlane.f32.xlu0 %v686
    %v688 = vpop.xlane.xlu0 %687
    %v689 = vsub.f32 %v673, %v679
    %v690 = vsub.f32 %v674, %v682
    %v691 = vsub.f32 %v675, %v685
    %v692 = vsub.f32 %v676, %v688
    %v693 = vmul.f32 %v689, 1.442695
    %v694 = vpow.pop %v693
    %v695 = vmul.f32 %v690, 1.442695
    %v696 = vpow.pop %v695
    %v697 = vmul.f32 %v691, 1.442695
    %v698 = vpow.pop %v697
    %v699 = vmul.f32 %v692, 1.442695
    %v700 = vpow.pop %v699
    %v701 = vsel %vm487, %v694, 0.0
    %702 = vadd.xlane.f32.xlu0 %v701
    %v703 = vpop.xlane.xlu0 %702
    %v704 = vsel %vm487, %v696, 0.0
    %705 = vadd.xlane.f32.xlu0 %v704
    %v706 = vpop.xlane.xlu0 %705
    %v707 = vsel %vm487, %v698, 0.0
    %708 = vadd.xlane.f32.xlu0 %v707
    %v709 = vpop.xlane.xlu0 %708
    %v710 = vsel %vm487, %v700, 0.0
    %711 = vadd.xlane.f32.xlu0 %v710
    %v712 = vpop.xlane.xlu0 %711
    %v713 = vrcp.pop %v703
    %v714 = vrcp.pop %v706
    %v715 = vrcp.pop %v709
    %v716 = vrcp.pop %v712
    %v717 = vmul.f32 %v694, %v713
    %v718 = vmul.f32 %v696, %v714
    %v719 = vmul.f32 %v698, %v715
    %v720 = vmul.f32 %v700, %v716
    %v721 = vpack.c.bf16 %v717, %v717
    %v722 = vpack.c.bf16 %v718, %v718
    %v723 = vpack.c.bf16 %v719, %v719
    %v724 = vpack.c.bf16 %v720, %v720
    %v725 = vpack.c.bf16 %v337, %v337
    %v726 = vpack.c.bf16 %v340, %v340
    %v727 = vpack.c.bf16 %v345, %v345
    %v728 = vpack.c.bf16 %v348, %v348
    %v730 = vsel %vm487, %v721, 0
    %v733 = vsel %vm487, %v725, 0
    %735 = vmatprep.subr.bf16.mxu0 0
    %736 = vmatpush1.bf16.xpose.msra.mxu0 %v733
    %737 = vmatprep.subr.bf16.mxu0 0
    %738 = vmatpush1.bf16.xpose.msra.mxu0 0
    %739 = vmatprep.subr.bf16.mxu0 0
    %740 = vmatpush1.bf16.xpose.msra.mxu0 0
    %741 = vmatprep.subr.bf16.mxu0 0
    %742 = vmatpush1.bf16.xpose.msra.mxu0 0
    %743 = vmatprep.subr.bf16.mxu0 0
    %744 = vmatpush1.bf16.xpose.msra.mxu0 0
    %745 = vmatprep.subr.bf16.mxu0 0
    %746 = vmatpush1.bf16.xpose.msra.mxu0 0
    %747 = vmatprep.subr.bf16.mxu0 0
    %748 = vmatpush1.bf16.xpose.msra.mxu0 0
    %749 = vmatprep.subr.bf16.mxu0 0
    %750 = vmatpush1.bf16.xpose.msra.mxu0 0
    %751 = vmatprep.subr.bf16.mxu0 0
    %752 = vmatpush1.bf16.xpose.msra.mxu0 0
    %753 = vmatprep.subr.bf16.mxu0 0
    %754 = vmatpush1.bf16.xpose.msra.mxu0 0
    %755 = vmatprep.subr.bf16.mxu0 0
    %756 = vmatpush1.bf16.xpose.msra.mxu0 0
    %757 = vmatprep.subr.bf16.mxu0 0
    %758 = vmatpush1.bf16.xpose.msra.mxu0 0
    %759 = vmatprep.subr.bf16.mxu0 0
    %760 = vmatpush1.bf16.xpose.msra.mxu0 0
    %761 = vmatprep.subr.bf16.mxu0 0
    %762 = vmatpush1.bf16.xpose.msra.mxu0 0
    %763 = vmatprep.subr.bf16.mxu0 0
    %764 = vmatpush1.bf16.xpose.msra.mxu0 0
    %765 = vmatprep.subr.bf16.mxu0 0
    %766 = vmatpush1.bf16.xpose.msra.mxu0 0
    %767 = vmatprep.mubr.bf16.mxu0 0
    %768 = vmatmul.mubr.bf16.gmra.mrb[0].mxu0 %v730
    %v769 = vpop.f32.mrb[0].mxu0
    %v770 = vadd.f32 0.0, %v769
    %v771 = vpop.f32.mrb[0].mxu0
    %v772 = vpop.f32.mrb[0].mxu0
    %v773 = vpop.f32.mrb[0].mxu0
    %774 = vdwg.mxu0
    %v776 = vsel %vm487, %v722, 0
    %v779 = vsel %vm487, %v726, 0
    %781 = vmatprep.subr.bf16.mxu0 0
    %782 = vmatpush1.bf16.xpose.msra.mxu0 %v779
    %783 = vmatprep.subr.bf16.mxu0 0
    %784 = vmatpush1.bf16.xpose.msra.mxu0 0
    %785 = vmatprep.subr.bf16.mxu0 0
    %786 = vmatpush1.bf16.xpose.msra.mxu0 0
    %787 = vmatprep.subr.bf16.mxu0 0
    %788 = vmatpush1.bf16.xpose.msra.mxu0 0
    %789 = vmatprep.subr.bf16.mxu0 0
    %790 = vmatpush1.bf16.xpose.msra.mxu0 0
    %791 = vmatprep.subr.bf16.mxu0 0
    %792 = vmatpush1.bf16.xpose.msra.mxu0 0
    %793 = vmatprep.subr.bf16.mxu0 0
    %794 = vmatpush1.bf16.xpose.msra.mxu0 0
    %795 = vmatprep.subr.bf16.mxu0 0
    %796 = vmatpush1.bf16.xpose.msra.mxu0 0
    %797 = vmatprep.subr.bf16.mxu0 0
    %798 = vmatpush1.bf16.xpose.msra.mxu0 0
    %799 = vmatprep.subr.bf16.mxu0 0
    %800 = vmatpush1.bf16.xpose.msra.mxu0 0
    %801 = vmatprep.subr.bf16.mxu0 0
    %802 = vmatpush1.bf16.xpose.msra.mxu0 0
    %803 = vmatprep.subr.bf16.mxu0 0
    %804 = vmatpush1.bf16.xpose.msra.mxu0 0
    %805 = vmatprep.subr.bf16.mxu0 0
    %806 = vmatpush1.bf16.xpose.msra.mxu0 0
    %807 = vmatprep.subr.bf16.mxu0 0
    %808 = vmatpush1.bf16.xpose.msra.mxu0 0
    %809 = vmatprep.subr.bf16.mxu0 0
    %810 = vmatpush1.bf16.xpose.msra.mxu0 0
    %811 = vmatprep.subr.bf16.mxu0 0
    %812 = vmatpush1.bf16.xpose.msra.mxu0 0
    %813 = vmatprep.mubr.bf16.mxu0 0
    %814 = vmatmul.mubr.bf16.gmra.mrb[0].mxu0 %v776
    %v815 = vpop.f32.mrb[0].mxu0
    %v816 = vadd.f32 0.0, %v815
    %v817 = vpop.f32.mrb[0].mxu0
    %v818 = vpop.f32.mrb[0].mxu0
    %v819 = vpop.f32.mrb[0].mxu0
    %820 = vdwg.mxu0
    %v822 = vsel %vm487, %v723, 0
    %v825 = vsel %vm487, %v727, 0
    %827 = vmatprep.subr.bf16.mxu0 0
    %828 = vmatpush1.bf16.xpose.msra.mxu0 %v825
    %829 = vmatprep.subr.bf16.mxu0 0
    %830 = vmatpush1.bf16.xpose.msra.mxu0 0
    %831 = vmatprep.subr.bf16.mxu0 0
    %832 = vmatpush1.bf16.xpose.msra.mxu0 0
    %833 = vmatprep.subr.bf16.mxu0 0
    %834 = vmatpush1.bf16.xpose.msra.mxu0 0
    %835 = vmatprep.subr.bf16.mxu0 0
    %836 = vmatpush1.bf16.xpose.msra.mxu0 0
    %837 = vmatprep.subr.bf16.mxu0 0
    %838 = vmatpush1.bf16.xpose.msra.mxu0 0
    %839 = vmatprep.subr.bf16.mxu0 0
    %840 = vmatpush1.bf16.xpose.msra.mxu0 0
    %841 = vmatprep.subr.bf16.mxu0 0
    %842 = vmatpush1.bf16.xpose.msra.mxu0 0
    %843 = vmatprep.subr.bf16.mxu0 0
    %844 = vmatpush1.bf16.xpose.msra.mxu0 0
    %845 = vmatprep.subr.bf16.mxu0 0
    %846 = vmatpush1.bf16.xpose.msra.mxu0 0
    %847 = vmatprep.subr.bf16.mxu0 0
    %848 = vmatpush1.bf16.xpose.msra.mxu0 0
    %849 = vmatprep.subr.bf16.mxu0 0
    %850 = vmatpush1.bf16.xpose.msra.mxu0 0
    %851 = vmatprep.subr.bf16.mxu0 0
    %852 = vmatpush1.bf16.xpose.msra.mxu0 0
    %853 = vmatprep.subr.bf16.mxu0 0
    %854 = vmatpush1.bf16.xpose.msra.mxu0 0
    %855 = vmatprep.subr.bf16.mxu0 0
    %856 = vmatpush1.bf16.xpose.msra.mxu0 0
    %857 = vmatprep.subr.bf16.mxu0 0
    %858 = vmatpush1.bf16.xpose.msra.mxu0 0
    %859 = vmatprep.mubr.bf16.mxu0 0
    %860 = vmatmul.mubr.bf16.gmra.mrb[0].mxu0 %v822
    %v861 = vpop.f32.mrb[0].mxu0
    %v862 = vadd.f32 0.0, %v861
    %v863 = vpop.f32.mrb[0].mxu0
    %v864 = vpop.f32.mrb[0].mxu0
    %v865 = vpop.f32.mrb[0].mxu0
    %866 = vdwg.mxu0
    %v868 = vsel %vm487, %v724, 0
    %v871 = vsel %vm487, %v728, 0
    %873 = vmatprep.subr.bf16.mxu0 0
    %874 = vmatpush1.bf16.xpose.msra.mxu0 %v871
    %875 = vmatprep.subr.bf16.mxu0 0
    %876 = vmatpush1.bf16.xpose.msra.mxu0 0
    %877 = vmatprep.subr.bf16.mxu0 0
    %878 = vmatpush1.bf16.xpose.msra.mxu0 0
    %879 = vmatprep.subr.bf16.mxu0 0
    %880 = vmatpush1.bf16.xpose.msra.mxu0 0
    %881 = vmatprep.subr.bf16.mxu0 0
    %882 = vmatpush1.bf16.xpose.msra.mxu0 0
    %883 = vmatprep.subr.bf16.mxu0 0
    %884 = vmatpush1.bf16.xpose.msra.mxu0 0
    %885 = vmatprep.subr.bf16.mxu0 0
    %886 = vmatpush1.bf16.xpose.msra.mxu0 0
    %887 = vmatprep.subr.bf16.mxu0 0
    %888 = vmatpush1.bf16.xpose.msra.mxu0 0
    %889 = vmatprep.subr.bf16.mxu0 0
    %890 = vmatpush1.bf16.xpose.msra.mxu0 0
    %891 = vmatprep.subr.bf16.mxu0 0
    %892 = vmatpush1.bf16.xpose.msra.mxu0 0
    %893 = vmatprep.subr.bf16.mxu0 0
    %894 = vmatpush1.bf16.xpose.msra.mxu0 0
    %895 = vmatprep.subr.bf16.mxu0 0
    %896 = vmatpush1.bf16.xpose.msra.mxu0 0
    %897 = vmatprep.subr.bf16.mxu0 0
    %898 = vmatpush1.bf16.xpose.msra.mxu0 0
    %899 = vmatprep.subr.bf16.mxu0 0
    %900 = vmatpush1.bf16.xpose.msra.mxu0 0
    %901 = vmatprep.subr.bf16.mxu0 0
    %902 = vmatpush1.bf16.xpose.msra.mxu0 0
    %903 = vmatprep.subr.bf16.mxu0 0
    %904 = vmatpush1.bf16.xpose.msra.mxu0 0
    %905 = vmatprep.mubr.bf16.mxu0 0
    %906 = vmatmul.mubr.bf16.gmra.mrb[0].mxu0 %v868
    %v907 = vpop.f32.mrb[0].mxu0
    %v908 = vadd.f32 0.0, %v907
    %v909 = vpop.f32.mrb[0].mxu0
    %v910 = vpop.f32.mrb[0].mxu0
    %v911 = vpop.f32.mrb[0].mxu0
    %912 = vdwg.mxu0
    %v913 = vpack.c.bf16 %v770, %v770
    %v914 = vpack.c.bf16 %v816, %v816
    %v915 = vpack.c.bf16 %v862, %v862
    %v916 = vpack.c.bf16 %v908, %v908
    %v918 = vsel %vm487, %v913, 0
    %v921 = vsel %vm491, %v77, 0
    %923 = vmatprep.subr.bf16.mxu0 0
    %924 = vmatpush1.bf16.msra.mxu0 %v921
    %925 = vmatprep.subr.bf16.mxu0 0
    %926 = vmatpush1.bf16.msra.mxu0 0
    %927 = vmatprep.subr.bf16.mxu0 0
    %928 = vmatpush1.bf16.msra.mxu0 0
    %929 = vmatprep.subr.bf16.mxu0 0
    %930 = vmatpush1.bf16.msra.mxu0 0
    %931 = vmatprep.subr.bf16.mxu0 0
    %932 = vmatpush1.bf16.msra.mxu0 0
    %933 = vmatprep.subr.bf16.mxu0 0
    %934 = vmatpush1.bf16.msra.mxu0 0
    %935 = vmatprep.subr.bf16.mxu0 0
    %936 = vmatpush1.bf16.msra.mxu0 0
    %937 = vmatprep.subr.bf16.mxu0 0
    %938 = vmatpush1.bf16.msra.mxu0 0
    %939 = vmatprep.subr.bf16.mxu0 0
    %940 = vmatpush1.bf16.msra.mxu0 0
    %941 = vmatprep.subr.bf16.mxu0 0
    %942 = vmatpush1.bf16.msra.mxu0 0
    %943 = vmatprep.subr.bf16.mxu0 0
    %944 = vmatpush1.bf16.msra.mxu0 0
    %945 = vmatprep.subr.bf16.mxu0 0
    %946 = vmatpush1.bf16.msra.mxu0 0
    %947 = vmatprep.subr.bf16.mxu0 0
    %948 = vmatpush1.bf16.msra.mxu0 0
    %949 = vmatprep.subr.bf16.mxu0 0
    %950 = vmatpush1.bf16.msra.mxu0 0
    %951 = vmatprep.subr.bf16.mxu0 0
    %952 = vmatpush1.bf16.msra.mxu0 0
    %953 = vmatprep.subr.bf16.mxu0 0
    %954 = vmatpush1.bf16.msra.mxu0 0
    %955 = vmatprep.mubr.bf16.mxu0 0
    %956 = vmatmul.mubr.bf16.gmra.mrb[0].mxu0 %v918
    %v957 = vpop.f32.mrb[0].mxu0
    %v958 = vadd.f32 0.0, %v957
    %v959 = vpop.f32.mrb[0].mxu0
    %v960 = vpop.f32.mrb[0].mxu0
    %v961 = vpop.f32.mrb[0].mxu0
    %962 = vdwg.mxu0
    %v964 = vsel %vm487, %v914, 0
    %v967 = vsel %vm491, %v78, 0
    %969 = vmatprep.subr.bf16.mxu0 0
    %970 = vmatpush1.bf16.msra.mxu0 %v967
    %971 = vmatprep.subr.bf16.mxu0 0
    %972 = vmatpush1.bf16.msra.mxu0 0
    %973 = vmatprep.subr.bf16.mxu0 0
    %974 = vmatpush1.bf16.msra.mxu0 0
    %975 = vmatprep.subr.bf16.mxu0 0
    %976 = vmatpush1.bf16.msra.mxu0 0
    %977 = vmatprep.subr.bf16.mxu0 0
    %978 = vmatpush1.bf16.msra.mxu0 0
    %979 = vmatprep.subr.bf16.mxu0 0
    %980 = vmatpush1.bf16.msra.mxu0 0
    %981 = vmatprep.subr.bf16.mxu0 0
    %982 = vmatpush1.bf16.msra.mxu0 0
    %983 = vmatprep.subr.bf16.mxu0 0
    %984 = vmatpush1.bf16.msra.mxu0 0
    %985 = vmatprep.subr.bf16.mxu0 0
    %986 = vmatpush1.bf16.msra.mxu0 0
    %987 = vmatprep.subr.bf16.mxu0 0
    %988 = vmatpush1.bf16.msra.mxu0 0
    %989 = vmatprep.subr.bf16.mxu0 0
    %990 = vmatpush1.bf16.msra.mxu0 0
    %991 = vmatprep.subr.bf16.mxu0 0
    %992 = vmatpush1.bf16.msra.mxu0 0
    %993 = vmatprep.subr.bf16.mxu0 0
    %994 = vmatpush1.bf16.msra.mxu0 0
    %995 = vmatprep.subr.bf16.mxu0 0
    %996 = vmatpush1.bf16.msra.mxu0 0
    %997 = vmatprep.subr.bf16.mxu0 0
    %998 = vmatpush1.bf16.msra.mxu0 0
    %999 = vmatprep.subr.bf16.mxu0 0
    %1000 = vmatpush1.bf16.msra.mxu0 0
    %1001 = vmatprep.mubr.bf16.mxu0 0
    %1002 = vmatmul.mubr.bf16.gmra.mrb[0].mxu0 %v964
    %v1003 = vpop.f32.mrb[0].mxu0
    %v1004 = vadd.f32 0.0, %v1003
    %v1005 = vpop.f32.mrb[0].mxu0
    %v1006 = vpop.f32.mrb[0].mxu0
    %v1007 = vpop.f32.mrb[0].mxu0
    %1008 = vdwg.mxu0
    %v1010 = vsel %vm487, %v915, 0
    %v1013 = vsel %vm491, %v79, 0
    %1015 = vmatprep.subr.bf16.mxu0 0
    %1016 = vmatpush1.bf16.msra.mxu0 %v1013
    %1017 = vmatprep.subr.bf16.mxu0 0
    %1018 = vmatpush1.bf16.msra.mxu0 0
    %1019 = vmatprep.subr.bf16.mxu0 0
    %1020 = vmatpush1.bf16.msra.mxu0 0
    %1021 = vmatprep.subr.bf16.mxu0 0
    %1022 = vmatpush1.bf16.msra.mxu0 0
    %1023 = vmatprep.subr.bf16.mxu0 0
    %1024 = vmatpush1.bf16.msra.mxu0 0
    %1025 = vmatprep.subr.bf16.mxu0 0
    %1026 = vmatpush1.bf16.msra.mxu0 0
    %1027 = vmatprep.subr.bf16.mxu0 0
    %1028 = vmatpush1.bf16.msra.mxu0 0
    %1029 = vmatprep.subr.bf16.mxu0 0
    %1030 = vmatpush1.bf16.msra.mxu0 0
    %1031 = vmatprep.subr.bf16.mxu0 0
    %1032 = vmatpush1.bf16.msra.mxu0 0
    %1033 = vmatprep.subr.bf16.mxu0 0
    %1034 = vmatpush1.bf16.msra.mxu0 0
    %1035 = vmatprep.subr.bf16.mxu0 0
    %1036 = vmatpush1.bf16.msra.mxu0 0
    %1037 = vmatprep.subr.bf16.mxu0 0
    %1038 = vmatpush1.bf16.msra.mxu0 0
    %1039 = vmatprep.subr.bf16.mxu0 0
    %1040 = vmatpush1.bf16.msra.mxu0 0
    %1041 = vmatprep.subr.bf16.mxu0 0
    %1042 = vmatpush1.bf16.msra.mxu0 0
    %1043 = vmatprep.subr.bf16.mxu0 0
    %1044 = vmatpush1.bf16.msra.mxu0 0
    %1045 = vmatprep.subr.bf16.mxu0 0
    %1046 = vmatpush1.bf16.msra.mxu0 0
    %1047 = vmatprep.mubr.bf16.mxu0 0
    %1048 = vmatmul.mubr.bf16.gmra.mrb[0].mxu0 %v1010
    %v1049 = vpop.f32.mrb[0].mxu0
    %v1050 = vadd.f32 0.0, %v1049
    %v1051 = vpop.f32.mrb[0].mxu0
    %v1052 = vpop.f32.mrb[0].mxu0
    %v1053 = vpop.f32.mrb[0].mxu0
    %1054 = vdwg.mxu0
    %v1056 = vsel %vm487, %v916, 0
    %v1059 = vsel %vm491, %v80, 0
    %1061 = vmatprep.subr.bf16.mxu0 0
    %1062 = vmatpush1.bf16.msra.mxu0 %v1059
    %1063 = vmatprep.subr.bf16.mxu0 0
    %1064 = vmatpush1.bf16.msra.mxu0 0
    %1065 = vmatprep.subr.bf16.mxu0 0
    %1066 = vmatpush1.bf16.msra.mxu0 0
    %1067 = vmatprep.subr.bf16.mxu0 0
    %1068 = vmatpush1.bf16.msra.mxu0 0
    %1069 = vmatprep.subr.bf16.mxu0 0
    %1070 = vmatpush1.bf16.msra.mxu0 0
    %1071 = vmatprep.subr.bf16.mxu0 0
    %1072 = vmatpush1.bf16.msra.mxu0 0
    %1073 = vmatprep.subr.bf16.mxu0 0
    %1074 = vmatpush1.bf16.msra.mxu0 0
    %1075 = vmatprep.subr.bf16.mxu0 0
    %1076 = vmatpush1.bf16.msra.mxu0 0
    %1077 = vmatprep.subr.bf16.mxu0 0
    %1078 = vmatpush1.bf16.msra.mxu0 0
    %1079 = vmatprep.subr.bf16.mxu0 0
    %1080 = vmatpush1.bf16.msra.mxu0 0
    %1081 = vmatprep.subr.bf16.mxu0 0
    %1082 = vmatpush1.bf16.msra.mxu0 0
    %1083 = vmatprep.subr.bf16.mxu0 0
    %1084 = vmatpush1.bf16.msra.mxu0 0
    %1085 = vmatprep.subr.bf16.mxu0 0
    %1086 = vmatpush1.bf16.msra.mxu0 0
    %1087 = vmatprep.subr.bf16.mxu0 0
    %1088 = vmatpush1.bf16.msra.mxu0 0
    %1089 = vmatprep.subr.bf16.mxu0 0
    %1090 = vmatpush1.bf16.msra.mxu0 0
    %1091 = vmatprep.subr.bf16.mxu0 0
    %1092 = vmatpush1.bf16.msra.mxu0 0
    %1093 = vmatprep.mubr.bf16.mxu0 0
    %1094 = vmatmul.mubr.bf16.gmra.mrb[0].mxu0 %v1056
    %v1095 = vpop.f32.mrb[0].mxu0
    %v1096 = vadd.f32 0.0, %v1095
    %v1097 = vpop.f32.mrb[0].mxu0
    %v1098 = vpop.f32.mrb[0].mxu0
    %v1099 = vpop.f32.mrb[0].mxu0
    %1100 = vdwg.mxu0
    %v1101 = vsel %vm120, %v958, 0.0
    %v1102 = vsel %vm120, %v1004, 0.0
    %v1103 = vadd.f32 %v1101, %v1102
    %v1104 = vsel %vm120, %v1050, 0.0
    %v1105 = vadd.f32 %v1103, %v1104
    %v1106 = vsel %vm120, %v1096, 0.0
    %v1107 = vadd.f32 %v1105, %v1106
    %1112 = vrot.lane.b32.xlu0 %v165, 120
    %v1113 = vpop.permute.xlu0 %1112
    %1114 = vrot.lane.b32.xlu0 %v168, 120
    %v1115 = vpop.permute.xlu0 %1114
    %1116 = vrot.lane.b32.xlu0 %v173, 120
    %v1117 = vpop.permute.xlu0 %1116
    %1118 = vrot.lane.b32.xlu0 %v176, 120
    %v1119 = vpop.permute.xlu0 %1118
    %1124 = vxpose.xlu0.b32.start [1/16] %v1113, 128
    %1125 = vxpose.xlu0.b32.cont [2/16] 0.0, 128
    %1126 = vxpose.xlu0.b32.cont [3/16] 0.0, 128
    %1127 = vxpose.xlu0.b32.cont [4/16] 0.0, 128
    %1128 = vxpose.xlu0.b32.cont [5/16] 0.0, 128
    %1129 = vxpose.xlu0.b32.cont [6/16] 0.0, 128
    %1130 = vxpose.xlu0.b32.cont [7/16] 0.0, 128
    %1131 = vxpose.xlu0.b32.cont [8/16] 0.0, 128
    %1132 = vxpose.xlu0.b32.cont [9/16] 0.0, 128
    %1133 = vxpose.xlu0.b32.cont [10/16] 0.0, 128
    %1134 = vxpose.xlu0.b32.cont [11/16] 0.0, 128
    %1135 = vxpose.xlu0.b32.cont [12/16] 0.0, 128
    %1136 = vxpose.xlu0.b32.cont [13/16] 0.0, 128
    %1137 = vxpose.xlu0.b32.cont [14/16] 0.0, 128
    %1138 = vxpose.xlu0.b32.cont [15/16] 0.0, 128
    %1139 = vxpose.xlu0.b32.end [16/16] 0.0, 128
    %v1140 = vpop.trf.xlu0
    %v1141 = vpop.trf.xlu0
    %v1142 = vpop.trf.xlu0
    %v1143 = vpop.trf.xlu0
    %v1144 = vpop.trf.xlu0
    %v1145 = vpop.trf.xlu0
    %v1146 = vpop.trf.xlu0
    %v1147 = vpop.trf.xlu0
    %v1148 = vpop.trf.xlu0
    %v1149 = vpop.trf.xlu0
    %v1150 = vpop.trf.xlu0
    %v1151 = vpop.trf.xlu0
    %v1152 = vpop.trf.xlu0
    %v1153 = vpop.trf.xlu0
    %v1154 = vpop.trf.xlu0
    %v1155 = vpop.trf.xlu0
    %1156 = vxpose.xlu0.b32.start [1/16] %v1115, 128
    %1157 = vxpose.xlu0.b32.cont [2/16] 0.0, 128
    %1158 = vxpose.xlu0.b32.cont [3/16] 0.0, 128
    %1159 = vxpose.xlu0.b32.cont [4/16] 0.0, 128
    %1160 = vxpose.xlu0.b32.cont [5/16] 0.0, 128
    %1161 = vxpose.xlu0.b32.cont [6/16] 0.0, 128
    %1162 = vxpose.xlu0.b32.cont [7/16] 0.0, 128
    %1163 = vxpose.xlu0.b32.cont [8/16] 0.0, 128
    %1164 = vxpose.xlu0.b32.cont [9/16] 0.0, 128
    %1165 = vxpose.xlu0.b32.cont [10/16] 0.0, 128
    %1166 = vxpose.xlu0.b32.cont [11/16] 0.0, 128
    %1167 = vxpose.xlu0.b32.cont [12/16] 0.0, 128
    %1168 = vxpose.xlu0.b32.cont [13/16] 0.0, 128
    %1169 = vxpose.xlu0.b32.cont [14/16] 0.0, 128
    %1170 = vxpose.xlu0.b32.cont [15/16] 0.0, 128
    %1171 = vxpose.xlu0.b32.end [16/16] 0.0, 128
    %v1172 = vpop.trf.xlu0
    %v1173 = vpop.trf.xlu0
    %v1174 = vpop.trf.xlu0
    %v1175 = vpop.trf.xlu0
    %v1176 = vpop.trf.xlu0
    %v1177 = vpop.trf.xlu0
    %v1178 = vpop.trf.xlu0
    %v1179 = vpop.trf.xlu0
    %v1180 = vpop.trf.xlu0
    %v1181 = vpop.trf.xlu0
    %v1182 = vpop.trf.xlu0
    %v1183 = vpop.trf.xlu0
    %v1184 = vpop.trf.xlu0
    %v1185 = vpop.trf.xlu0
    %v1186 = vpop.trf.xlu0
    %v1187 = vpop.trf.xlu0
    %1188 = vxpose.xlu0.b32.start [1/16] %v1117, 128
    %1189 = vxpose.xlu0.b32.cont [2/16] 0.0, 128
    %1190 = vxpose.xlu0.b32.cont [3/16] 0.0, 128
    %1191 = vxpose.xlu0.b32.cont [4/16] 0.0, 128
    %1192 = vxpose.xlu0.b32.cont [5/16] 0.0, 128
    %1193 = vxpose.xlu0.b32.cont [6/16] 0.0, 128
    %1194 = vxpose.xlu0.b32.cont [7/16] 0.0, 128
    %1195 = vxpose.xlu0.b32.cont [8/16] 0.0, 128
    %1196 = vxpose.xlu0.b32.cont [9/16] 0.0, 128
    %1197 = vxpose.xlu0.b32.cont [10/16] 0.0, 128
    %1198 = vxpose.xlu0.b32.cont [11/16] 0.0, 128
    %1199 = vxpose.xlu0.b32.cont [12/16] 0.0, 128
    %1200 = vxpose.xlu0.b32.cont [13/16] 0.0, 128
    %1201 = vxpose.xlu0.b32.cont [14/16] 0.0, 128
    %1202 = vxpose.xlu0.b32.cont [15/16] 0.0, 128
    %1203 = vxpose.xlu0.b32.end [16/16] 0.0, 128
    %v1204 = vpop.trf.xlu0
    %v1205 = vpop.trf.xlu0
    %v1206 = vpop.trf.xlu0
    %v1207 = vpop.trf.xlu0
    %v1208 = vpop.trf.xlu0
    %v1209 = vpop.trf.xlu0
    %v1210 = vpop.trf.xlu0
    %v1211 = vpop.trf.xlu0
    %v1212 = vpop.trf.xlu0
    %v1213 = vpop.trf.xlu0
    %v1214 = vpop.trf.xlu0
    %v1215 = vpop.trf.xlu0
    %v1216 = vpop.trf.xlu0
    %v1217 = vpop.trf.xlu0
    %v1218 = vpop.trf.xlu0
    %v1219 = vpop.trf.xlu0
    %1220 = vxpose.xlu0.b32.start [1/16] %v1119, 128
    %1221 = vxpose.xlu0.b32.cont [2/16] 0.0, 128
    %1222 = vxpose.xlu0.b32.cont [3/16] 0.0, 128
    %1223 = vxpose.xlu0.b32.cont [4/16] 0.0, 128
    %1224 = vxpose.xlu0.b32.cont [5/16] 0.0, 128
    %1225 = vxpose.xlu0.b32.cont [6/16] 0.0, 128
    %1226 = vxpose.xlu0.b32.cont [7/16] 0.0, 128
    %1227 = vxpose.xlu0.b32.cont [8/16] 0.0, 128
    %1228 = vxpose.xlu0.b32.cont [9/16] 0.0, 128
    %1229 = vxpose.xlu0.b32.cont [10/16] 0.0, 128
    %1230 = vxpose.xlu0.b32.cont [11/16] 0.0, 128
    %1231 = vxpose.xlu0.b32.cont [12/16] 0.0, 128
    %1232 = vxpose.xlu0.b32.cont [13/16] 0.0, 128
    %1233 = vxpose.xlu0.b32.cont [14/16] 0.0, 128
    %1234 = vxpose.xlu0.b32.cont [15/16] 0.0, 128
    %1235 = vxpose.xlu0.b32.end [16/16] 0.0, 128
    %v1236 = vpop.trf.xlu0
    %v1237 = vpop.trf.xlu0
    %v1238 = vpop.trf.xlu0
    %v1239 = vpop.trf.xlu0
    %v1240 = vpop.trf.xlu0
    %v1241 = vpop.trf.xlu0
    %v1242 = vpop.trf.xlu0
    %v1243 = vpop.trf.xlu0
    %v1244 = vpop.trf.xlu0
    %v1245 = vpop.trf.xlu0
    %v1246 = vpop.trf.xlu0
    %v1247 = vpop.trf.xlu0
    %v1248 = vpop.trf.xlu0
    %v1249 = vpop.trf.xlu0
    %v1250 = vpop.trf.xlu0
    %v1251 = vpop.trf.xlu0
    %v1252 = vpack.c.bf16 %v1140, %v1140
    %v1253 = vpack.c.bf16 %v1172, %v1172
    %v1254 = vpack.c.bf16 %v1204, %v1204
    %v1255 = vpack.c.bf16 %v1236, %v1236
    %1257 = vrot.lane.b32.xlu0 %v483, 120
    %v1258 = vpop.permute.xlu0 %1257
    %v1260 = vsel %vm487, %v1252, 0
    %v1263 = vsel %vm491, %v1258, 0
    %1265 = vmatprep.subr.bf16.mxu0 0
    %1266 = vmatpush1.bf16.msra.mxu0 %v1263
    %1267 = vmatprep.subr.bf16.mxu0 0
    %1268 = vmatpush1.bf16.msra.mxu0 0
    %1269 = vmatprep.subr.bf16.mxu0 0
    %1270 = vmatpush1.bf16.msra.mxu0 0
    %1271 = vmatprep.subr.bf16.mxu0 0
    %1272 = vmatpush1.bf16.msra.mxu0 0
    %1273 = vmatprep.subr.bf16.mxu0 0
    %1274 = vmatpush1.bf16.msra.mxu0 0
    %1275 = vmatprep.subr.bf16.mxu0 0
    %1276 = vmatpush1.bf16.msra.mxu0 0
    %1277 = vmatprep.subr.bf16.mxu0 0
    %1278 = vmatpush1.bf16.msra.mxu0 0
    %1279 = vmatprep.subr.bf16.mxu0 0
    %1280 = vmatpush1.bf16.msra.mxu0 0
    %1281 = vmatprep.subr.bf16.mxu0 0
    %1282 = vmatpush1.bf16.msra.mxu0 0
    %1283 = vmatprep.subr.bf16.mxu0 0
    %1284 = vmatpush1.bf16.msra.mxu0 0
    %1285 = vmatprep.subr.bf16.mxu0 0
    %1286 = vmatpush1.bf16.msra.mxu0 0
    %1287 = vmatprep.subr.bf16.mxu0 0
    %1288 = vmatpush1.bf16.msra.mxu0 0
    %1289 = vmatprep.subr.bf16.mxu0 0
    %1290 = vmatpush1.bf16.msra.mxu0 0
    %1291 = vmatprep.subr.bf16.mxu0 0
    %1292 = vmatpush1.bf16.msra.mxu0 0
    %1293 = vmatprep.subr.bf16.mxu0 0
    %1294 = vmatpush1.bf16.msra.mxu0 0
    %1295 = vmatprep.subr.bf16.mxu0 0
    %1296 = vmatpush1.bf16.msra.mxu0 0
    %1297 = vmatprep.mubr.bf16.mxu0 0
    %1298 = vmatmul.mubr.bf16.gmra.mrb[0].mxu0 %v1260
    %v1299 = vpop.f32.mrb[0].mxu0
    %v1300 = vadd.f32 0.0, %v1299
    %v1301 = vpop.f32.mrb[0].mxu0
    %v1302 = vpop.f32.mrb[0].mxu0
    %v1303 = vpop.f32.mrb[0].mxu0
    %1304 = vdwg.mxu0
    %1306 = vrot.lane.b32.xlu0 %v484, 120
    %v1307 = vpop.permute.xlu0 %1306
    %v1309 = vsel %vm487, %v1253, 0
    %v1312 = vsel %vm491, %v1307, 0
    %1314 = vmatprep.subr.bf16.mxu0 0
    %1315 = vmatpush1.bf16.msra.mxu0 %v1312
    %1316 = vmatprep.subr.bf16.mxu0 0
    %1317 = vmatpush1.bf16.msra.mxu0 0
    %1318 = vmatprep.subr.bf16.mxu0 0
    %1319 = vmatpush1.bf16.msra.mxu0 0
    %1320 = vmatprep.subr.bf16.mxu0 0
    %1321 = vmatpush1.bf16.msra.mxu0 0
    %1322 = vmatprep.subr.bf16.mxu0 0
    %1323 = vmatpush1.bf16.msra.mxu0 0
    %1324 = vmatprep.subr.bf16.mxu0 0
    %1325 = vmatpush1.bf16.msra.mxu0 0
    %1326 = vmatprep.subr.bf16.mxu0 0
    %1327 = vmatpush1.bf16.msra.mxu0 0
    %1328 = vmatprep.subr.bf16.mxu0 0
    %1329 = vmatpush1.bf16.msra.mxu0 0
    %1330 = vmatprep.subr.bf16.mxu0 0
    %1331 = vmatpush1.bf16.msra.mxu0 0
    %1332 = vmatprep.subr.bf16.mxu0 0
    %1333 = vmatpush1.bf16.msra.mxu0 0
    %1334 = vmatprep.subr.bf16.mxu0 0
    %1335 = vmatpush1.bf16.msra.mxu0 0
    %1336 = vmatprep.subr.bf16.mxu0 0
    %1337 = vmatpush1.bf16.msra.mxu0 0
    %1338 = vmatprep.subr.bf16.mxu0 0
    %1339 = vmatpush1.bf16.msra.mxu0 0
    %1340 = vmatprep.subr.bf16.mxu0 0
    %1341 = vmatpush1.bf16.msra.mxu0 0
    %1342 = vmatprep.subr.bf16.mxu0 0
    %1343 = vmatpush1.bf16.msra.mxu0 0
    %1344 = vmatprep.subr.bf16.mxu0 0
    %1345 = vmatpush1.bf16.msra.mxu0 0
    %1346 = vmatprep.mubr.bf16.mxu0 0
    %1347 = vmatmul.mubr.bf16.gmra.mrb[0].mxu0 %v1309
    %v1348 = vpop.f32.mrb[0].mxu0
    %v1349 = vadd.f32 0.0, %v1348
    %v1350 = vpop.f32.mrb[0].mxu0
    %v1351 = vpop.f32.mrb[0].mxu0
    %v1352 = vpop.f32.mrb[0].mxu0
    %1353 = vdwg.mxu0
    %1355 = vrot.lane.b32.xlu0 %v485, 120
    %v1356 = vpop.permute.xlu0 %1355
    %v1358 = vsel %vm487, %v1254, 0
    %v1361 = vsel %vm491, %v1356, 0
    %1363 = vmatprep.subr.bf16.mxu0 0
    %1364 = vmatpush1.bf16.msra.mxu0 %v1361
    %1365 = vmatprep.subr.bf16.mxu0 0
    %1366 = vmatpush1.bf16.msra.mxu0 0
    %1367 = vmatprep.subr.bf16.mxu0 0
    %1368 = vmatpush1.bf16.msra.mxu0 0
    %1369 = vmatprep.subr.bf16.mxu0 0
    %1370 = vmatpush1.bf16.msra.mxu0 0
    %1371 = vmatprep.subr.bf16.mxu0 0
    %1372 = vmatpush1.bf16.msra.mxu0 0
    %1373 = vmatprep.subr.bf16.mxu0 0
    %1374 = vmatpush1.bf16.msra.mxu0 0
    %1375 = vmatprep.subr.bf16.mxu0 0
    %1376 = vmatpush1.bf16.msra.mxu0 0
    %1377 = vmatprep.subr.bf16.mxu0 0
    %1378 = vmatpush1.bf16.msra.mxu0 0
    %1379 = vmatprep.subr.bf16.mxu0 0
    %1380 = vmatpush1.bf16.msra.mxu0 0
    %1381 = vmatprep.subr.bf16.mxu0 0
    %1382 = vmatpush1.bf16.msra.mxu0 0
    %1383 = vmatprep.subr.bf16.mxu0 0
    %1384 = vmatpush1.bf16.msra.mxu0 0
    %1385 = vmatprep.subr.bf16.mxu0 0
    %1386 = vmatpush1.bf16.msra.mxu0 0
    %1387 = vmatprep.subr.bf16.mxu0 0
    %1388 = vmatpush1.bf16.msra.mxu0 0
    %1389 = vmatprep.subr.bf16.mxu0 0
    %1390 = vmatpush1.bf16.msra.mxu0 0
    %1391 = vmatprep.subr.bf16.mxu0 0
    %1392 = vmatpush1.bf16.msra.mxu0 0
    %1393 = vmatprep.subr.bf16.mxu0 0
    %1394 = vmatpush1.bf16.msra.mxu0 0
    %1395 = vmatprep.mubr.bf16.mxu0 0
    %1396 = vmatmul.mubr.bf16.gmra.mrb[0].mxu0 %v1358
    %v1397 = vpop.f32.mrb[0].mxu0
    %v1398 = vadd.f32 0.0, %v1397
    %v1399 = vpop.f32.mrb[0].mxu0
    %v1400 = vpop.f32.mrb[0].mxu0
    %v1401 = vpop.f32.mrb[0].mxu0
    %1402 = vdwg.mxu0
    %1404 = vrot.lane.b32.xlu0 %v486, 120
    %v1405 = vpop.permute.xlu0 %1404
    %v1407 = vsel %vm487, %v1255, 0
    %v1410 = vsel %vm491, %v1405, 0
    %1412 = vmatprep.subr.bf16.mxu0 0
    %1413 = vmatpush1.bf16.msra.mxu0 %v1410
    %1414 = vmatprep.subr.bf16.mxu0 0
    %1415 = vmatpush1.bf16.msra.mxu0 0
    %1416 = vmatprep.subr.bf16.mxu0 0
    %1417 = vmatpush1.bf16.msra.mxu0 0
    %1418 = vmatprep.subr.bf16.mxu0 0
    %1419 = vmatpush1.bf16.msra.mxu0 0
    %1420 = vmatprep.subr.bf16.mxu0 0
    %1421 = vmatpush1.bf16.msra.mxu0 0
    %1422 = vmatprep.subr.bf16.mxu0 0
    %1423 = vmatpush1.bf16.msra.mxu0 0
    %1424 = vmatprep.subr.bf16.mxu0 0
    %1425 = vmatpush1.bf16.msra.mxu0 0
    %1426 = vmatprep.subr.bf16.mxu0 0
    %1427 = vmatpush1.bf16.msra.mxu0 0
    %1428 = vmatprep.subr.bf16.mxu0 0
    %1429 = vmatpush1.bf16.msra.mxu0 0
    %1430 = vmatprep.subr.bf16.mxu0 0
    %1431 = vmatpush1.bf16.msra.mxu0 0
    %1432 = vmatprep.subr.bf16.mxu0 0
    %1433 = vmatpush1.bf16.msra.mxu0 0
    %1434 = vmatprep.subr.bf16.mxu0 0
    %1435 = vmatpush1.bf16.msra.mxu0 0
    %1436 = vmatprep.subr.bf16.mxu0 0
    %1437 = vmatpush1.bf16.msra.mxu0 0
    %1438 = vmatprep.subr.bf16.mxu0 0
    %1439 = vmatpush1.bf16.msra.mxu0 0
    %1440 = vmatprep.subr.bf16.mxu0 0
    %1441 = vmatpush1.bf16.msra.mxu0 0
    %1442 = vmatprep.subr.bf16.mxu0 0
    %1443 = vmatpush1.bf16.msra.mxu0 0
    %1444 = vmatprep.mubr.bf16.mxu0 0
    %1445 = vmatmul.mubr.bf16.gmra.mrb[0].mxu0 %v1407
    %v1446 = vpop.f32.mrb[0].mxu0
    %v1447 = vadd.f32 0.0, %v1446
    %v1448 = vpop.f32.mrb[0].mxu0
    %v1449 = vpop.f32.mrb[0].mxu0
    %v1450 = vpop.f32.mrb[0].mxu0
    %1451 = vdwg.mxu0
    %v1452 = vmul.f32 %v1300, 0.35355338
    %v1453 = vmul.f32 %v1349, 0.35355338
    %v1454 = vmul.f32 %v1398, 0.35355338
    %v1455 = vmul.f32 %v1447, 0.35355338
    %v1456 = vsel %vm487, %v1452, -inf
    %1457 = vmax.xlane.f32.xlu0 %v1456
    %v1458 = vpop.xlane.xlu0 %1457
    %v1459 = vsel %vm487, %v1453, -inf
    %1460 = vmax.xlane.f32.xlu0 %v1459
    %v1461 = vpop.xlane.xlu0 %1460
    %v1462 = vsel %vm487, %v1454, -inf
    %1463 = vmax.xlane.f32.xlu0 %v1462
    %v1464 = vpop.xlane.xlu0 %1463
    %v1465 = vsel %vm487, %v1455, -inf
    %1466 = vmax.xlane.f32.xlu0 %v1465
    %v1467 = vpop.xlane.xlu0 %1466
    %v1468 = vsub.f32 %v1452, %v1458
    %v1469 = vsub.f32 %v1453, %v1461
    %v1470 = vsub.f32 %v1454, %v1464
    %v1471 = vsub.f32 %v1455, %v1467
    %v1472 = vmul.f32 %v1468, 1.442695
    %v1473 = vpow.pop %v1472
    %v1474 = vmul.f32 %v1469, 1.442695
    %v1475 = vpow.pop %v1474
    %v1476 = vmul.f32 %v1470, 1.442695
    %v1477 = vpow.pop %v1476
    %v1478 = vmul.f32 %v1471, 1.442695
    %v1479 = vpow.pop %v1478
    %v1480 = vsel %vm487, %v1473, 0.0
    %1481 = vadd.xlane.f32.xlu0 %v1480
    %v1482 = vpop.xlane.xlu0 %1481
    %v1483 = vsel %vm487, %v1475, 0.0
    %1484 = vadd.xlane.f32.xlu0 %v1483
    %v1485 = vpop.xlane.xlu0 %1484
    %v1486 = vsel %vm487, %v1477, 0.0
    %1487 = vadd.xlane.f32.xlu0 %v1486
    %v1488 = vpop.xlane.xlu0 %1487
    %v1489 = vsel %vm487, %v1479, 0.0
    %1490 = vadd.xlane.f32.xlu0 %v1489
    %v1491 = vpop.xlane.xlu0 %1490
    %v1492 = vrcp.pop %v1482
    %v1493 = vrcp.pop %v1485
    %v1494 = vrcp.pop %v1488
    %v1495 = vrcp.pop %v1491
    %v1496 = vmul.f32 %v1473, %v1492
    %v1497 = vmul.f32 %v1475, %v1493
    %v1498 = vmul.f32 %v1477, %v1494
    %v1499 = vmul.f32 %v1479, %v1495
    %v1500 = vpack.c.bf16 %v1496, %v1496
    %v1501 = vpack.c.bf16 %v1497, %v1497
    %v1502 = vpack.c.bf16 %v1498, %v1498
    %v1503 = vpack.c.bf16 %v1499, %v1499
    %1505 = vrot.lane.b32.xlu0 %v725, 120
    %v1506 = vpop.permute.xlu0 %1505
    %v1508 = vsel %vm487, %v1500, 0
    %v1511 = vsel %vm487, %v1506, 0
    %1513 = vmatprep.subr.bf16.mxu0 0
    %1514 = vmatpush1.bf16.xpose.msra.mxu0 %v1511
    %1515 = vmatprep.subr.bf16.mxu0 0
    %1516 = vmatpush1.bf16.xpose.msra.mxu0 0
    %1517 = vmatprep.subr.bf16.mxu0 0
    %1518 = vmatpush1.bf16.xpose.msra.mxu0 0
    %1519 = vmatprep.subr.bf16.mxu0 0
    %1520 = vmatpush1.bf16.xpose.msra.mxu0 0
    %1521 = vmatprep.subr.bf16.mxu0 0
    %1522 = vmatpush1.bf16.xpose.msra.mxu0 0
    %1523 = vmatprep.subr.bf16.mxu0 0
    %1524 = vmatpush1.bf16.xpose.msra.mxu0 0
    %1525 = vmatprep.subr.bf16.mxu0 0
    %1526 = vmatpush1.bf16.xpose.msra.mxu0 0
    %1527 = vmatprep.subr.bf16.mxu0 0
    %1528 = vmatpush1.bf16.xpose.msra.mxu0 0
    %1529 = vmatprep.subr.bf16.mxu0 0
    %1530 = vmatpush1.bf16.xpose.msra.mxu0 0
    %1531 = vmatprep.subr.bf16.mxu0 0
    %1532 = vmatpush1.bf16.xpose.msra.mxu0 0
    %1533 = vmatprep.subr.bf16.mxu0 0
    %1534 = vmatpush1.bf16.xpose.msra.mxu0 0
    %1535 = vmatprep.subr.bf16.mxu0 0
    %1536 = vmatpush1.bf16.xpose.msra.mxu0 0
    %1537 = vmatprep.subr.bf16.mxu0 0
    %1538 = vmatpush1.bf16.xpose.msra.mxu0 0
    %1539 = vmatprep.subr.bf16.mxu0 0
    %1540 = vmatpush1.bf16.xpose.msra.mxu0 0
    %1541 = vmatprep.subr.bf16.mxu0 0
    %1542 = vmatpush1.bf16.xpose.msra.mxu0 0
    %1543 = vmatprep.subr.bf16.mxu0 0
    %1544 = vmatpush1.bf16.xpose.msra.mxu0 0
    %1545 = vmatprep.mubr.bf16.mxu0 0
    %1546 = vmatmul.mubr.bf16.gmra.mrb[0].mxu0 %v1508
    %v1547 = vpop.f32.mrb[0].mxu0
    %v1548 = vadd.f32 0.0, %v1547
    %v1549 = vpop.f32.mrb[0].mxu0
    %v1550 = vpop.f32.mrb[0].mxu0
    %v1551 = vpop.f32.mrb[0].mxu0
    %1552 = vdwg.mxu0
    %1554 = vrot.lane.b32.xlu0 %v726, 120
    %v1555 = vpop.permute.xlu0 %1554
    %v1557 = vsel %vm487, %v1501, 0
    %v1560 = vsel %vm487, %v1555, 0
    %1562 = vmatprep.subr.bf16.mxu0 0
    %1563 = vmatpush1.bf16.xpose.msra.mxu0 %v1560
    %1564 = vmatprep.subr.bf16.mxu0 0
    %1565 = vmatpush1.bf16.xpose.msra.mxu0 0
    %1566 = vmatprep.subr.bf16.mxu0 0
    %1567 = vmatpush1.bf16.xpose.msra.mxu0 0
    %1568 = vmatprep.subr.bf16.mxu0 0
    %1569 = vmatpush1.bf16.xpose.msra.mxu0 0
    %1570 = vmatprep.subr.bf16.mxu0 0
    %1571 = vmatpush1.bf16.xpose.msra.mxu0 0
    %1572 = vmatprep.subr.bf16.mxu0 0
    %1573 = vmatpush1.bf16.xpose.msra.mxu0 0
    %1574 = vmatprep.subr.bf16.mxu0 0
    %1575 = vmatpush1.bf16.xpose.msra.mxu0 0
    %1576 = vmatprep.subr.bf16.mxu0 0
    %1577 = vmatpush1.bf16.xpose.msra.mxu0 0
    %1578 = vmatprep.subr.bf16.mxu0 0
    %1579 = vmatpush1.bf16.xpose.msra.mxu0 0
    %1580 = vmatprep.subr.bf16.mxu0 0
    %1581 = vmatpush1.bf16.xpose.msra.mxu0 0
    %1582 = vmatprep.subr.bf16.mxu0 0
    %1583 = vmatpush1.bf16.xpose.msra.mxu0 0
    %1584 = vmatprep.subr.bf16.mxu0 0
    %1585 = vmatpush1.bf16.xpose.msra.mxu0 0
    %1586 = vmatprep.subr.bf16.mxu0 0
    %1587 = vmatpush1.bf16.xpose.msra.mxu0 0
    %1588 = vmatprep.subr.bf16.mxu0 0
    %1589 = vmatpush1.bf16.xpose.msra.mxu0 0
    %1590 = vmatprep.subr.bf16.mxu0 0
    %1591 = vmatpush1.bf16.xpose.msra.mxu0 0
    %1592 = vmatprep.subr.bf16.mxu0 0
    %1593 = vmatpush1.bf16.xpose.msra.mxu0 0
    %1594 = vmatprep.mubr.bf16.mxu0 0
    %1595 = vmatmul.mubr.bf16.gmra.mrb[0].mxu0 %v1557
    %v1596 = vpop.f32.mrb[0].mxu0
    %v1597 = vadd.f32 0.0, %v1596
    %v1598 = vpop.f32.mrb[0].mxu0
    %v1599 = vpop.f32.mrb[0].mxu0
    %v1600 = vpop.f32.mrb[0].mxu0
    %1601 = vdwg.mxu0
    %1603 = vrot.lane.b32.xlu0 %v727, 120
    %v1604 = vpop.permute.xlu0 %1603
    %v1606 = vsel %vm487, %v1502, 0
    %v1609 = vsel %vm487, %v1604, 0
    %1611 = vmatprep.subr.bf16.mxu0 0
    %1612 = vmatpush1.bf16.xpose.msra.mxu0 %v1609
    %1613 = vmatprep.subr.bf16.mxu0 0
    %1614 = vmatpush1.bf16.xpose.msra.mxu0 0
    %1615 = vmatprep.subr.bf16.mxu0 0
    %1616 = vmatpush1.bf16.xpose.msra.mxu0 0
    %1617 = vmatprep.subr.bf16.mxu0 0
    %1618 = vmatpush1.bf16.xpose.msra.mxu0 0
    %1619 = vmatprep.subr.bf16.mxu0 0
    %1620 = vmatpush1.bf16.xpose.msra.mxu0 0
    %1621 = vmatprep.subr.bf16.mxu0 0
    %1622 = vmatpush1.bf16.xpose.msra.mxu0 0
    %1623 = vmatprep.subr.bf16.mxu0 0
    %1624 = vmatpush1.bf16.xpose.msra.mxu0 0
    %1625 = vmatprep.subr.bf16.mxu0 0
    %1626 = vmatpush1.bf16.xpose.msra.mxu0 0
    %1627 = vmatprep.subr.bf16.mxu0 0
    %1628 = vmatpush1.bf16.xpose.msra.mxu0 0
    %1629 = vmatprep.subr.bf16.mxu0 0
    %1630 = vmatpush1.bf16.xpose.msra.mxu0 0
    %1631 = vmatprep.subr.bf16.mxu0 0
    %1632 = vmatpush1.bf16.xpose.msra.mxu0 0
    %1633 = vmatprep.subr.bf16.mxu0 0
    %1634 = vmatpush1.bf16.xpose.msra.mxu0 0
    %1635 = vmatprep.subr.bf16.mxu0 0
    %1636 = vmatpush1.bf16.xpose.msra.mxu0 0
    %1637 = vmatprep.subr.bf16.mxu0 0
    %1638 = vmatpush1.bf16.xpose.msra.mxu0 0
    %1639 = vmatprep.subr.bf16.mxu0 0
    %1640 = vmatpush1.bf16.xpose.msra.mxu0 0
    %1641 = vmatprep.subr.bf16.mxu0 0
    %1642 = vmatpush1.bf16.xpose.msra.mxu0 0
    %1643 = vmatprep.mubr.bf16.mxu0 0
    %1644 = vmatmul.mubr.bf16.gmra.mrb[0].mxu0 %v1606
    %v1645 = vpop.f32.mrb[0].mxu0
    %v1646 = vadd.f32 0.0, %v1645
    %v1647 = vpop.f32.mrb[0].mxu0
    %v1648 = vpop.f32.mrb[0].mxu0
    %v1649 = vpop.f32.mrb[0].mxu0
    %1650 = vdwg.mxu0
    %1652 = vrot.lane.b32.xlu0 %v728, 120
    %v1653 = vpop.permute.xlu0 %1652
    %v1655 = vsel %vm487, %v1503, 0
    %v1658 = vsel %vm487, %v1653, 0
    %1660 = vmatprep.subr.bf16.mxu0 0
    %1661 = vmatpush1.bf16.xpose.msra.mxu0 %v1658
    %1662 = vmatprep.subr.bf16.mxu0 0
    %1663 = vmatpush1.bf16.xpose.msra.mxu0 0
    %1664 = vmatprep.subr.bf16.mxu0 0
    %1665 = vmatpush1.bf16.xpose.msra.mxu0 0
    %1666 = vmatprep.subr.bf16.mxu0 0
    %1667 = vmatpush1.bf16.xpose.msra.mxu0 0
    %1668 = vmatprep.subr.bf16.mxu0 0
    %1669 = vmatpush1.bf16.xpose.msra.mxu0 0
    %1670 = vmatprep.subr.bf16.mxu0 0
    %1671 = vmatpush1.bf16.xpose.msra.mxu0 0
    %1672 = vmatprep.subr.bf16.mxu0 0
    %1673 = vmatpush1.bf16.xpose.msra.mxu0 0
    %1674 = vmatprep.subr.bf16.mxu0 0
    %1675 = vmatpush1.bf16.xpose.msra.mxu0 0
    %1676 = vmatprep.subr.bf16.mxu0 0
    %1677 = vmatpush1.bf16.xpose.msra.mxu0 0
    %1678 = vmatprep.subr.bf16.mxu0 0
    %1679 = vmatpush1.bf16.xpose.msra.mxu0 0
    %1680 = vmatprep.subr.bf16.mxu0 0
    %1681 = vmatpush1.bf16.xpose.msra.mxu0 0
    %1682 = vmatprep.subr.bf16.mxu0 0
    %1683 = vmatpush1.bf16.xpose.msra.mxu0 0
    %1684 = vmatprep.subr.bf16.mxu0 0
    %1685 = vmatpush1.bf16.xpose.msra.mxu0 0
    %1686 = vmatprep.subr.bf16.mxu0 0
    %1687 = vmatpush1.bf16.xpose.msra.mxu0 0
    %1688 = vmatprep.subr.bf16.mxu0 0
    %1689 = vmatpush1.bf16.xpose.msra.mxu0 0
    %1690 = vmatprep.subr.bf16.mxu0 0
    %1691 = vmatpush1.bf16.xpose.msra.mxu0 0
    %1692 = vmatprep.mubr.bf16.mxu0 0
    %1693 = vmatmul.mubr.bf16.gmra.mrb[0].mxu0 %v1655
    %v1694 = vpop.f32.mrb[0].mxu0
    %v1695 = vadd.f32 0.0, %v1694
    %v1696 = vpop.f32.mrb[0].mxu0
    %v1697 = vpop.f32.mrb[0].mxu0
    %v1698 = vpop.f32.mrb[0].mxu0
    %1699 = vdwg.mxu0
    %v1700 = vpack.c.bf16 %v1548, %v1548
    %v1701 = vpack.c.bf16 %v1597, %v1597
    %v1702 = vpack.c.bf16 %v1646, %v1646
    %v1703 = vpack.c.bf16 %v1695, %v1695
    %v1705 = vsel %vm487, %v1700, 0
    %1707 = vmatprep.subr.bf16.mxu0 0
    %1708 = vmatpush1.bf16.msra.mxu0 %v921
    %1709 = vmatprep.subr.bf16.mxu0 0
    %1710 = vmatpush1.bf16.msra.mxu0 0
    %1711 = vmatprep.subr.bf16.mxu0 0
    %1712 = vmatpush1.bf16.msra.mxu0 0
    %1713 = vmatprep.subr.bf16.mxu0 0
    %1714 = vmatpush1.bf16.msra.mxu0 0
    %1715 = vmatprep.subr.bf16.mxu0 0
    %1716 = vmatpush1.bf16.msra.mxu0 0
    %1717 = vmatprep.subr.bf16.mxu0 0
    %1718 = vmatpush1.bf16.msra.mxu0 0
    %1719 = vmatprep.subr.bf16.mxu0 0
    %1720 = vmatpush1.bf16.msra.mxu0 0
    %1721 = vmatprep.subr.bf16.mxu0 0
    %1722 = vmatpush1.bf16.msra.mxu0 0
    %1723 = vmatprep.subr.bf16.mxu0 0
    %1724 = vmatpush1.bf16.msra.mxu0 0
    %1725 = vmatprep.subr.bf16.mxu0 0
    %1726 = vmatpush1.bf16.msra.mxu0 0
    %1727 = vmatprep.subr.bf16.mxu0 0
    %1728 = vmatpush1.bf16.msra.mxu0 0
    %1729 = vmatprep.subr.bf16.mxu0 0
    %1730 = vmatpush1.bf16.msra.mxu0 0
    %1731 = vmatprep.subr.bf16.mxu0 0
    %1732 = vmatpush1.bf16.msra.mxu0 0
    %1733 = vmatprep.subr.bf16.mxu0 0
    %1734 = vmatpush1.bf16.msra.mxu0 0
    %1735 = vmatprep.subr.bf16.mxu0 0
    %1736 = vmatpush1.bf16.msra.mxu0 0
    %1737 = vmatprep.subr.bf16.mxu0 0
    %1738 = vmatpush1.bf16.msra.mxu0 0
    %1739 = vmatprep.mubr.bf16.mxu0 0
    %1740 = vmatmul.mubr.bf16.gmra.mrb[0].mxu0 %v1705
    %v1741 = vpop.f32.mrb[0].mxu0
    %v1742 = vadd.f32 0.0, %v1741
    %v1743 = vpop.f32.mrb[0].mxu0
    %v1744 = vpop.f32.mrb[0].mxu0
    %v1745 = vpop.f32.mrb[0].mxu0
    %1746 = vdwg.mxu0
    %v1748 = vsel %vm487, %v1701, 0
    %1750 = vmatprep.subr.bf16.mxu0 0
    %1751 = vmatpush1.bf16.msra.mxu0 %v967
    %1752 = vmatprep.subr.bf16.mxu0 0
    %1753 = vmatpush1.bf16.msra.mxu0 0
    %1754 = vmatprep.subr.bf16.mxu0 0
    %1755 = vmatpush1.bf16.msra.mxu0 0
    %1756 = vmatprep.subr.bf16.mxu0 0
    %1757 = vmatpush1.bf16.msra.mxu0 0
    %1758 = vmatprep.subr.bf16.mxu0 0
    %1759 = vmatpush1.bf16.msra.mxu0 0
    %1760 = vmatprep.subr.bf16.mxu0 0
    %1761 = vmatpush1.bf16.msra.mxu0 0
    %1762 = vmatprep.subr.bf16.mxu0 0
    %1763 = vmatpush1.bf16.msra.mxu0 0
    %1764 = vmatprep.subr.bf16.mxu0 0
    %1765 = vmatpush1.bf16.msra.mxu0 0
    %1766 = vmatprep.subr.bf16.mxu0 0
    %1767 = vmatpush1.bf16.msra.mxu0 0
    %1768 = vmatprep.subr.bf16.mxu0 0
    %1769 = vmatpush1.bf16.msra.mxu0 0
    %1770 = vmatprep.subr.bf16.mxu0 0
    %1771 = vmatpush1.bf16.msra.mxu0 0
    %1772 = vmatprep.subr.bf16.mxu0 0
    %1773 = vmatpush1.bf16.msra.mxu0 0
    %1774 = vmatprep.subr.bf16.mxu0 0
    %1775 = vmatpush1.bf16.msra.mxu0 0
    %1776 = vmatprep.subr.bf16.mxu0 0
    %1777 = vmatpush1.bf16.msra.mxu0 0
    %1778 = vmatprep.subr.bf16.mxu0 0
    %1779 = vmatpush1.bf16.msra.mxu0 0
    %1780 = vmatprep.subr.bf16.mxu0 0
    %1781 = vmatpush1.bf16.msra.mxu0 0
    %1782 = vmatprep.mubr.bf16.mxu0 0
    %1783 = vmatmul.mubr.bf16.gmra.mrb[0].mxu0 %v1748
    %v1784 = vpop.f32.mrb[0].mxu0
    %v1785 = vadd.f32 0.0, %v1784
    %v1786 = vpop.f32.mrb[0].mxu0
    %v1787 = vpop.f32.mrb[0].mxu0
    %v1788 = vpop.f32.mrb[0].mxu0
    %1789 = vdwg.mxu0
    %v1791 = vsel %vm487, %v1702, 0
    %1793 = vmatprep.subr.bf16.mxu0 0
    %1794 = vmatpush1.bf16.msra.mxu0 %v1013
    %1795 = vmatprep.subr.bf16.mxu0 0
    %1796 = vmatpush1.bf16.msra.mxu0 0
    %1797 = vmatprep.subr.bf16.mxu0 0
    %1798 = vmatpush1.bf16.msra.mxu0 0
    %1799 = vmatprep.subr.bf16.mxu0 0
    %1800 = vmatpush1.bf16.msra.mxu0 0
    %1801 = vmatprep.subr.bf16.mxu0 0
    %1802 = vmatpush1.bf16.msra.mxu0 0
    %1803 = vmatprep.subr.bf16.mxu0 0
    %1804 = vmatpush1.bf16.msra.mxu0 0
    %1805 = vmatprep.subr.bf16.mxu0 0
    %1806 = vmatpush1.bf16.msra.mxu0 0
    %1807 = vmatprep.subr.bf16.mxu0 0
    %1808 = vmatpush1.bf16.msra.mxu0 0
    %1809 = vmatprep.subr.bf16.mxu0 0
    %1810 = vmatpush1.bf16.msra.mxu0 0
    %1811 = vmatprep.subr.bf16.mxu0 0
    %1812 = vmatpush1.bf16.msra.mxu0 0
    %1813 = vmatprep.subr.bf16.mxu0 0
    %1814 = vmatpush1.bf16.msra.mxu0 0
    %1815 = vmatprep.subr.bf16.mxu0 0
    %1816 = vmatpush1.bf16.msra.mxu0 0
    %1817 = vmatprep.subr.bf16.mxu0 0
    %1818 = vmatpush1.bf16.msra.mxu0 0
    %1819 = vmatprep.subr.bf16.mxu0 0
    %1820 = vmatpush1.bf16.msra.mxu0 0
    %1821 = vmatprep.subr.bf16.mxu0 0
    %1822 = vmatpush1.bf16.msra.mxu0 0
    %1823 = vmatprep.subr.bf16.mxu0 0
    %1824 = vmatpush1.bf16.msra.mxu0 0
    %1825 = vmatprep.mubr.bf16.mxu0 0
    %1826 = vmatmul.mubr.bf16.gmra.mrb[0].mxu0 %v1791
    %v1827 = vpop.f32.mrb[0].mxu0
    %v1828 = vadd.f32 0.0, %v1827
    %v1829 = vpop.f32.mrb[0].mxu0
    %v1830 = vpop.f32.mrb[0].mxu0
    %v1831 = vpop.f32.mrb[0].mxu0
    %1832 = vdwg.mxu0
    %v1834 = vsel %vm487, %v1703, 0
    %1836 = vmatprep.subr.bf16.mxu0 0
    %1837 = vmatpush1.bf16.msra.mxu0 %v1059
    %1838 = vmatprep.subr.bf16.mxu0 0
    %1839 = vmatpush1.bf16.msra.mxu0 0
    %1840 = vmatprep.subr.bf16.mxu0 0
    %1841 = vmatpush1.bf16.msra.mxu0 0
    %1842 = vmatprep.subr.bf16.mxu0 0
    %1843 = vmatpush1.bf16.msra.mxu0 0
    %1844 = vmatprep.subr.bf16.mxu0 0
    %1845 = vmatpush1.bf16.msra.mxu0 0
    %1846 = vmatprep.subr.bf16.mxu0 0
    %1847 = vmatpush1.bf16.msra.mxu0 0
    %1848 = vmatprep.subr.bf16.mxu0 0
    %1849 = vmatpush1.bf16.msra.mxu0 0
    %1850 = vmatprep.subr.bf16.mxu0 0
    %1851 = vmatpush1.bf16.msra.mxu0 0
    %1852 = vmatprep.subr.bf16.mxu0 0
    %1853 = vmatpush1.bf16.msra.mxu0 0
    %1854 = vmatprep.subr.bf16.mxu0 0
    %1855 = vmatpush1.bf16.msra.mxu0 0
    %1856 = vmatprep.subr.bf16.mxu0 0
    %1857 = vmatpush1.bf16.msra.mxu0 0
    %1858 = vmatprep.subr.bf16.mxu0 0
    %1859 = vmatpush1.bf16.msra.mxu0 0
    %1860 = vmatprep.subr.bf16.mxu0 0
    %1861 = vmatpush1.bf16.msra.mxu0 0
    %1862 = vmatprep.subr.bf16.mxu0 0
    %1863 = vmatpush1.bf16.msra.mxu0 0
    %1864 = vmatprep.subr.bf16.mxu0 0
    %1865 = vmatpush1.bf16.msra.mxu0 0
    %1866 = vmatprep.subr.bf16.mxu0 0
    %1867 = vmatpush1.bf16.msra.mxu0 0
    %1868 = vmatprep.mubr.bf16.mxu0 0
    %1869 = vmatmul.mubr.bf16.gmra.mrb[0].mxu0 %v1834
    %v1870 = vpop.f32.mrb[0].mxu0
    %v1871 = vadd.f32 0.0, %v1870
    %v1872 = vpop.f32.mrb[0].mxu0
    %v1873 = vpop.f32.mrb[0].mxu0
    %v1874 = vpop.f32.mrb[0].mxu0
    %1875 = vdwg.mxu0
    %v1876 = vsel %vm120, %v1742, 0.0
    %v1877 = vsel %vm120, %v1785, 0.0
    %v1878 = vadd.f32 %v1876, %v1877
    %v1879 = vsel %vm120, %v1828, 0.0
    %v1880 = vadd.f32 %v1878, %v1879
    %v1881 = vsel %vm120, %v1871, 0.0
    %v1882 = vadd.f32 %v1880, %v1881
    %v1883 = vlaneseq
    %v1884 = vshrl.u32 %v1883, 7
    %v1885 = vsub.s32 0, %v1884
    %v1886 = vrot.slane %v69, %v1885
    %v1887 = vadd.f32 %v1107, %v1886
    %v1888 = vadd.f32 %v1882, %v1886
    %v1889 = vunpack.c.l.bf16 %v71
    %v1890 = vunpack.c.l.bf16 %v72
    %v1891 = vadd.f32 %v1887, %v1889
    %v1892 = vadd.f32 %v1888, %v1890
    %v1893 = vsel %vm120, %v1891, 0.0
    %1894 = vadd.xlane.f32.xlu0 %v1893
    %v1895 = vpop.xlane.xlu0 %1894
    %v1896 = vsel %vm120, %v1892, 0.0
    %1897 = vadd.xlane.f32.xlu0 %v1896
    %v1898 = vpop.xlane.xlu0 %1897
    %v1899 = vrcp.pop 32.0
    %v1900 = vmul.f32 %v1895, %v1899
    %v1901 = vmul.f32 %v1898, %v1899
    %v1902 = vsub.f32 %v1891, %v1900
    %v1903 = vsub.f32 %v1892, %v1901
    %v1904 = vmul.f32 %v1902, %v1902
    %v1905 = vmul.f32 %v1903, %v1903
    %v1906 = vsel %vm120, %v1904, 0.0
    %1907 = vadd.xlane.f32.xlu0 %v1906
    %v1908 = vpop.xlane.xlu0 %1907
    %v1909 = vsel %vm120, %v1905, 0.0
    %1910 = vadd.xlane.f32.xlu0 %v1909
    %v1911 = vpop.xlane.xlu0 %1910
    %v1912 = vmul.f32 %v1908, %v1899
    %v1913 = vmul.f32 %v1911, %v1899
    %v1914 = vadd.f32 %v1912, 1e-05
    %v1915 = vadd.f32 %v1913, 1e-05
    %v1916 = vrsqrt.pop %v1914
    %v1917 = vrsqrt.pop %v1915
    %v1918 = vmul.f32 %v1902, %v1916
    %v1919 = vmul.f32 %v1903, %v1917
    %v1920 = vlaneseq
    %v1921 = vshrl.u32 %v1920, 7
    %v1922 = vsub.s32 1, %v1921
    %v1923 = vrot.slane %v69, %v1922
    %v1924 = vmul.f32 %v1918, %v1923
    %v1925 = vmul.f32 %v1919, %v1923
    %v1926 = vlaneseq
    %v1927 = vshrl.u32 %v1926, 7
    %v1928 = vsub.s32 2, %v1927
    %v1929 = vrot.slane %v69, %v1928
    %v1930 = vadd.f32 %v1924, %v1929
    %v1931 = vadd.f32 %v1925, %v1929
    %v1932 = vpack.c.bf16 %v1931, %v1930
    %v1933 = vld [vmem:[%s4] sm:$0xf]
    %v1934 = vld [vmem:[%s4 + $0x4] sm:$0xf]
    %v1935 = vld [vmem:[%s4 + $0x8] sm:$0xf]
    %v1936 = vld [vmem:[%s4 + $0xc] sm:$0xf]
    %s1937 = scalar_lea.vmem [#allocation5], 48
    %v1938 = vld [vmem:[%s1937] sm:$0xf]
    %v1939 = vld [vmem:[%s1937 + $0x4] sm:$0xf]
    %v1940 = vld [vmem:[%s1937 + $0x8] sm:$0xf]
    %v1941 = vld [vmem:[%s1937 + $0xc] sm:$0xf]
    %1942 = vset.pattern.permute.xlu0 3
    %1943 = vperm.xlu0 %1942, %v65
    %v1944 = vpop.permute.xlu0 %1943
    %1946 = vset.pattern.permute.xlu0 3
    %1947 = vperm.xlu0 %1946, %v66
    %v1948 = vpop.permute.xlu0 %1947
    %1950 = vset.pattern.permute.xlu0 3
    %1951 = vperm.xlu0 %1950, %v67
    %v1952 = vpop.permute.xlu0 %1951
    %1954 = vset.pattern.permute.xlu0 3
    %1955 = vperm.xlu0 %1954, %v68
    %v1956 = vpop.permute.xlu0 %1955
    %v1962 = vunpack.c.l.b16 %v1938
    %v1963 = vunpack.c.l.b16 %v1939
    %v1964 = vunpack.c.l.b16 %v1940
    %v1965 = vunpack.c.l.b16 %v1941
    %v1966 = vpack.c.b16 %v1963, %v1962
    %v1967 = vpack.c.b16 %v1965, %v1964
    %v1969 = vsel %vm120, %v1966, 0
    %v1972 = vsel %vm120, %v1967, 0
    %v1975 = vsel %vm120, %v1932, 0
    %1977 = vmatprep.subr.bf16.mxu0 0
    %1978 = vmatpush1.bf16.xpose.msra.mxu0 %v1975
    %1979 = vmatprep.subr.bf16.mxu0 0
    %1980 = vmatpush1.bf16.xpose.msra.mxu0 0
    %1981 = vmatprep.subr.bf16.mxu0 0
    %1982 = vmatpush1.bf16.xpose.msra.mxu0 0
    %1983 = vmatprep.subr.bf16.mxu0 0
    %1984 = vmatpush1.bf16.xpose.msra.mxu0 0
    %1985 = vmatprep.subr.bf16.mxu0 0
    %1986 = vmatpush1.bf16.xpose.msra.mxu0 0
    %1987 = vmatprep.subr.bf16.mxu0 0
    %1988 = vmatpush1.bf16.xpose.msra.mxu0 0
    %1989 = vmatprep.subr.bf16.mxu0 0
    %1990 = vmatpush1.bf16.xpose.msra.mxu0 0
    %1991 = vmatprep.subr.bf16.mxu0 0
    %1992 = vmatpush1.bf16.xpose.msra.mxu0 0
    %1993 = vmatprep.subr.bf16.mxu0 0
    %1994 = vmatpush1.bf16.xpose.msra.mxu0 0
    %1995 = vmatprep.subr.bf16.mxu0 0
    %1996 = vmatpush1.bf16.xpose.msra.mxu0 0
    %1997 = vmatprep.subr.bf16.mxu0 0
    %1998 = vmatpush1.bf16.xpose.msra.mxu0 0
    %1999 = vmatprep.subr.bf16.mxu0 0
    %2000 = vmatpush1.bf16.xpose.msra.mxu0 0
    %2001 = vmatprep.subr.bf16.mxu0 0
    %2002 = vmatpush1.bf16.xpose.msra.mxu0 0
    %2003 = vmatprep.subr.bf16.mxu0 0
    %2004 = vmatpush1.bf16.xpose.msra.mxu0 0
    %2005 = vmatprep.subr.bf16.mxu0 0
    %2006 = vmatpush1.bf16.xpose.msra.mxu0 0
    %2007 = vmatprep.subr.bf16.mxu0 0
    %2008 = vmatpush1.bf16.xpose.msra.mxu0 0
    %2009 = vmatprep.mubr.bf16.mxu0 0
    %2010 = vmatmul.mubr.bf16.gmra.mrb[0].mxu0 %v1969
    %v2011 = vpop.f32.mrb[0].mxu0
    %v2012 = vadd.f32 %v1944, %v2011
    %v2013 = vpop.f32.mrb[0].mxu0
    %v2014 = vpop.f32.mrb[0].mxu0
    %v2015 = vadd.f32 %v1948, %v2014
    %v2016 = vpop.f32.mrb[0].mxu0
    %2017 = vmatprep.mubr.bf16.mxu0 0
    %2018 = vmatmul.mubr.bf16.gmra.mrb[0].mxu0 %v1972
    %v2019 = vpop.f32.mrb[0].mxu0
    %v2020 = vadd.f32 %v1952, %v2019
    %v2021 = vpop.f32.mrb[0].mxu0
    %v2022 = vpop.f32.mrb[0].mxu0
    %v2023 = vadd.f32 %v1956, %v2022
    %v2024 = vpop.f32.mrb[0].mxu0
    %2025 = vdwg.mxu0
    %s2026 = scalar_lea.vmem [#allocation5], 64
    %v2027 = vld [vmem:[%s2026] sm:$0xf]
    %v2028 = vld [vmem:[%s2026 + $0x4] sm:$0xf]
    %v2029 = vld [vmem:[%s2026 + $0x8] sm:$0xf]
    %v2030 = vld [vmem:[%s2026 + $0xc] sm:$0xf]
    %2031 = vset.pattern.permute.xlu0 4
    %2032 = vperm.xlu0 %2031, %v65
    %v2033 = vpop.permute.xlu0 %2032
    %2035 = vset.pattern.permute.xlu0 4
    %2036 = vperm.xlu0 %2035, %v66
    %v2037 = vpop.permute.xlu0 %2036
    %2039 = vset.pattern.permute.xlu0 4
    %2040 = vperm.xlu0 %2039, %v67
    %v2041 = vpop.permute.xlu0 %2040
    %2043 = vset.pattern.permute.xlu0 4
    %2044 = vperm.xlu0 %2043, %v68
    %v2045 = vpop.permute.xlu0 %2044
    %v2051 = vunpack.c.l.b16 %v2027
    %v2052 = vunpack.c.l.b16 %v2028
    %v2053 = vunpack.c.l.b16 %v2029
    %v2054 = vunpack.c.l.b16 %v2030
    %v2055 = vpack.c.b16 %v2052, %v2051
    %v2056 = vpack.c.b16 %v2054, %v2053
    %v2061 = vunpack.c.l.b16 %v73
    %v2062 = vunpack.c.l.b16 %v74
    %v2063 = vunpack.c.l.b16 %v75
    %v2064 = vunpack.c.l.b16 %v76
    %v2065 = vpack.c.b16 %v2062, %v2061
    %v2066 = vpack.c.b16 %v2064, %v2063
    %v2068 = vsel %vm120, %v2055, 0
    %v2071 = vsel %vm120, %v2056, 0
    %v2074 = vsel %vm120, %v2065, 0
    %v2077 = vsel %vm120, %v2066, 0
    %2079 = vmatprep.subr.bf16.mxu0 0
    %2080 = vmatpush1.bf16.xpose.msra.mxu0 %v2074
    %2081 = vmatprep.subr.bf16.mxu0 0
    %2082 = vmatpush1.bf16.xpose.msra.mxu0 %v2077
    %2083 = vmatprep.subr.bf16.mxu0 0
    %2084 = vmatpush1.bf16.xpose.msra.mxu0 0
    %2085 = vmatprep.subr.bf16.mxu0 0
    %2086 = vmatpush1.bf16.xpose.msra.mxu0 0
    %2087 = vmatprep.subr.bf16.mxu0 0
    %2088 = vmatpush1.bf16.xpose.msra.mxu0 0
    %2089 = vmatprep.subr.bf16.mxu0 0
    %2090 = vmatpush1.bf16.xpose.msra.mxu0 0
    %2091 = vmatprep.subr.bf16.mxu0 0
    %2092 = vmatpush1.bf16.xpose.msra.mxu0 0
    %2093 = vmatprep.subr.bf16.mxu0 0
    %2094 = vmatpush1.bf16.xpose.msra.mxu0 0
    %2095 = vmatprep.subr.bf16.mxu0 0
    %2096 = vmatpush1.bf16.xpose.msra.mxu0 0
    %2097 = vmatprep.subr.bf16.mxu0 0
    %2098 = vmatpush1.bf16.xpose.msra.mxu0 0
    %2099 = vmatprep.subr.bf16.mxu0 0
    %2100 = vmatpush1.bf16.xpose.msra.mxu0 0
    %2101 = vmatprep.subr.bf16.mxu0 0
    %2102 = vmatpush1.bf16.xpose.msra.mxu0 0
    %2103 = vmatprep.subr.bf16.mxu0 0
    %2104 = vmatpush1.bf16.xpose.msra.mxu0 0
    %2105 = vmatprep.subr.bf16.mxu0 0
    %2106 = vmatpush1.bf16.xpose.msra.mxu0 0
    %2107 = vmatprep.subr.bf16.mxu0 0
    %2108 = vmatpush1.bf16.xpose.msra.mxu0 0
    %2109 = vmatprep.subr.bf16.mxu0 0
    %2110 = vmatpush1.bf16.xpose.msra.mxu0 0
    %2111 = vmatprep.mubr.bf16.mxu0 0
    %2112 = vmatmul.mubr.bf16.gmra.mrb[0].mxu0 %v2068
    %v2113 = vpop.f32.mrb[0].mxu0
    %v2114 = vadd.f32 %v2033, %v2113
    %v2115 = vpop.f32.mrb[0].mxu0
    %v2116 = vpop.f32.mrb[0].mxu0
    %v2117 = vadd.f32 %v2037, %v2116
    %v2118 = vpop.f32.mrb[0].mxu0
    %2119 = vmatprep.mubr.bf16.mxu0 0
    %2120 = vmatmul.mubr.bf16.gmra.mrb[0].mxu0 %v2071
    %v2121 = vpop.f32.mrb[0].mxu0
    %v2122 = vadd.f32 %v2041, %v2121
    %v2123 = vpop.f32.mrb[0].mxu0
    %v2124 = vpop.f32.mrb[0].mxu0
    %v2125 = vadd.f32 %v2045, %v2124
    %v2126 = vpop.f32.mrb[0].mxu0
    %2127 = vdwg.mxu0
    %s2128 = scalar_lea.vmem [#allocation5], 80
    %v2129 = vld [vmem:[%s2128] sm:$0xf]
    %v2130 = vld [vmem:[%s2128 + $0x4] sm:$0xf]
    %v2131 = vld [vmem:[%s2128 + $0x8] sm:$0xf]
    %v2132 = vld [vmem:[%s2128 + $0xc] sm:$0xf]
    %2133 = vset.pattern.permute.xlu0 5
    %2134 = vperm.xlu0 %2133, %v65
    %v2135 = vpop.permute.xlu0 %2134
    %2137 = vset.pattern.permute.xlu0 5
    %2138 = vperm.xlu0 %2137, %v66
    %v2139 = vpop.permute.xlu0 %2138
    %2141 = vset.pattern.permute.xlu0 5
    %2142 = vperm.xlu0 %2141, %v67
    %v2143 = vpop.permute.xlu0 %2142
    %2145 = vset.pattern.permute.xlu0 5
    %2146 = vperm.xlu0 %2145, %v68
    %v2147 = vpop.permute.xlu0 %2146
    %v2153 = vunpack.c.l.b16 %v2129
    %v2154 = vunpack.c.l.b16 %v2130
    %v2155 = vunpack.c.l.b16 %v2131
    %v2156 = vunpack.c.l.b16 %v2132
    %v2157 = vpack.c.b16 %v2154, %v2153
    %v2158 = vpack.c.b16 %v2156, %v2155
    %v2160 = vsel %vm120, %v2157, 0
    %v2163 = vsel %vm120, %v2158, 0
    %2165 = vmatprep.subr.bf16.mxu0 0
    %2166 = vmatpush1.bf16.xpose.msra.mxu0 %v2074
    %2167 = vmatprep.subr.bf16.mxu0 0
    %2168 = vmatpush1.bf16.xpose.msra.mxu0 %v2077
    %2169 = vmatprep.subr.bf16.mxu0 0
    %2170 = vmatpush1.bf16.xpose.msra.mxu0 0
    %2171 = vmatprep.subr.bf16.mxu0 0
    %2172 = vmatpush1.bf16.xpose.msra.mxu0 0
    %2173 = vmatprep.subr.bf16.mxu0 0
    %2174 = vmatpush1.bf16.xpose.msra.mxu0 0
    %2175 = vmatprep.subr.bf16.mxu0 0
    %2176 = vmatpush1.bf16.xpose.msra.mxu0 0
    %2177 = vmatprep.subr.bf16.mxu0 0
    %2178 = vmatpush1.bf16.xpose.msra.mxu0 0
    %2179 = vmatprep.subr.bf16.mxu0 0
    %2180 = vmatpush1.bf16.xpose.msra.mxu0 0
    %2181 = vmatprep.subr.bf16.mxu0 0
    %2182 = vmatpush1.bf16.xpose.msra.mxu0 0
    %2183 = vmatprep.subr.bf16.mxu0 0
    %2184 = vmatpush1.bf16.xpose.msra.mxu0 0
    %2185 = vmatprep.subr.bf16.mxu0 0
    %2186 = vmatpush1.bf16.xpose.msra.mxu0 0
    %2187 = vmatprep.subr.bf16.mxu0 0
    %2188 = vmatpush1.bf16.xpose.msra.mxu0 0
    %2189 = vmatprep.subr.bf16.mxu0 0
    %2190 = vmatpush1.bf16.xpose.msra.mxu0 0
    %2191 = vmatprep.subr.bf16.mxu0 0
    %2192 = vmatpush1.bf16.xpose.msra.mxu0 0
    %2193 = vmatprep.subr.bf16.mxu0 0
    %2194 = vmatpush1.bf16.xpose.msra.mxu0 0
    %2195 = vmatprep.subr.bf16.mxu0 0
    %2196 = vmatpush1.bf16.xpose.msra.mxu0 0
    %2197 = vmatprep.mubr.bf16.mxu0 0
    %2198 = vmatmul.mubr.bf16.gmra.mrb[0].mxu0 %v2160
    %v2199 = vpop.f32.mrb[0].mxu0
    %v2200 = vadd.f32 %v2135, %v2199
    %v2201 = vpop.f32.mrb[0].mxu0
    %v2202 = vpop.f32.mrb[0].mxu0
    %v2203 = vadd.f32 %v2139, %v2202
    %v2204 = vpop.f32.mrb[0].mxu0
    %2205 = vmatprep.mubr.bf16.mxu0 0
    %2206 = vmatmul.mubr.bf16.gmra.mrb[0].mxu0 %v2163
    %v2207 = vpop.f32.mrb[0].mxu0
    %v2208 = vadd.f32 %v2143, %v2207
    %v2209 = vpop.f32.mrb[0].mxu0
    %v2210 = vpop.f32.mrb[0].mxu0
    %v2211 = vadd.f32 %v2147, %v2210
    %v2212 = vpop.f32.mrb[0].mxu0
    %2213 = vdwg.mxu0
    %2214 = vxpose.xlu0.b32.start [1/16] %v2012, 128
    %2215 = vxpose.xlu0.b32.cont [2/16] 0.0, 128
    %2216 = vxpose.xlu0.b32.cont [3/16] 0.0, 128
    %2217 = vxpose.xlu0.b32.cont [4/16] 0.0, 128
    %2218 = vxpose.xlu0.b32.cont [5/16] 0.0, 128
    %2219 = vxpose.xlu0.b32.cont [6/16] 0.0, 128
    %2220 = vxpose.xlu0.b32.cont [7/16] 0.0, 128
    %2221 = vxpose.xlu0.b32.cont [8/16] 0.0, 128
    %2222 = vxpose.xlu0.b32.cont [9/16] 0.0, 128
    %2223 = vxpose.xlu0.b32.cont [10/16] 0.0, 128
    %2224 = vxpose.xlu0.b32.cont [11/16] 0.0, 128
    %2225 = vxpose.xlu0.b32.cont [12/16] 0.0, 128
    %2226 = vxpose.xlu0.b32.cont [13/16] 0.0, 128
    %2227 = vxpose.xlu0.b32.cont [14/16] 0.0, 128
    %2228 = vxpose.xlu0.b32.cont [15/16] 0.0, 128
    %2229 = vxpose.xlu0.b32.end [16/16] 0.0, 128
    %v2230 = vpop.trf.xlu0
    %v2231 = vpop.trf.xlu0
    %v2232 = vpop.trf.xlu0
    %v2233 = vpop.trf.xlu0
    %v2234 = vpop.trf.xlu0
    %v2235 = vpop.trf.xlu0
    %v2236 = vpop.trf.xlu0
    %v2237 = vpop.trf.xlu0
    %v2238 = vpop.trf.xlu0
    %v2239 = vpop.trf.xlu0
    %v2240 = vpop.trf.xlu0
    %v2241 = vpop.trf.xlu0
    %v2242 = vpop.trf.xlu0
    %v2243 = vpop.trf.xlu0
    %v2244 = vpop.trf.xlu0
    %v2245 = vpop.trf.xlu0
    %2246 = vxpose.xlu0.b32.start [1/16] %v2015, 128
    %2247 = vxpose.xlu0.b32.cont [2/16] 0.0, 128
    %2248 = vxpose.xlu0.b32.cont [3/16] 0.0, 128
    %2249 = vxpose.xlu0.b32.cont [4/16] 0.0, 128
    %2250 = vxpose.xlu0.b32.cont [5/16] 0.0, 128
    %2251 = vxpose.xlu0.b32.cont [6/16] 0.0, 128
    %2252 = vxpose.xlu0.b32.cont [7/16] 0.0, 128
    %2253 = vxpose.xlu0.b32.cont [8/16] 0.0, 128
    %2254 = vxpose.xlu0.b32.cont [9/16] 0.0, 128
    %2255 = vxpose.xlu0.b32.cont [10/16] 0.0, 128
    %2256 = vxpose.xlu0.b32.cont [11/16] 0.0, 128
    %2257 = vxpose.xlu0.b32.cont [12/16] 0.0, 128
    %2258 = vxpose.xlu0.b32.cont [13/16] 0.0, 128
    %2259 = vxpose.xlu0.b32.cont [14/16] 0.0, 128
    %2260 = vxpose.xlu0.b32.cont [15/16] 0.0, 128
    %2261 = vxpose.xlu0.b32.end [16/16] 0.0, 128
    %v2262 = vpop.trf.xlu0
    %v2263 = vpop.trf.xlu0
    %v2264 = vpop.trf.xlu0
    %v2265 = vpop.trf.xlu0
    %v2266 = vpop.trf.xlu0
    %v2267 = vpop.trf.xlu0
    %v2268 = vpop.trf.xlu0
    %v2269 = vpop.trf.xlu0
    %v2270 = vpop.trf.xlu0
    %v2271 = vpop.trf.xlu0
    %v2272 = vpop.trf.xlu0
    %v2273 = vpop.trf.xlu0
    %v2274 = vpop.trf.xlu0
    %v2275 = vpop.trf.xlu0
    %v2276 = vpop.trf.xlu0
    %v2277 = vpop.trf.xlu0
    %2278 = vxpose.xlu0.b32.start [1/16] %v2020, 128
    %2279 = vxpose.xlu0.b32.cont [2/16] 0.0, 128
    %2280 = vxpose.xlu0.b32.cont [3/16] 0.0, 128
    %2281 = vxpose.xlu0.b32.cont [4/16] 0.0, 128
    %2282 = vxpose.xlu0.b32.cont [5/16] 0.0, 128
    %2283 = vxpose.xlu0.b32.cont [6/16] 0.0, 128
    %2284 = vxpose.xlu0.b32.cont [7/16] 0.0, 128
    %2285 = vxpose.xlu0.b32.cont [8/16] 0.0, 128
    %2286 = vxpose.xlu0.b32.cont [9/16] 0.0, 128
    %2287 = vxpose.xlu0.b32.cont [10/16] 0.0, 128
    %2288 = vxpose.xlu0.b32.cont [11/16] 0.0, 128
    %2289 = vxpose.xlu0.b32.cont [12/16] 0.0, 128
    %2290 = vxpose.xlu0.b32.cont [13/16] 0.0, 128
    %2291 = vxpose.xlu0.b32.cont [14/16] 0.0, 128
    %2292 = vxpose.xlu0.b32.cont [15/16] 0.0, 128
    %2293 = vxpose.xlu0.b32.end [16/16] 0.0, 128
    %v2294 = vpop.trf.xlu0
    %v2295 = vpop.trf.xlu0
    %v2296 = vpop.trf.xlu0
    %v2297 = vpop.trf.xlu0
    %v2298 = vpop.trf.xlu0
    %v2299 = vpop.trf.xlu0
    %v2300 = vpop.trf.xlu0
    %v2301 = vpop.trf.xlu0
    %v2302 = vpop.trf.xlu0
    %v2303 = vpop.trf.xlu0
    %v2304 = vpop.trf.xlu0
    %v2305 = vpop.trf.xlu0
    %v2306 = vpop.trf.xlu0
    %v2307 = vpop.trf.xlu0
    %v2308 = vpop.trf.xlu0
    %v2309 = vpop.trf.xlu0
    %2310 = vxpose.xlu0.b32.start [1/16] %v2023, 128
    %2311 = vxpose.xlu0.b32.cont [2/16] 0.0, 128
    %2312 = vxpose.xlu0.b32.cont [3/16] 0.0, 128
    %2313 = vxpose.xlu0.b32.cont [4/16] 0.0, 128
    %2314 = vxpose.xlu0.b32.cont [5/16] 0.0, 128
    %2315 = vxpose.xlu0.b32.cont [6/16] 0.0, 128
    %2316 = vxpose.xlu0.b32.cont [7/16] 0.0, 128
    %2317 = vxpose.xlu0.b32.cont [8/16] 0.0, 128
    %2318 = vxpose.xlu0.b32.cont [9/16] 0.0, 128
    %2319 = vxpose.xlu0.b32.cont [10/16] 0.0, 128
    %2320 = vxpose.xlu0.b32.cont [11/16] 0.0, 128
    %2321 = vxpose.xlu0.b32.cont [12/16] 0.0, 128
    %2322 = vxpose.xlu0.b32.cont [13/16] 0.0, 128
    %2323 = vxpose.xlu0.b32.cont [14/16] 0.0, 128
    %2324 = vxpose.xlu0.b32.cont [15/16] 0.0, 128
    %2325 = vxpose.xlu0.b32.end [16/16] 0.0, 128
    %v2326 = vpop.trf.xlu0
    %v2327 = vpop.trf.xlu0
    %v2328 = vpop.trf.xlu0
    %v2329 = vpop.trf.xlu0
    %v2330 = vpop.trf.xlu0
    %v2331 = vpop.trf.xlu0
    %v2332 = vpop.trf.xlu0
    %v2333 = vpop.trf.xlu0
    %v2334 = vpop.trf.xlu0
    %v2335 = vpop.trf.xlu0
    %v2336 = vpop.trf.xlu0
    %v2337 = vpop.trf.xlu0
    %v2338 = vpop.trf.xlu0
    %v2339 = vpop.trf.xlu0
    %v2340 = vpop.trf.xlu0
    %v2341 = vpop.trf.xlu0
    %v2342 = vpack.c.bf16 %v2230, %v2230
    %v2343 = vpack.c.bf16 %v2262, %v2262
    %v2344 = vpack.c.bf16 %v2294, %v2294
    %v2345 = vpack.c.bf16 %v2326, %v2326
    %v2346 = vpack.c.bf16 %v2114, %v2114
    %v2347 = vpack.c.bf16 %v2117, %v2117
    %v2348 = vpack.c.bf16 %v2122, %v2122
    %v2349 = vpack.c.bf16 %v2125, %v2125
    %v2351 = vsel %vm487, %v2342, 0
    %v2354 = vsel %vm491, %v2346, 0
    %2356 = vmatprep.subr.bf16.mxu0 0
    %2357 = vmatpush1.bf16.msra.mxu0 %v2354
    %2358 = vmatprep.subr.bf16.mxu0 0
    %2359 = vmatpush1.bf16.msra.mxu0 0
    %2360 = vmatprep.subr.bf16.mxu0 0
    %2361 = vmatpush1.bf16.msra.mxu0 0
    %2362 = vmatprep.subr.bf16.mxu0 0
    %2363 = vmatpush1.bf16.msra.mxu0 0
    %2364 = vmatprep.subr.bf16.mxu0 0
    %2365 = vmatpush1.bf16.msra.mxu0 0
    %2366 = vmatprep.subr.bf16.mxu0 0
    %2367 = vmatpush1.bf16.msra.mxu0 0
    %2368 = vmatprep.subr.bf16.mxu0 0
    %2369 = vmatpush1.bf16.msra.mxu0 0
    %2370 = vmatprep.subr.bf16.mxu0 0
    %2371 = vmatpush1.bf16.msra.mxu0 0
    %2372 = vmatprep.subr.bf16.mxu0 0
    %2373 = vmatpush1.bf16.msra.mxu0 0
    %2374 = vmatprep.subr.bf16.mxu0 0
    %2375 = vmatpush1.bf16.msra.mxu0 0
    %2376 = vmatprep.subr.bf16.mxu0 0
    %2377 = vmatpush1.bf16.msra.mxu0 0
    %2378 = vmatprep.subr.bf16.mxu0 0
    %2379 = vmatpush1.bf16.msra.mxu0 0
    %2380 = vmatprep.subr.bf16.mxu0 0
    %2381 = vmatpush1.bf16.msra.mxu0 0
    %2382 = vmatprep.subr.bf16.mxu0 0
    %2383 = vmatpush1.bf16.msra.mxu0 0
    %2384 = vmatprep.subr.bf16.mxu0 0
    %2385 = vmatpush1.bf16.msra.mxu0 0
    %2386 = vmatprep.subr.bf16.mxu0 0
    %2387 = vmatpush1.bf16.msra.mxu0 0
    %2388 = vmatprep.mubr.bf16.mxu0 0
    %2389 = vmatmul.mubr.bf16.gmra.mrb[0].mxu0 %v2351
    %v2390 = vpop.f32.mrb[0].mxu0
    %v2391 = vadd.f32 0.0, %v2390
    %v2392 = vpop.f32.mrb[0].mxu0
    %v2393 = vpop.f32.mrb[0].mxu0
    %v2394 = vpop.f32.mrb[0].mxu0
    %2395 = vdwg.mxu0
    %v2397 = vsel %vm487, %v2343, 0
    %v2400 = vsel %vm491, %v2347, 0
    %2402 = vmatprep.subr.bf16.mxu0 0
    %2403 = vmatpush1.bf16.msra.mxu0 %v2400
    %2404 = vmatprep.subr.bf16.mxu0 0
    %2405 = vmatpush1.bf16.msra.mxu0 0
    %2406 = vmatprep.subr.bf16.mxu0 0
    %2407 = vmatpush1.bf16.msra.mxu0 0
    %2408 = vmatprep.subr.bf16.mxu0 0
    %2409 = vmatpush1.bf16.msra.mxu0 0
    %2410 = vmatprep.subr.bf16.mxu0 0
    %2411 = vmatpush1.bf16.msra.mxu0 0
    %2412 = vmatprep.subr.bf16.mxu0 0
    %2413 = vmatpush1.bf16.msra.mxu0 0
    %2414 = vmatprep.subr.bf16.mxu0 0
    %2415 = vmatpush1.bf16.msra.mxu0 0
    %2416 = vmatprep.subr.bf16.mxu0 0
    %2417 = vmatpush1.bf16.msra.mxu0 0
    %2418 = vmatprep.subr.bf16.mxu0 0
    %2419 = vmatpush1.bf16.msra.mxu0 0
    %2420 = vmatprep.subr.bf16.mxu0 0
    %2421 = vmatpush1.bf16.msra.mxu0 0
    %2422 = vmatprep.subr.bf16.mxu0 0
    %2423 = vmatpush1.bf16.msra.mxu0 0
    %2424 = vmatprep.subr.bf16.mxu0 0
    %2425 = vmatpush1.bf16.msra.mxu0 0
    %2426 = vmatprep.subr.bf16.mxu0 0
    %2427 = vmatpush1.bf16.msra.mxu0 0
    %2428 = vmatprep.subr.bf16.mxu0 0
    %2429 = vmatpush1.bf16.msra.mxu0 0
    %2430 = vmatprep.subr.bf16.mxu0 0
    %2431 = vmatpush1.bf16.msra.mxu0 0
    %2432 = vmatprep.subr.bf16.mxu0 0
    %2433 = vmatpush1.bf16.msra.mxu0 0
    %2434 = vmatprep.mubr.bf16.mxu0 0
    %2435 = vmatmul.mubr.bf16.gmra.mrb[0].mxu0 %v2397
    %v2436 = vpop.f32.mrb[0].mxu0
    %v2437 = vadd.f32 0.0, %v2436
    %v2438 = vpop.f32.mrb[0].mxu0
    %v2439 = vpop.f32.mrb[0].mxu0
    %v2440 = vpop.f32.mrb[0].mxu0
    %2441 = vdwg.mxu0
    %v2443 = vsel %vm487, %v2344, 0
    %v2446 = vsel %vm491, %v2348, 0
    %2448 = vmatprep.subr.bf16.mxu0 0
    %2449 = vmatpush1.bf16.msra.mxu0 %v2446
    %2450 = vmatprep.subr.bf16.mxu0 0
    %2451 = vmatpush1.bf16.msra.mxu0 0
    %2452 = vmatprep.subr.bf16.mxu0 0
    %2453 = vmatpush1.bf16.msra.mxu0 0
    %2454 = vmatprep.subr.bf16.mxu0 0
    %2455 = vmatpush1.bf16.msra.mxu0 0
    %2456 = vmatprep.subr.bf16.mxu0 0
    %2457 = vmatpush1.bf16.msra.mxu0 0
    %2458 = vmatprep.subr.bf16.mxu0 0
    %2459 = vmatpush1.bf16.msra.mxu0 0
    %2460 = vmatprep.subr.bf16.mxu0 0
    %2461 = vmatpush1.bf16.msra.mxu0 0
    %2462 = vmatprep.subr.bf16.mxu0 0
    %2463 = vmatpush1.bf16.msra.mxu0 0
    %2464 = vmatprep.subr.bf16.mxu0 0
    %2465 = vmatpush1.bf16.msra.mxu0 0
    %2466 = vmatprep.subr.bf16.mxu0 0
    %2467 = vmatpush1.bf16.msra.mxu0 0
    %2468 = vmatprep.subr.bf16.mxu0 0
    %2469 = vmatpush1.bf16.msra.mxu0 0
    %2470 = vmatprep.subr.bf16.mxu0 0
    %2471 = vmatpush1.bf16.msra.mxu0 0
    %2472 = vmatprep.subr.bf16.mxu0 0
    %2473 = vmatpush1.bf16.msra.mxu0 0
    %2474 = vmatprep.subr.bf16.mxu0 0
    %2475 = vmatpush1.bf16.msra.mxu0 0
    %2476 = vmatprep.subr.bf16.mxu0 0
    %2477 = vmatpush1.bf16.msra.mxu0 0
    %2478 = vmatprep.subr.bf16.mxu0 0
    %2479 = vmatpush1.bf16.msra.mxu0 0
    %2480 = vmatprep.mubr.bf16.mxu0 0
    %2481 = vmatmul.mubr.bf16.gmra.mrb[0].mxu0 %v2443
    %v2482 = vpop.f32.mrb[0].mxu0
    %v2483 = vadd.f32 0.0, %v2482
    %v2484 = vpop.f32.mrb[0].mxu0
    %v2485 = vpop.f32.mrb[0].mxu0
    %v2486 = vpop.f32.mrb[0].mxu0
    %2487 = vdwg.mxu0
    %v2489 = vsel %vm487, %v2345, 0
    %v2492 = vsel %vm491, %v2349, 0
    %2494 = vmatprep.subr.bf16.mxu0 0
    %2495 = vmatpush1.bf16.msra.mxu0 %v2492
    %2496 = vmatprep.subr.bf16.mxu0 0
    %2497 = vmatpush1.bf16.msra.mxu0 0
    %2498 = vmatprep.subr.bf16.mxu0 0
    %2499 = vmatpush1.bf16.msra.mxu0 0
    %2500 = vmatprep.subr.bf16.mxu0 0
    %2501 = vmatpush1.bf16.msra.mxu0 0
    %2502 = vmatprep.subr.bf16.mxu0 0
    %2503 = vmatpush1.bf16.msra.mxu0 0
    %2504 = vmatprep.subr.bf16.mxu0 0
    %2505 = vmatpush1.bf16.msra.mxu0 0
    %2506 = vmatprep.subr.bf16.mxu0 0
    %2507 = vmatpush1.bf16.msra.mxu0 0
    %2508 = vmatprep.subr.bf16.mxu0 0
    %2509 = vmatpush1.bf16.msra.mxu0 0
    %2510 = vmatprep.subr.bf16.mxu0 0
    %2511 = vmatpush1.bf16.msra.mxu0 0
    %2512 = vmatprep.subr.bf16.mxu0 0
    %2513 = vmatpush1.bf16.msra.mxu0 0
    %2514 = vmatprep.subr.bf16.mxu0 0
    %2515 = vmatpush1.bf16.msra.mxu0 0
    %2516 = vmatprep.subr.bf16.mxu0 0
    %2517 = vmatpush1.bf16.msra.mxu0 0
    %2518 = vmatprep.subr.bf16.mxu0 0
    %2519 = vmatpush1.bf16.msra.mxu0 0
    %2520 = vmatprep.subr.bf16.mxu0 0
    %2521 = vmatpush1.bf16.msra.mxu0 0
    %2522 = vmatprep.subr.bf16.mxu0 0
    %2523 = vmatpush1.bf16.msra.mxu0 0
    %2524 = vmatprep.subr.bf16.mxu0 0
    %2525 = vmatpush1.bf16.msra.mxu0 0
    %2526 = vmatprep.mubr.bf16.mxu0 0
    %2527 = vmatmul.mubr.bf16.gmra.mrb[0].mxu0 %v2489
    %v2528 = vpop.f32.mrb[0].mxu0
    %v2529 = vadd.f32 0.0, %v2528
    %v2530 = vpop.f32.mrb[0].mxu0
    %v2531 = vpop.f32.mrb[0].mxu0
    %v2532 = vpop.f32.mrb[0].mxu0
    %2533 = vdwg.mxu0
    %v2534 = vmul.f32 %v2391, 0.35355338
    %v2535 = vmul.f32 %v2437, 0.35355338
    %v2536 = vmul.f32 %v2483, 0.35355338
    %v2537 = vmul.f32 %v2529, 0.35355338
    %vm2538 = vcmask 130048
    %v2539 = vsel %vm2538, %v2534, -inf
    %2540 = vmax.xlane.f32.xlu0 %v2539
    %v2541 = vpop.xlane.xlu0 %2540
    %v2542 = vsel %vm2538, %v2535, -inf
    %2543 = vmax.xlane.f32.xlu0 %v2542
    %v2544 = vpop.xlane.xlu0 %2543
    %v2545 = vsel %vm2538, %v2536, -inf
    %2546 = vmax.xlane.f32.xlu0 %v2545
    %v2547 = vpop.xlane.xlu0 %2546
    %v2548 = vsel %vm2538, %v2537, -inf
    %2549 = vmax.xlane.f32.xlu0 %v2548
    %v2550 = vpop.xlane.xlu0 %2549
    %v2551 = vsub.f32 %v2534, %v2541
    %v2552 = vsub.f32 %v2535, %v2544
    %v2553 = vsub.f32 %v2536, %v2547
    %v2554 = vsub.f32 %v2537, %v2550
    %v2555 = vmul.f32 %v2551, 1.442695
    %v2556 = vpow.pop %v2555
    %v2557 = vmul.f32 %v2552, 1.442695
    %v2558 = vpow.pop %v2557
    %v2559 = vmul.f32 %v2553, 1.442695
    %v2560 = vpow.pop %v2559
    %v2561 = vmul.f32 %v2554, 1.442695
    %v2562 = vpow.pop %v2561
    %v2563 = vsel %vm2538, %v2556, 0.0
    %2564 = vadd.xlane.f32.xlu0 %v2563
    %v2565 = vpop.xlane.xlu0 %2564
    %v2566 = vsel %vm2538, %v2558, 0.0
    %2567 = vadd.xlane.f32.xlu0 %v2566
    %v2568 = vpop.xlane.xlu0 %2567
    %v2569 = vsel %vm2538, %v2560, 0.0
    %2570 = vadd.xlane.f32.xlu0 %v2569
    %v2571 = vpop.xlane.xlu0 %2570
    %v2572 = vsel %vm2538, %v2562, 0.0
    %2573 = vadd.xlane.f32.xlu0 %v2572
    %v2574 = vpop.xlane.xlu0 %2573
    %v2575 = vrcp.pop %v2565
    %v2576 = vrcp.pop %v2568
    %v2577 = vrcp.pop %v2571
    %v2578 = vrcp.pop %v2574
    %v2579 = vmul.f32 %v2556, %v2575
    %v2580 = vmul.f32 %v2558, %v2576
    %v2581 = vmul.f32 %v2560, %v2577
    %v2582 = vmul.f32 %v2562, %v2578
    %v2583 = vpack.c.bf16 %v2579, %v2579
    %v2584 = vpack.c.bf16 %v2580, %v2580
    %v2585 = vpack.c.bf16 %v2581, %v2581
    %v2586 = vpack.c.bf16 %v2582, %v2582
    %v2587 = vpack.c.bf16 %v2200, %v2200
    %v2588 = vpack.c.bf16 %v2203, %v2203
    %v2589 = vpack.c.bf16 %v2208, %v2208
    %v2590 = vpack.c.bf16 %v2211, %v2211
    %v2592 = vsel %vm2538, %v2583, 0
    %v2595 = vsel %vm2538, %v2587, 0
    %2597 = vmatprep.subr.bf16.mxu0 0
    %2598 = vmatpush1.bf16.xpose.msra.mxu0 %v2595
    %2599 = vmatprep.subr.bf16.mxu0 0
    %2600 = vmatpush1.bf16.xpose.msra.mxu0 0
    %2601 = vmatprep.subr.bf16.mxu0 0
    %2602 = vmatpush1.bf16.xpose.msra.mxu0 0
    %2603 = vmatprep.subr.bf16.mxu0 0
    %2604 = vmatpush1.bf16.xpose.msra.mxu0 0
    %2605 = vmatprep.subr.bf16.mxu0 0
    %2606 = vmatpush1.bf16.xpose.msra.mxu0 0
    %2607 = vmatprep.subr.bf16.mxu0 0
    %2608 = vmatpush1.bf16.xpose.msra.mxu0 0
    %2609 = vmatprep.subr.bf16.mxu0 0
    %2610 = vmatpush1.bf16.xpose.msra.mxu0 0
    %2611 = vmatprep.subr.bf16.mxu0 0
    %2612 = vmatpush1.bf16.xpose.msra.mxu0 0
    %2613 = vmatprep.subr.bf16.mxu0 0
    %2614 = vmatpush1.bf16.xpose.msra.mxu0 0
    %2615 = vmatprep.subr.bf16.mxu0 0
    %2616 = vmatpush1.bf16.xpose.msra.mxu0 0
    %2617 = vmatprep.subr.bf16.mxu0 0
    %2618 = vmatpush1.bf16.xpose.msra.mxu0 0
    %2619 = vmatprep.subr.bf16.mxu0 0
    %2620 = vmatpush1.bf16.xpose.msra.mxu0 0
    %2621 = vmatprep.subr.bf16.mxu0 0
    %2622 = vmatpush1.bf16.xpose.msra.mxu0 0
    %2623 = vmatprep.subr.bf16.mxu0 0
    %2624 = vmatpush1.bf16.xpose.msra.mxu0 0
    %2625 = vmatprep.subr.bf16.mxu0 0
    %2626 = vmatpush1.bf16.xpose.msra.mxu0 0
    %2627 = vmatprep.subr.bf16.mxu0 0
    %2628 = vmatpush1.bf16.xpose.msra.mxu0 0
    %2629 = vmatprep.mubr.bf16.mxu0 0
    %2630 = vmatmul.mubr.bf16.gmra.mrb[0].mxu0 %v2592
    %v2631 = vpop.f32.mrb[0].mxu0
    %v2632 = vadd.f32 0.0, %v2631
    %v2633 = vpop.f32.mrb[0].mxu0
    %v2634 = vpop.f32.mrb[0].mxu0
    %v2635 = vpop.f32.mrb[0].mxu0
    %2636 = vdwg.mxu0
    %v2638 = vsel %vm2538, %v2584, 0
    %v2641 = vsel %vm2538, %v2588, 0
    %2643 = vmatprep.subr.bf16.mxu0 0
    %2644 = vmatpush1.bf16.xpose.msra.mxu0 %v2641
    %2645 = vmatprep.subr.bf16.mxu0 0
    %2646 = vmatpush1.bf16.xpose.msra.mxu0 0
    %2647 = vmatprep.subr.bf16.mxu0 0
    %2648 = vmatpush1.bf16.xpose.msra.mxu0 0
    %2649 = vmatprep.subr.bf16.mxu0 0
    %2650 = vmatpush1.bf16.xpose.msra.mxu0 0
    %2651 = vmatprep.subr.bf16.mxu0 0
    %2652 = vmatpush1.bf16.xpose.msra.mxu0 0
    %2653 = vmatprep.subr.bf16.mxu0 0
    %2654 = vmatpush1.bf16.xpose.msra.mxu0 0
    %2655 = vmatprep.subr.bf16.mxu0 0
    %2656 = vmatpush1.bf16.xpose.msra.mxu0 0
    %2657 = vmatprep.subr.bf16.mxu0 0
    %2658 = vmatpush1.bf16.xpose.msra.mxu0 0
    %2659 = vmatprep.subr.bf16.mxu0 0
    %2660 = vmatpush1.bf16.xpose.msra.mxu0 0
    %2661 = vmatprep.subr.bf16.mxu0 0
    %2662 = vmatpush1.bf16.xpose.msra.mxu0 0
    %2663 = vmatprep.subr.bf16.mxu0 0
    %2664 = vmatpush1.bf16.xpose.msra.mxu0 0
    %2665 = vmatprep.subr.bf16.mxu0 0
    %2666 = vmatpush1.bf16.xpose.msra.mxu0 0
    %2667 = vmatprep.subr.bf16.mxu0 0
    %2668 = vmatpush1.bf16.xpose.msra.mxu0 0
    %2669 = vmatprep.subr.bf16.mxu0 0
    %2670 = vmatpush1.bf16.xpose.msra.mxu0 0
    %2671 = vmatprep.subr.bf16.mxu0 0
    %2672 = vmatpush1.bf16.xpose.msra.mxu0 0
    %2673 = vmatprep.subr.bf16.mxu0 0
    %2674 = vmatpush1.bf16.xpose.msra.mxu0 0
    %2675 = vmatprep.mubr.bf16.mxu0 0
    %2676 = vmatmul.mubr.bf16.gmra.mrb[0].mxu0 %v2638
    %v2677 = vpop.f32.mrb[0].mxu0
    %v2678 = vadd.f32 0.0, %v2677
    %v2679 = vpop.f32.mrb[0].mxu0
    %v2680 = vpop.f32.mrb[0].mxu0
    %v2681 = vpop.f32.mrb[0].mxu0
    %2682 = vdwg.mxu0
    %v2684 = vsel %vm2538, %v2585, 0
    %v2687 = vsel %vm2538, %v2589, 0
    %2689 = vmatprep.subr.bf16.mxu0 0
    %2690 = vmatpush1.bf16.xpose.msra.mxu0 %v2687
    %2691 = vmatprep.subr.bf16.mxu0 0
    %2692 = vmatpush1.bf16.xpose.msra.mxu0 0
    %2693 = vmatprep.subr.bf16.mxu0 0
    %2694 = vmatpush1.bf16.xpose.msra.mxu0 0
    %2695 = vmatprep.subr.bf16.mxu0 0
    %2696 = vmatpush1.bf16.xpose.msra.mxu0 0
    %2697 = vmatprep.subr.bf16.mxu0 0
    %2698 = vmatpush1.bf16.xpose.msra.mxu0 0
    %2699 = vmatprep.subr.bf16.mxu0 0
    %2700 = vmatpush1.bf16.xpose.msra.mxu0 0
    %2701 = vmatprep.subr.bf16.mxu0 0
    %2702 = vmatpush1.bf16.xpose.msra.mxu0 0
    %2703 = vmatprep.subr.bf16.mxu0 0
    %2704 = vmatpush1.bf16.xpose.msra.mxu0 0
    %2705 = vmatprep.subr.bf16.mxu0 0
    %2706 = vmatpush1.bf16.xpose.msra.mxu0 0
    %2707 = vmatprep.subr.bf16.mxu0 0
    %2708 = vmatpush1.bf16.xpose.msra.mxu0 0
    %2709 = vmatprep.subr.bf16.mxu0 0
    %2710 = vmatpush1.bf16.xpose.msra.mxu0 0
    %2711 = vmatprep.subr.bf16.mxu0 0
    %2712 = vmatpush1.bf16.xpose.msra.mxu0 0
    %2713 = vmatprep.subr.bf16.mxu0 0
    %2714 = vmatpush1.bf16.xpose.msra.mxu0 0
    %2715 = vmatprep.subr.bf16.mxu0 0
    %2716 = vmatpush1.bf16.xpose.msra.mxu0 0
    %2717 = vmatprep.subr.bf16.mxu0 0
    %2718 = vmatpush1.bf16.xpose.msra.mxu0 0
    %2719 = vmatprep.subr.bf16.mxu0 0
    %2720 = vmatpush1.bf16.xpose.msra.mxu0 0
    %2721 = vmatprep.mubr.bf16.mxu0 0
    %2722 = vmatmul.mubr.bf16.gmra.mrb[0].mxu0 %v2684
    %v2723 = vpop.f32.mrb[0].mxu0
    %v2724 = vadd.f32 0.0, %v2723
    %v2725 = vpop.f32.mrb[0].mxu0
    %v2726 = vpop.f32.mrb[0].mxu0
    %v2727 = vpop.f32.mrb[0].mxu0
    %2728 = vdwg.mxu0
    %v2730 = vsel %vm2538, %v2586, 0
    %v2733 = vsel %vm2538, %v2590, 0
    %2735 = vmatprep.subr.bf16.mxu0 0
    %2736 = vmatpush1.bf16.xpose.msra.mxu0 %v2733
    %2737 = vmatprep.subr.bf16.mxu0 0
    %2738 = vmatpush1.bf16.xpose.msra.mxu0 0
    %2739 = vmatprep.subr.bf16.mxu0 0
    %2740 = vmatpush1.bf16.xpose.msra.mxu0 0
    %2741 = vmatprep.subr.bf16.mxu0 0
    %2742 = vmatpush1.bf16.xpose.msra.mxu0 0
    %2743 = vmatprep.subr.bf16.mxu0 0
    %2744 = vmatpush1.bf16.xpose.msra.mxu0 0
    %2745 = vmatprep.subr.bf16.mxu0 0
    %2746 = vmatpush1.bf16.xpose.msra.mxu0 0
    %2747 = vmatprep.subr.bf16.mxu0 0
    %2748 = vmatpush1.bf16.xpose.msra.mxu0 0
    %2749 = vmatprep.subr.bf16.mxu0 0
    %2750 = vmatpush1.bf16.xpose.msra.mxu0 0
    %2751 = vmatprep.subr.bf16.mxu0 0
    %2752 = vmatpush1.bf16.xpose.msra.mxu0 0
    %2753 = vmatprep.subr.bf16.mxu0 0
    %2754 = vmatpush1.bf16.xpose.msra.mxu0 0
    %2755 = vmatprep.subr.bf16.mxu0 0
    %2756 = vmatpush1.bf16.xpose.msra.mxu0 0
    %2757 = vmatprep.subr.bf16.mxu0 0
    %2758 = vmatpush1.bf16.xpose.msra.mxu0 0
    %2759 = vmatprep.subr.bf16.mxu0 0
    %2760 = vmatpush1.bf16.xpose.msra.mxu0 0
    %2761 = vmatprep.subr.bf16.mxu0 0
    %2762 = vmatpush1.bf16.xpose.msra.mxu0 0
    %2763 = vmatprep.subr.bf16.mxu0 0
    %2764 = vmatpush1.bf16.xpose.msra.mxu0 0
    %2765 = vmatprep.subr.bf16.mxu0 0
    %2766 = vmatpush1.bf16.xpose.msra.mxu0 0
    %2767 = vmatprep.mubr.bf16.mxu0 0
    %2768 = vmatmul.mubr.bf16.gmra.mrb[0].mxu0 %v2730
    %v2769 = vpop.f32.mrb[0].mxu0
    %v2770 = vadd.f32 0.0, %v2769
    %v2771 = vpop.f32.mrb[0].mxu0
    %v2772 = vpop.f32.mrb[0].mxu0
    %v2773 = vpop.f32.mrb[0].mxu0
    %2774 = vdwg.mxu0
    %v2775 = vpack.c.bf16 %v2632, %v2632
    %v2776 = vpack.c.bf16 %v2678, %v2678
    %v2777 = vpack.c.bf16 %v2724, %v2724
    %v2778 = vpack.c.bf16 %v2770, %v2770
    %v2780 = vsel %vm487, %v2775, 0
    %v2783 = vsel %vm491, %v1933, 0
    %2785 = vmatprep.subr.bf16.mxu0 0
    %2786 = vmatpush1.bf16.msra.mxu0 %v2783
    %2787 = vmatprep.subr.bf16.mxu0 0
    %2788 = vmatpush1.bf16.msra.mxu0 0
    %2789 = vmatprep.subr.bf16.mxu0 0
    %2790 = vmatpush1.bf16.msra.mxu0 0
    %2791 = vmatprep.subr.bf16.mxu0 0
    %2792 = vmatpush1.bf16.msra.mxu0 0
    %2793 = vmatprep.subr.bf16.mxu0 0
    %2794 = vmatpush1.bf16.msra.mxu0 0
    %2795 = vmatprep.subr.bf16.mxu0 0
    %2796 = vmatpush1.bf16.msra.mxu0 0
    %2797 = vmatprep.subr.bf16.mxu0 0
    %2798 = vmatpush1.bf16.msra.mxu0 0
    %2799 = vmatprep.subr.bf16.mxu0 0
    %2800 = vmatpush1.bf16.msra.mxu0 0
    %2801 = vmatprep.subr.bf16.mxu0 0
    %2802 = vmatpush1.bf16.msra.mxu0 0
    %2803 = vmatprep.subr.bf16.mxu0 0
    %2804 = vmatpush1.bf16.msra.mxu0 0
    %2805 = vmatprep.subr.bf16.mxu0 0
    %2806 = vmatpush1.bf16.msra.mxu0 0
    %2807 = vmatprep.subr.bf16.mxu0 0
    %2808 = vmatpush1.bf16.msra.mxu0 0
    %2809 = vmatprep.subr.bf16.mxu0 0
    %2810 = vmatpush1.bf16.msra.mxu0 0
    %2811 = vmatprep.subr.bf16.mxu0 0
    %2812 = vmatpush1.bf16.msra.mxu0 0
    %2813 = vmatprep.subr.bf16.mxu0 0
    %2814 = vmatpush1.bf16.msra.mxu0 0
    %2815 = vmatprep.subr.bf16.mxu0 0
    %2816 = vmatpush1.bf16.msra.mxu0 0
    %2817 = vmatprep.mubr.bf16.mxu0 0
    %2818 = vmatmul.mubr.bf16.gmra.mrb[0].mxu0 %v2780
    %v2819 = vpop.f32.mrb[0].mxu0
    %v2820 = vadd.f32 0.0, %v2819
    %v2821 = vpop.f32.mrb[0].mxu0
    %v2822 = vpop.f32.mrb[0].mxu0
    %v2823 = vpop.f32.mrb[0].mxu0
    %2824 = vdwg.mxu0
    %v2826 = vsel %vm487, %v2776, 0
    %v2829 = vsel %vm491, %v1934, 0
    %2831 = vmatprep.subr.bf16.mxu0 0
    %2832 = vmatpush1.bf16.msra.mxu0 %v2829
    %2833 = vmatprep.subr.bf16.mxu0 0
    %2834 = vmatpush1.bf16.msra.mxu0 0
    %2835 = vmatprep.subr.bf16.mxu0 0
    %2836 = vmatpush1.bf16.msra.mxu0 0
    %2837 = vmatprep.subr.bf16.mxu0 0
    %2838 = vmatpush1.bf16.msra.mxu0 0
    %2839 = vmatprep.subr.bf16.mxu0 0
    %2840 = vmatpush1.bf16.msra.mxu0 0
    %2841 = vmatprep.subr.bf16.mxu0 0
    %2842 = vmatpush1.bf16.msra.mxu0 0
    %2843 = vmatprep.subr.bf16.mxu0 0
    %2844 = vmatpush1.bf16.msra.mxu0 0
    %2845 = vmatprep.subr.bf16.mxu0 0
    %2846 = vmatpush1.bf16.msra.mxu0 0
    %2847 = vmatprep.subr.bf16.mxu0 0
    %2848 = vmatpush1.bf16.msra.mxu0 0
    %2849 = vmatprep.subr.bf16.mxu0 0
    %2850 = vmatpush1.bf16.msra.mxu0 0
    %2851 = vmatprep.subr.bf16.mxu0 0
    %2852 = vmatpush1.bf16.msra.mxu0 0
    %2853 = vmatprep.subr.bf16.mxu0 0
    %2854 = vmatpush1.bf16.msra.mxu0 0
    %2855 = vmatprep.subr.bf16.mxu0 0
    %2856 = vmatpush1.bf16.msra.mxu0 0
    %2857 = vmatprep.subr.bf16.mxu0 0
    %2858 = vmatpush1.bf16.msra.mxu0 0
    %2859 = vmatprep.subr.bf16.mxu0 0
    %2860 = vmatpush1.bf16.msra.mxu0 0
    %2861 = vmatprep.subr.bf16.mxu0 0
    %2862 = vmatpush1.bf16.msra.mxu0 0
    %2863 = vmatprep.mubr.bf16.mxu0 0
    %2864 = vmatmul.mubr.bf16.gmra.mrb[0].mxu0 %v2826
    %v2865 = vpop.f32.mrb[0].mxu0
    %v2866 = vadd.f32 0.0, %v2865
    %v2867 = vpop.f32.mrb[0].mxu0
    %v2868 = vpop.f32.mrb[0].mxu0
    %v2869 = vpop.f32.mrb[0].mxu0
    %2870 = vdwg.mxu0
    %v2872 = vsel %vm487, %v2777, 0
    %v2875 = vsel %vm491, %v1935, 0
    %2877 = vmatprep.subr.bf16.mxu0 0
    %2878 = vmatpush1.bf16.msra.mxu0 %v2875
    %2879 = vmatprep.subr.bf16.mxu0 0
    %2880 = vmatpush1.bf16.msra.mxu0 0
    %2881 = vmatprep.subr.bf16.mxu0 0
    %2882 = vmatpush1.bf16.msra.mxu0 0
    %2883 = vmatprep.subr.bf16.mxu0 0
    %2884 = vmatpush1.bf16.msra.mxu0 0
    %2885 = vmatprep.subr.bf16.mxu0 0
    %2886 = vmatpush1.bf16.msra.mxu0 0
    %2887 = vmatprep.subr.bf16.mxu0 0
    %2888 = vmatpush1.bf16.msra.mxu0 0
    %2889 = vmatprep.subr.bf16.mxu0 0
    %2890 = vmatpush1.bf16.msra.mxu0 0
    %2891 = vmatprep.subr.bf16.mxu0 0
    %2892 = vmatpush1.bf16.msra.mxu0 0
    %2893 = vmatprep.subr.bf16.mxu0 0
    %2894 = vmatpush1.bf16.msra.mxu0 0
    %2895 = vmatprep.subr.bf16.mxu0 0
    %2896 = vmatpush1.bf16.msra.mxu0 0
    %2897 = vmatprep.subr.bf16.mxu0 0
    %2898 = vmatpush1.bf16.msra.mxu0 0
    %2899 = vmatprep.subr.bf16.mxu0 0
    %2900 = vmatpush1.bf16.msra.mxu0 0
    %2901 = vmatprep.subr.bf16.mxu0 0
    %2902 = vmatpush1.bf16.msra.mxu0 0
    %2903 = vmatprep.subr.bf16.mxu0 0
    %2904 = vmatpush1.bf16.msra.mxu0 0
    %2905 = vmatprep.subr.bf16.mxu0 0
    %2906 = vmatpush1.bf16.msra.mxu0 0
    %2907 = vmatprep.subr.bf16.mxu0 0
    %2908 = vmatpush1.bf16.msra.mxu0 0
    %2909 = vmatprep.mubr.bf16.mxu0 0
    %2910 = vmatmul.mubr.bf16.gmra.mrb[0].mxu0 %v2872
    %v2911 = vpop.f32.mrb[0].mxu0
    %v2912 = vadd.f32 0.0, %v2911
    %v2913 = vpop.f32.mrb[0].mxu0
    %v2914 = vpop.f32.mrb[0].mxu0
    %v2915 = vpop.f32.mrb[0].mxu0
    %2916 = vdwg.mxu0
    %v2918 = vsel %vm487, %v2778, 0
    %v2921 = vsel %vm491, %v1936, 0
    %2923 = vmatprep.subr.bf16.mxu0 0
    %2924 = vmatpush1.bf16.msra.mxu0 %v2921
    %2925 = vmatprep.subr.bf16.mxu0 0
    %2926 = vmatpush1.bf16.msra.mxu0 0
    %2927 = vmatprep.subr.bf16.mxu0 0
    %2928 = vmatpush1.bf16.msra.mxu0 0
    %2929 = vmatprep.subr.bf16.mxu0 0
    %2930 = vmatpush1.bf16.msra.mxu0 0
    %2931 = vmatprep.subr.bf16.mxu0 0
    %2932 = vmatpush1.bf16.msra.mxu0 0
    %2933 = vmatprep.subr.bf16.mxu0 0
    %2934 = vmatpush1.bf16.msra.mxu0 0
    %2935 = vmatprep.subr.bf16.mxu0 0
    %2936 = vmatpush1.bf16.msra.mxu0 0
    %2937 = vmatprep.subr.bf16.mxu0 0
    %2938 = vmatpush1.bf16.msra.mxu0 0
    %2939 = vmatprep.subr.bf16.mxu0 0
    %2940 = vmatpush1.bf16.msra.mxu0 0
    %2941 = vmatprep.subr.bf16.mxu0 0
    %2942 = vmatpush1.bf16.msra.mxu0 0
    %2943 = vmatprep.subr.bf16.mxu0 0
    %2944 = vmatpush1.bf16.msra.mxu0 0
    %2945 = vmatprep.subr.bf16.mxu0 0
    %2946 = vmatpush1.bf16.msra.mxu0 0
    %2947 = vmatprep.subr.bf16.mxu0 0
    %2948 = vmatpush1.bf16.msra.mxu0 0
    %2949 = vmatprep.subr.bf16.mxu0 0
    %2950 = vmatpush1.bf16.msra.mxu0 0
    %2951 = vmatprep.subr.bf16.mxu0 0
    %2952 = vmatpush1.bf16.msra.mxu0 0
    %2953 = vmatprep.subr.bf16.mxu0 0
    %2954 = vmatpush1.bf16.msra.mxu0 0
    %2955 = vmatprep.mubr.bf16.mxu0 0
    %2956 = vmatmul.mubr.bf16.gmra.mrb[0].mxu0 %v2918
    %v2957 = vpop.f32.mrb[0].mxu0
    %v2958 = vadd.f32 0.0, %v2957
    %v2959 = vpop.f32.mrb[0].mxu0
    %v2960 = vpop.f32.mrb[0].mxu0
    %v2961 = vpop.f32.mrb[0].mxu0
    %2962 = vdwg.mxu0
    %v2963 = vsel %vm120, %v2820, 0.0
    %v2964 = vsel %vm120, %v2866, 0.0
    %v2965 = vadd.f32 %v2963, %v2964
    %v2966 = vsel %vm120, %v2912, 0.0
    %v2967 = vadd.f32 %v2965, %v2966
    %v2968 = vsel %vm120, %v2958, 0.0
    %v2969 = vadd.f32 %v2967, %v2968
    %2974 = vrot.lane.b32.xlu0 %v2012, 120
    %v2975 = vpop.permute.xlu0 %2974
    %2976 = vrot.lane.b32.xlu0 %v2015, 120
    %v2977 = vpop.permute.xlu0 %2976
    %2978 = vrot.lane.b32.xlu0 %v2020, 120
    %v2979 = vpop.permute.xlu0 %2978
    %2980 = vrot.lane.b32.xlu0 %v2023, 120
    %v2981 = vpop.permute.xlu0 %2980
    %2986 = vxpose.xlu0.b32.start [1/16] %v2975, 128
    %2987 = vxpose.xlu0.b32.cont [2/16] 0.0, 128
    %2988 = vxpose.xlu0.b32.cont [3/16] 0.0, 128
    %2989 = vxpose.xlu0.b32.cont [4/16] 0.0, 128
    %2990 = vxpose.xlu0.b32.cont [5/16] 0.0, 128
    %2991 = vxpose.xlu0.b32.cont [6/16] 0.0, 128
    %2992 = vxpose.xlu0.b32.cont [7/16] 0.0, 128
    %2993 = vxpose.xlu0.b32.cont [8/16] 0.0, 128
    %2994 = vxpose.xlu0.b32.cont [9/16] 0.0, 128
    %2995 = vxpose.xlu0.b32.cont [10/16] 0.0, 128
    %2996 = vxpose.xlu0.b32.cont [11/16] 0.0, 128
    %2997 = vxpose.xlu0.b32.cont [12/16] 0.0, 128
    %2998 = vxpose.xlu0.b32.cont [13/16] 0.0, 128
    %2999 = vxpose.xlu0.b32.cont [14/16] 0.0, 128
    %3000 = vxpose.xlu0.b32.cont [15/16] 0.0, 128
    %3001 = vxpose.xlu0.b32.end [16/16] 0.0, 128
    %v3002 = vpop.trf.xlu0
    %v3003 = vpop.trf.xlu0
    %v3004 = vpop.trf.xlu0
    %v3005 = vpop.trf.xlu0
    %v3006 = vpop.trf.xlu0
    %v3007 = vpop.trf.xlu0
    %v3008 = vpop.trf.xlu0
    %v3009 = vpop.trf.xlu0
    %v3010 = vpop.trf.xlu0
    %v3011 = vpop.trf.xlu0
    %v3012 = vpop.trf.xlu0
    %v3013 = vpop.trf.xlu0
    %v3014 = vpop.trf.xlu0
    %v3015 = vpop.trf.xlu0
    %v3016 = vpop.trf.xlu0
    %v3017 = vpop.trf.xlu0
    %3018 = vxpose.xlu0.b32.start [1/16] %v2977, 128
    %3019 = vxpose.xlu0.b32.cont [2/16] 0.0, 128
    %3020 = vxpose.xlu0.b32.cont [3/16] 0.0, 128
    %3021 = vxpose.xlu0.b32.cont [4/16] 0.0, 128
    %3022 = vxpose.xlu0.b32.cont [5/16] 0.0, 128
    %3023 = vxpose.xlu0.b32.cont [6/16] 0.0, 128
    %3024 = vxpose.xlu0.b32.cont [7/16] 0.0, 128
    %3025 = vxpose.xlu0.b32.cont [8/16] 0.0, 128
    %3026 = vxpose.xlu0.b32.cont [9/16] 0.0, 128
    %3027 = vxpose.xlu0.b32.cont [10/16] 0.0, 128
    %3028 = vxpose.xlu0.b32.cont [11/16] 0.0, 128
    %3029 = vxpose.xlu0.b32.cont [12/16] 0.0, 128
    %3030 = vxpose.xlu0.b32.cont [13/16] 0.0, 128
    %3031 = vxpose.xlu0.b32.cont [14/16] 0.0, 128
    %3032 = vxpose.xlu0.b32.cont [15/16] 0.0, 128
    %3033 = vxpose.xlu0.b32.end [16/16] 0.0, 128
    %v3034 = vpop.trf.xlu0
    %v3035 = vpop.trf.xlu0
    %v3036 = vpop.trf.xlu0
    %v3037 = vpop.trf.xlu0
    %v3038 = vpop.trf.xlu0
    %v3039 = vpop.trf.xlu0
    %v3040 = vpop.trf.xlu0
    %v3041 = vpop.trf.xlu0
    %v3042 = vpop.trf.xlu0
    %v3043 = vpop.trf.xlu0
    %v3044 = vpop.trf.xlu0
    %v3045 = vpop.trf.xlu0
    %v3046 = vpop.trf.xlu0
    %v3047 = vpop.trf.xlu0
    %v3048 = vpop.trf.xlu0
    %v3049 = vpop.trf.xlu0
    %3050 = vxpose.xlu0.b32.start [1/16] %v2979, 128
    %3051 = vxpose.xlu0.b32.cont [2/16] 0.0, 128
    %3052 = vxpose.xlu0.b32.cont [3/16] 0.0, 128
    %3053 = vxpose.xlu0.b32.cont [4/16] 0.0, 128
    %3054 = vxpose.xlu0.b32.cont [5/16] 0.0, 128
    %3055 = vxpose.xlu0.b32.cont [6/16] 0.0, 128
    %3056 = vxpose.xlu0.b32.cont [7/16] 0.0, 128
    %3057 = vxpose.xlu0.b32.cont [8/16] 0.0, 128
    %3058 = vxpose.xlu0.b32.cont [9/16] 0.0, 128
    %3059 = vxpose.xlu0.b32.cont [10/16] 0.0, 128
    %3060 = vxpose.xlu0.b32.cont [11/16] 0.0, 128
    %3061 = vxpose.xlu0.b32.cont [12/16] 0.0, 128
    %3062 = vxpose.xlu0.b32.cont [13/16] 0.0, 128
    %3063 = vxpose.xlu0.b32.cont [14/16] 0.0, 128
    %3064 = vxpose.xlu0.b32.cont [15/16] 0.0, 128
    %3065 = vxpose.xlu0.b32.end [16/16] 0.0, 128
    %v3066 = vpop.trf.xlu0
    %v3067 = vpop.trf.xlu0
    %v3068 = vpop.trf.xlu0
    %v3069 = vpop.trf.xlu0
    %v3070 = vpop.trf.xlu0
    %v3071 = vpop.trf.xlu0
    %v3072 = vpop.trf.xlu0
    %v3073 = vpop.trf.xlu0
    %v3074 = vpop.trf.xlu0
    %v3075 = vpop.trf.xlu0
    %v3076 = vpop.trf.xlu0
    %v3077 = vpop.trf.xlu0
    %v3078 = vpop.trf.xlu0
    %v3079 = vpop.trf.xlu0
    %v3080 = vpop.trf.xlu0
    %v3081 = vpop.trf.xlu0
    %3082 = vxpose.xlu0.b32.start [1/16] %v2981, 128
    %3083 = vxpose.xlu0.b32.cont [2/16] 0.0, 128
    %3084 = vxpose.xlu0.b32.cont [3/16] 0.0, 128
    %3085 = vxpose.xlu0.b32.cont [4/16] 0.0, 128
    %3086 = vxpose.xlu0.b32.cont [5/16] 0.0, 128
    %3087 = vxpose.xlu0.b32.cont [6/16] 0.0, 128
    %3088 = vxpose.xlu0.b32.cont [7/16] 0.0, 128
    %3089 = vxpose.xlu0.b32.cont [8/16] 0.0, 128
    %3090 = vxpose.xlu0.b32.cont [9/16] 0.0, 128
    %3091 = vxpose.xlu0.b32.cont [10/16] 0.0, 128
    %3092 = vxpose.xlu0.b32.cont [11/16] 0.0, 128
    %3093 = vxpose.xlu0.b32.cont [12/16] 0.0, 128
    %3094 = vxpose.xlu0.b32.cont [13/16] 0.0, 128
    %3095 = vxpose.xlu0.b32.cont [14/16] 0.0, 128
    %3096 = vxpose.xlu0.b32.cont [15/16] 0.0, 128
    %3097 = vxpose.xlu0.b32.end [16/16] 0.0, 128
    %v3098 = vpop.trf.xlu0
    %v3099 = vpop.trf.xlu0
    %v3100 = vpop.trf.xlu0
    %v3101 = vpop.trf.xlu0
    %v3102 = vpop.trf.xlu0
    %v3103 = vpop.trf.xlu0
    %v3104 = vpop.trf.xlu0
    %v3105 = vpop.trf.xlu0
    %v3106 = vpop.trf.xlu0
    %v3107 = vpop.trf.xlu0
    %v3108 = vpop.trf.xlu0
    %v3109 = vpop.trf.xlu0
    %v3110 = vpop.trf.xlu0
    %v3111 = vpop.trf.xlu0
    %v3112 = vpop.trf.xlu0
    %v3113 = vpop.trf.xlu0
    %v3114 = vpack.c.bf16 %v3002, %v3002
    %v3115 = vpack.c.bf16 %v3034, %v3034
    %v3116 = vpack.c.bf16 %v3066, %v3066
    %v3117 = vpack.c.bf16 %v3098, %v3098
    %3119 = vrot.lane.b32.xlu0 %v2346, 112
    %v3120 = vpop.permute.xlu0 %3119
    %v3122 = vsel %vm487, %v3114, 0
    %v3125 = vsel %vm491, %v3120, 0
    %3127 = vmatprep.subr.bf16.mxu0 0
    %3128 = vmatpush1.bf16.msra.mxu0 %v3125
    %3129 = vmatprep.subr.bf16.mxu0 0
    %3130 = vmatpush1.bf16.msra.mxu0 0
    %3131 = vmatprep.subr.bf16.mxu0 0
    %3132 = vmatpush1.bf16.msra.mxu0 0
    %3133 = vmatprep.subr.bf16.mxu0 0
    %3134 = vmatpush1.bf16.msra.mxu0 0
    %3135 = vmatprep.subr.bf16.mxu0 0
    %3136 = vmatpush1.bf16.msra.mxu0 0
    %3137 = vmatprep.subr.bf16.mxu0 0
    %3138 = vmatpush1.bf16.msra.mxu0 0
    %3139 = vmatprep.subr.bf16.mxu0 0
    %3140 = vmatpush1.bf16.msra.mxu0 0
    %3141 = vmatprep.subr.bf16.mxu0 0
    %3142 = vmatpush1.bf16.msra.mxu0 0
    %3143 = vmatprep.subr.bf16.mxu0 0
    %3144 = vmatpush1.bf16.msra.mxu0 0
    %3145 = vmatprep.subr.bf16.mxu0 0
    %3146 = vmatpush1.bf16.msra.mxu0 0
    %3147 = vmatprep.subr.bf16.mxu0 0
    %3148 = vmatpush1.bf16.msra.mxu0 0
    %3149 = vmatprep.subr.bf16.mxu0 0
    %3150 = vmatpush1.bf16.msra.mxu0 0
    %3151 = vmatprep.subr.bf16.mxu0 0
    %3152 = vmatpush1.bf16.msra.mxu0 0
    %3153 = vmatprep.subr.bf16.mxu0 0
    %3154 = vmatpush1.bf16.msra.mxu0 0
    %3155 = vmatprep.subr.bf16.mxu0 0
    %3156 = vmatpush1.bf16.msra.mxu0 0
    %3157 = vmatprep.subr.bf16.mxu0 0
    %3158 = vmatpush1.bf16.msra.mxu0 0
    %3159 = vmatprep.mubr.bf16.mxu0 0
    %3160 = vmatmul.mubr.bf16.gmra.mrb[0].mxu0 %v3122
    %v3161 = vpop.f32.mrb[0].mxu0
    %v3162 = vadd.f32 0.0, %v3161
    %v3163 = vpop.f32.mrb[0].mxu0
    %v3164 = vpop.f32.mrb[0].mxu0
    %v3165 = vpop.f32.mrb[0].mxu0
    %3166 = vdwg.mxu0
    %3168 = vrot.lane.b32.xlu0 %v2347, 112
    %v3169 = vpop.permute.xlu0 %3168
    %v3171 = vsel %vm487, %v3115, 0
    %v3174 = vsel %vm491, %v3169, 0
    %3176 = vmatprep.subr.bf16.mxu0 0
    %3177 = vmatpush1.bf16.msra.mxu0 %v3174
    %3178 = vmatprep.subr.bf16.mxu0 0
    %3179 = vmatpush1.bf16.msra.mxu0 0
    %3180 = vmatprep.subr.bf16.mxu0 0
    %3181 = vmatpush1.bf16.msra.mxu0 0
    %3182 = vmatprep.subr.bf16.mxu0 0
    %3183 = vmatpush1.bf16.msra.mxu0 0
    %3184 = vmatprep.subr.bf16.mxu0 0
    %3185 = vmatpush1.bf16.msra.mxu0 0
    %3186 = vmatprep.subr.bf16.mxu0 0
    %3187 = vmatpush1.bf16.msra.mxu0 0
    %3188 = vmatprep.subr.bf16.mxu0 0
    %3189 = vmatpush1.bf16.msra.mxu0 0
    %3190 = vmatprep.subr.bf16.mxu0 0
    %3191 = vmatpush1.bf16.msra.mxu0 0
    %3192 = vmatprep.subr.bf16.mxu0 0
    %3193 = vmatpush1.bf16.msra.mxu0 0
    %3194 = vmatprep.subr.bf16.mxu0 0
    %3195 = vmatpush1.bf16.msra.mxu0 0
    %3196 = vmatprep.subr.bf16.mxu0 0
    %3197 = vmatpush1.bf16.msra.mxu0 0
    %3198 = vmatprep.subr.bf16.mxu0 0
    %3199 = vmatpush1.bf16.msra.mxu0 0
    %3200 = vmatprep.subr.bf16.mxu0 0
    %3201 = vmatpush1.bf16.msra.mxu0 0
    %3202 = vmatprep.subr.bf16.mxu0 0
    %3203 = vmatpush1.bf16.msra.mxu0 0
    %3204 = vmatprep.subr.bf16.mxu0 0
    %3205 = vmatpush1.bf16.msra.mxu0 0
    %3206 = vmatprep.subr.bf16.mxu0 0
    %3207 = vmatpush1.bf16.msra.mxu0 0
    %3208 = vmatprep.mubr.bf16.mxu0 0
    %3209 = vmatmul.mubr.bf16.gmra.mrb[0].mxu0 %v3171
    %v3210 = vpop.f32.mrb[0].mxu0
    %v3211 = vadd.f32 0.0, %v3210
    %v3212 = vpop.f32.mrb[0].mxu0
    %v3213 = vpop.f32.mrb[0].mxu0
    %v3214 = vpop.f32.mrb[0].mxu0
    %3215 = vdwg.mxu0
    %3217 = vrot.lane.b32.xlu0 %v2348, 112
    %v3218 = vpop.permute.xlu0 %3217
    %v3220 = vsel %vm487, %v3116, 0
    %v3223 = vsel %vm491, %v3218, 0
    %3225 = vmatprep.subr.bf16.mxu0 0
    %3226 = vmatpush1.bf16.msra.mxu0 %v3223
    %3227 = vmatprep.subr.bf16.mxu0 0
    %3228 = vmatpush1.bf16.msra.mxu0 0
    %3229 = vmatprep.subr.bf16.mxu0 0
    %3230 = vmatpush1.bf16.msra.mxu0 0
    %3231 = vmatprep.subr.bf16.mxu0 0
    %3232 = vmatpush1.bf16.msra.mxu0 0
    %3233 = vmatprep.subr.bf16.mxu0 0
    %3234 = vmatpush1.bf16.msra.mxu0 0
    %3235 = vmatprep.subr.bf16.mxu0 0
    %3236 = vmatpush1.bf16.msra.mxu0 0
    %3237 = vmatprep.subr.bf16.mxu0 0
    %3238 = vmatpush1.bf16.msra.mxu0 0
    %3239 = vmatprep.subr.bf16.mxu0 0
    %3240 = vmatpush1.bf16.msra.mxu0 0
    %3241 = vmatprep.subr.bf16.mxu0 0
    %3242 = vmatpush1.bf16.msra.mxu0 0
    %3243 = vmatprep.subr.bf16.mxu0 0
    %3244 = vmatpush1.bf16.msra.mxu0 0
    %3245 = vmatprep.subr.bf16.mxu0 0
    %3246 = vmatpush1.bf16.msra.mxu0 0
    %3247 = vmatprep.subr.bf16.mxu0 0
    %3248 = vmatpush1.bf16.msra.mxu0 0
    %3249 = vmatprep.subr.bf16.mxu0 0
    %3250 = vmatpush1.bf16.msra.mxu0 0
    %3251 = vmatprep.subr.bf16.mxu0 0
    %3252 = vmatpush1.bf16.msra.mxu0 0
    %3253 = vmatprep.subr.bf16.mxu0 0
    %3254 = vmatpush1.bf16.msra.mxu0 0
    %3255 = vmatprep.subr.bf16.mxu0 0
    %3256 = vmatpush1.bf16.msra.mxu0 0
    %3257 = vmatprep.mubr.bf16.mxu0 0
    %3258 = vmatmul.mubr.bf16.gmra.mrb[0].mxu0 %v3220
    %v3259 = vpop.f32.mrb[0].mxu0
    %v3260 = vadd.f32 0.0, %v3259
    %v3261 = vpop.f32.mrb[0].mxu0
    %v3262 = vpop.f32.mrb[0].mxu0
    %v3263 = vpop.f32.mrb[0].mxu0
    %3264 = vdwg.mxu0
    %3266 = vrot.lane.b32.xlu0 %v2349, 112
    %v3267 = vpop.permute.xlu0 %3266
    %v3269 = vsel %vm487, %v3117, 0
    %v3272 = vsel %vm491, %v3267, 0
    %3274 = vmatprep.subr.bf16.mxu0 0
    %3275 = vmatpush1.bf16.msra.mxu0 %v3272
    %3276 = vmatprep.subr.bf16.mxu0 0
    %3277 = vmatpush1.bf16.msra.mxu0 0
    %3278 = vmatprep.subr.bf16.mxu0 0
    %3279 = vmatpush1.bf16.msra.mxu0 0
    %3280 = vmatprep.subr.bf16.mxu0 0
    %3281 = vmatpush1.bf16.msra.mxu0 0
    %3282 = vmatprep.subr.bf16.mxu0 0
    %3283 = vmatpush1.bf16.msra.mxu0 0
    %3284 = vmatprep.subr.bf16.mxu0 0
    %3285 = vmatpush1.bf16.msra.mxu0 0
    %3286 = vmatprep.subr.bf16.mxu0 0
    %3287 = vmatpush1.bf16.msra.mxu0 0
    %3288 = vmatprep.subr.bf16.mxu0 0
    %3289 = vmatpush1.bf16.msra.mxu0 0
    %3290 = vmatprep.subr.bf16.mxu0 0
    %3291 = vmatpush1.bf16.msra.mxu0 0
    %3292 = vmatprep.subr.bf16.mxu0 0
    %3293 = vmatpush1.bf16.msra.mxu0 0
    %3294 = vmatprep.subr.bf16.mxu0 0
    %3295 = vmatpush1.bf16.msra.mxu0 0
    %3296 = vmatprep.subr.bf16.mxu0 0
    %3297 = vmatpush1.bf16.msra.mxu0 0
    %3298 = vmatprep.subr.bf16.mxu0 0
    %3299 = vmatpush1.bf16.msra.mxu0 0
    %3300 = vmatprep.subr.bf16.mxu0 0
    %3301 = vmatpush1.bf16.msra.mxu0 0
    %3302 = vmatprep.subr.bf16.mxu0 0
    %3303 = vmatpush1.bf16.msra.mxu0 0
    %3304 = vmatprep.subr.bf16.mxu0 0
    %3305 = vmatpush1.bf16.msra.mxu0 0
    %3306 = vmatprep.mubr.bf16.mxu0 0
    %3307 = vmatmul.mubr.bf16.gmra.mrb[0].mxu0 %v3269
    %v3308 = vpop.f32.mrb[0].mxu0
    %v3309 = vadd.f32 0.0, %v3308
    %v3310 = vpop.f32.mrb[0].mxu0
    %v3311 = vpop.f32.mrb[0].mxu0
    %v3312 = vpop.f32.mrb[0].mxu0
    %3313 = vdwg.mxu0
    %v3314 = vmul.f32 %v3162, 0.35355338
    %v3315 = vmul.f32 %v3211, 0.35355338
    %v3316 = vmul.f32 %v3260, 0.35355338
    %v3317 = vmul.f32 %v3309, 0.35355338
    %v3318 = vsel %vm2538, %v3314, -inf
    %3319 = vmax.xlane.f32.xlu0 %v3318
    %v3320 = vpop.xlane.xlu0 %3319
    %v3321 = vsel %vm2538, %v3315, -inf
    %3322 = vmax.xlane.f32.xlu0 %v3321
    %v3323 = vpop.xlane.xlu0 %3322
    %v3324 = vsel %vm2538, %v3316, -inf
    %3325 = vmax.xlane.f32.xlu0 %v3324
    %v3326 = vpop.xlane.xlu0 %3325
    %v3327 = vsel %vm2538, %v3317, -inf
    %3328 = vmax.xlane.f32.xlu0 %v3327
    %v3329 = vpop.xlane.xlu0 %3328
    %v3330 = vsub.f32 %v3314, %v3320
    %v3331 = vsub.f32 %v3315, %v3323
    %v3332 = vsub.f32 %v3316, %v3326
    %v3333 = vsub.f32 %v3317, %v3329
    %v3334 = vmul.f32 %v3330, 1.442695
    %v3335 = vpow.pop %v3334
    %v3336 = vmul.f32 %v3331, 1.442695
    %v3337 = vpow.pop %v3336
    %v3338 = vmul.f32 %v3332, 1.442695
    %v3339 = vpow.pop %v3338
    %v3340 = vmul.f32 %v3333, 1.442695
    %v3341 = vpow.pop %v3340
    %v3342 = vsel %vm2538, %v3335, 0.0
    %3343 = vadd.xlane.f32.xlu0 %v3342
    %v3344 = vpop.xlane.xlu0 %3343
    %v3345 = vsel %vm2538, %v3337, 0.0
    %3346 = vadd.xlane.f32.xlu0 %v3345
    %v3347 = vpop.xlane.xlu0 %3346
    %v3348 = vsel %vm2538, %v3339, 0.0
    %3349 = vadd.xlane.f32.xlu0 %v3348
    %v3350 = vpop.xlane.xlu0 %3349
    %v3351 = vsel %vm2538, %v3341, 0.0
    %3352 = vadd.xlane.f32.xlu0 %v3351
    %v3353 = vpop.xlane.xlu0 %3352
    %v3354 = vrcp.pop %v3344
    %v3355 = vrcp.pop %v3347
    %v3356 = vrcp.pop %v3350
    %v3357 = vrcp.pop %v3353
    %v3358 = vmul.f32 %v3335, %v3354
    %v3359 = vmul.f32 %v3337, %v3355
    %v3360 = vmul.f32 %v3339, %v3356
    %v3361 = vmul.f32 %v3341, %v3357
    %v3362 = vpack.c.bf16 %v3358, %v3358
    %v3363 = vpack.c.bf16 %v3359, %v3359
    %v3364 = vpack.c.bf16 %v3360, %v3360
    %v3365 = vpack.c.bf16 %v3361, %v3361
    %3367 = vrot.lane.b32.xlu0 %v2587, 112
    %v3368 = vpop.permute.xlu0 %3367
    %v3370 = vsel %vm2538, %v3362, 0
    %v3373 = vsel %vm2538, %v3368, 0
    %3375 = vmatprep.subr.bf16.mxu0 0
    %3376 = vmatpush1.bf16.xpose.msra.mxu0 %v3373
    %3377 = vmatprep.subr.bf16.mxu0 0
    %3378 = vmatpush1.bf16.xpose.msra.mxu0 0
    %3379 = vmatprep.subr.bf16.mxu0 0
    %3380 = vmatpush1.bf16.xpose.msra.mxu0 0
    %3381 = vmatprep.subr.bf16.mxu0 0
    %3382 = vmatpush1.bf16.xpose.msra.mxu0 0
    %3383 = vmatprep.subr.bf16.mxu0 0
    %3384 = vmatpush1.bf16.xpose.msra.mxu0 0
    %3385 = vmatprep.subr.bf16.mxu0 0
    %3386 = vmatpush1.bf16.xpose.msra.mxu0 0
    %3387 = vmatprep.subr.bf16.mxu0 0
    %3388 = vmatpush1.bf16.xpose.msra.mxu0 0
    %3389 = vmatprep.subr.bf16.mxu0 0
    %3390 = vmatpush1.bf16.xpose.msra.mxu0 0
    %3391 = vmatprep.subr.bf16.mxu0 0
    %3392 = vmatpush1.bf16.xpose.msra.mxu0 0
    %3393 = vmatprep.subr.bf16.mxu0 0
    %3394 = vmatpush1.bf16.xpose.msra.mxu0 0
    %3395 = vmatprep.subr.bf16.mxu0 0
    %3396 = vmatpush1.bf16.xpose.msra.mxu0 0
    %3397 = vmatprep.subr.bf16.mxu0 0
    %3398 = vmatpush1.bf16.xpose.msra.mxu0 0
    %3399 = vmatprep.subr.bf16.mxu0 0
    %3400 = vmatpush1.bf16.xpose.msra.mxu0 0
    %3401 = vmatprep.subr.bf16.mxu0 0
    %3402 = vmatpush1.bf16.xpose.msra.mxu0 0
    %3403 = vmatprep.subr.bf16.mxu0 0
    %3404 = vmatpush1.bf16.xpose.msra.mxu0 0
    %3405 = vmatprep.subr.bf16.mxu0 0
    %3406 = vmatpush1.bf16.xpose.msra.mxu0 0
    %3407 = vmatprep.mubr.bf16.mxu0 0
    %3408 = vmatmul.mubr.bf16.gmra.mrb[0].mxu0 %v3370
    %v3409 = vpop.f32.mrb[0].mxu0
    %v3410 = vadd.f32 0.0, %v3409
    %v3411 = vpop.f32.mrb[0].mxu0
    %v3412 = vpop.f32.mrb[0].mxu0
    %v3413 = vpop.f32.mrb[0].mxu0
    %3414 = vdwg.mxu0
    %3416 = vrot.lane.b32.xlu0 %v2588, 112
    %v3417 = vpop.permute.xlu0 %3416
    %v3419 = vsel %vm2538, %v3363, 0
    %v3422 = vsel %vm2538, %v3417, 0
    %3424 = vmatprep.subr.bf16.mxu0 0
    %3425 = vmatpush1.bf16.xpose.msra.mxu0 %v3422
    %3426 = vmatprep.subr.bf16.mxu0 0
    %3427 = vmatpush1.bf16.xpose.msra.mxu0 0
    %3428 = vmatprep.subr.bf16.mxu0 0
    %3429 = vmatpush1.bf16.xpose.msra.mxu0 0
    %3430 = vmatprep.subr.bf16.mxu0 0
    %3431 = vmatpush1.bf16.xpose.msra.mxu0 0
    %3432 = vmatprep.subr.bf16.mxu0 0
    %3433 = vmatpush1.bf16.xpose.msra.mxu0 0
    %3434 = vmatprep.subr.bf16.mxu0 0
    %3435 = vmatpush1.bf16.xpose.msra.mxu0 0
    %3436 = vmatprep.subr.bf16.mxu0 0
    %3437 = vmatpush1.bf16.xpose.msra.mxu0 0
    %3438 = vmatprep.subr.bf16.mxu0 0
    %3439 = vmatpush1.bf16.xpose.msra.mxu0 0
    %3440 = vmatprep.subr.bf16.mxu0 0
    %3441 = vmatpush1.bf16.xpose.msra.mxu0 0
    %3442 = vmatprep.subr.bf16.mxu0 0
    %3443 = vmatpush1.bf16.xpose.msra.mxu0 0
    %3444 = vmatprep.subr.bf16.mxu0 0
    %3445 = vmatpush1.bf16.xpose.msra.mxu0 0
    %3446 = vmatprep.subr.bf16.mxu0 0
    %3447 = vmatpush1.bf16.xpose.msra.mxu0 0
    %3448 = vmatprep.subr.bf16.mxu0 0
    %3449 = vmatpush1.bf16.xpose.msra.mxu0 0
    %3450 = vmatprep.subr.bf16.mxu0 0
    %3451 = vmatpush1.bf16.xpose.msra.mxu0 0
    %3452 = vmatprep.subr.bf16.mxu0 0
    %3453 = vmatpush1.bf16.xpose.msra.mxu0 0
    %3454 = vmatprep.subr.bf16.mxu0 0
    %3455 = vmatpush1.bf16.xpose.msra.mxu0 0
    %3456 = vmatprep.mubr.bf16.mxu0 0
    %3457 = vmatmul.mubr.bf16.gmra.mrb[0].mxu0 %v3419
    %v3458 = vpop.f32.mrb[0].mxu0
    %v3459 = vadd.f32 0.0, %v3458
    %v3460 = vpop.f32.mrb[0].mxu0
    %v3461 = vpop.f32.mrb[0].mxu0
    %v3462 = vpop.f32.mrb[0].mxu0
    %3463 = vdwg.mxu0
    %3465 = vrot.lane.b32.xlu0 %v2589, 112
    %v3466 = vpop.permute.xlu0 %3465
    %v3468 = vsel %vm2538, %v3364, 0
    %v3471 = vsel %vm2538, %v3466, 0
    %3473 = vmatprep.subr.bf16.mxu0 0
    %3474 = vmatpush1.bf16.xpose.msra.mxu0 %v3471
    %3475 = vmatprep.subr.bf16.mxu0 0
    %3476 = vmatpush1.bf16.xpose.msra.mxu0 0
    %3477 = vmatprep.subr.bf16.mxu0 0
    %3478 = vmatpush1.bf16.xpose.msra.mxu0 0
    %3479 = vmatprep.subr.bf16.mxu0 0
    %3480 = vmatpush1.bf16.xpose.msra.mxu0 0
    %3481 = vmatprep.subr.bf16.mxu0 0
    %3482 = vmatpush1.bf16.xpose.msra.mxu0 0
    %3483 = vmatprep.subr.bf16.mxu0 0
    %3484 = vmatpush1.bf16.xpose.msra.mxu0 0
    %3485 = vmatprep.subr.bf16.mxu0 0
    %3486 = vmatpush1.bf16.xpose.msra.mxu0 0
    %3487 = vmatprep.subr.bf16.mxu0 0
    %3488 = vmatpush1.bf16.xpose.msra.mxu0 0
    %3489 = vmatprep.subr.bf16.mxu0 0
    %3490 = vmatpush1.bf16.xpose.msra.mxu0 0
    %3491 = vmatprep.subr.bf16.mxu0 0
    %3492 = vmatpush1.bf16.xpose.msra.mxu0 0
    %3493 = vmatprep.subr.bf16.mxu0 0
    %3494 = vmatpush1.bf16.xpose.msra.mxu0 0
    %3495 = vmatprep.subr.bf16.mxu0 0
    %3496 = vmatpush1.bf16.xpose.msra.mxu0 0
    %3497 = vmatprep.subr.bf16.mxu0 0
    %3498 = vmatpush1.bf16.xpose.msra.mxu0 0
    %3499 = vmatprep.subr.bf16.mxu0 0
    %3500 = vmatpush1.bf16.xpose.msra.mxu0 0
    %3501 = vmatprep.subr.bf16.mxu0 0
    %3502 = vmatpush1.bf16.xpose.msra.mxu0 0
    %3503 = vmatprep.subr.bf16.mxu0 0
    %3504 = vmatpush1.bf16.xpose.msra.mxu0 0
    %3505 = vmatprep.mubr.bf16.mxu0 0
    %3506 = vmatmul.mubr.bf16.gmra.mrb[0].mxu0 %v3468
    %v3507 = vpop.f32.mrb[0].mxu0
    %v3508 = vadd.f32 0.0, %v3507
    %v3509 = vpop.f32.mrb[0].mxu0
    %v3510 = vpop.f32.mrb[0].mxu0
    %v3511 = vpop.f32.mrb[0].mxu0
    %3512 = vdwg.mxu0
    %3514 = vrot.lane.b32.xlu0 %v2590, 112
    %v3515 = vpop.permute.xlu0 %3514
    %v3517 = vsel %vm2538, %v3365, 0
    %v3520 = vsel %vm2538, %v3515, 0
    %3522 = vmatprep.subr.bf16.mxu0 0
    %3523 = vmatpush1.bf16.xpose.msra.mxu0 %v3520
    %3524 = vmatprep.subr.bf16.mxu0 0
    %3525 = vmatpush1.bf16.xpose.msra.mxu0 0
    %3526 = vmatprep.subr.bf16.mxu0 0
    %3527 = vmatpush1.bf16.xpose.msra.mxu0 0
    %3528 = vmatprep.subr.bf16.mxu0 0
    %3529 = vmatpush1.bf16.xpose.msra.mxu0 0
    %3530 = vmatprep.subr.bf16.mxu0 0
    %3531 = vmatpush1.bf16.xpose.msra.mxu0 0
    %3532 = vmatprep.subr.bf16.mxu0 0
    %3533 = vmatpush1.bf16.xpose.msra.mxu0 0
    %3534 = vmatprep.subr.bf16.mxu0 0
    %3535 = vmatpush1.bf16.xpose.msra.mxu0 0
    %3536 = vmatprep.subr.bf16.mxu0 0
    %3537 = vmatpush1.bf16.xpose.msra.mxu0 0
    %3538 = vmatprep.subr.bf16.mxu0 0
    %3539 = vmatpush1.bf16.xpose.msra.mxu0 0
    %3540 = vmatprep.subr.bf16.mxu0 0
    %3541 = vmatpush1.bf16.xpose.msra.mxu0 0
    %3542 = vmatprep.subr.bf16.mxu0 0
    %3543 = vmatpush1.bf16.xpose.msra.mxu0 0
    %3544 = vmatprep.subr.bf16.mxu0 0
    %3545 = vmatpush1.bf16.xpose.msra.mxu0 0
    %3546 = vmatprep.subr.bf16.mxu0 0
    %3547 = vmatpush1.bf16.xpose.msra.mxu0 0
    %3548 = vmatprep.subr.bf16.mxu0 0
    %3549 = vmatpush1.bf16.xpose.msra.mxu0 0
    %3550 = vmatprep.subr.bf16.mxu0 0
    %3551 = vmatpush1.bf16.xpose.msra.mxu0 0
    %3552 = vmatprep.subr.bf16.mxu0 0
    %3553 = vmatpush1.bf16.xpose.msra.mxu0 0
    %3554 = vmatprep.mubr.bf16.mxu0 0
    %3555 = vmatmul.mubr.bf16.gmra.mrb[0].mxu0 %v3517
    %v3556 = vpop.f32.mrb[0].mxu0
    %v3557 = vadd.f32 0.0, %v3556
    %v3558 = vpop.f32.mrb[0].mxu0
    %v3559 = vpop.f32.mrb[0].mxu0
    %v3560 = vpop.f32.mrb[0].mxu0
    %3561 = vdwg.mxu0
    %v3562 = vpack.c.bf16 %v3410, %v3410
    %v3563 = vpack.c.bf16 %v3459, %v3459
    %v3564 = vpack.c.bf16 %v3508, %v3508
    %v3565 = vpack.c.bf16 %v3557, %v3557
    %v3567 = vsel %vm487, %v3562, 0
    %3569 = vmatprep.subr.bf16.mxu0 0
    %3570 = vmatpush1.bf16.msra.mxu0 %v2783
    %3571 = vmatprep.subr.bf16.mxu0 0
    %3572 = vmatpush1.bf16.msra.mxu0 0
    %3573 = vmatprep.subr.bf16.mxu0 0
    %3574 = vmatpush1.bf16.msra.mxu0 0
    %3575 = vmatprep.subr.bf16.mxu0 0
    %3576 = vmatpush1.bf16.msra.mxu0 0
    %3577 = vmatprep.subr.bf16.mxu0 0
    %3578 = vmatpush1.bf16.msra.mxu0 0
    %3579 = vmatprep.subr.bf16.mxu0 0
    %3580 = vmatpush1.bf16.msra.mxu0 0
    %3581 = vmatprep.subr.bf16.mxu0 0
    %3582 = vmatpush1.bf16.msra.mxu0 0
    %3583 = vmatprep.subr.bf16.mxu0 0
    %3584 = vmatpush1.bf16.msra.mxu0 0
    %3585 = vmatprep.subr.bf16.mxu0 0
    %3586 = vmatpush1.bf16.msra.mxu0 0
    %3587 = vmatprep.subr.bf16.mxu0 0
    %3588 = vmatpush1.bf16.msra.mxu0 0
    %3589 = vmatprep.subr.bf16.mxu0 0
    %3590 = vmatpush1.bf16.msra.mxu0 0
    %3591 = vmatprep.subr.bf16.mxu0 0
    %3592 = vmatpush1.bf16.msra.mxu0 0
    %3593 = vmatprep.subr.bf16.mxu0 0
    %3594 = vmatpush1.bf16.msra.mxu0 0
    %3595 = vmatprep.subr.bf16.mxu0 0
    %3596 = vmatpush1.bf16.msra.mxu0 0
    %3597 = vmatprep.subr.bf16.mxu0 0
    %3598 = vmatpush1.bf16.msra.mxu0 0
    %3599 = vmatprep.subr.bf16.mxu0 0
    %3600 = vmatpush1.bf16.msra.mxu0 0
    %3601 = vmatprep.mubr.bf16.mxu0 0
    %3602 = vmatmul.mubr.bf16.gmra.mrb[0].mxu0 %v3567
    %v3603 = vpop.f32.mrb[0].mxu0
    %v3604 = vadd.f32 0.0, %v3603
    %v3605 = vpop.f32.mrb[0].mxu0
    %v3606 = vpop.f32.mrb[0].mxu0
    %v3607 = vpop.f32.mrb[0].mxu0
    %3608 = vdwg.mxu0
    %v3610 = vsel %vm487, %v3563, 0
    %3612 = vmatprep.subr.bf16.mxu0 0
    %3613 = vmatpush1.bf16.msra.mxu0 %v2829
    %3614 = vmatprep.subr.bf16.mxu0 0
    %3615 = vmatpush1.bf16.msra.mxu0 0
    %3616 = vmatprep.subr.bf16.mxu0 0
    %3617 = vmatpush1.bf16.msra.mxu0 0
    %3618 = vmatprep.subr.bf16.mxu0 0
    %3619 = vmatpush1.bf16.msra.mxu0 0
    %3620 = vmatprep.subr.bf16.mxu0 0
    %3621 = vmatpush1.bf16.msra.mxu0 0
    %3622 = vmatprep.subr.bf16.mxu0 0
    %3623 = vmatpush1.bf16.msra.mxu0 0
    %3624 = vmatprep.subr.bf16.mxu0 0
    %3625 = vmatpush1.bf16.msra.mxu0 0
    %3626 = vmatprep.subr.bf16.mxu0 0
    %3627 = vmatpush1.bf16.msra.mxu0 0
    %3628 = vmatprep.subr.bf16.mxu0 0
    %3629 = vmatpush1.bf16.msra.mxu0 0
    %3630 = vmatprep.subr.bf16.mxu0 0
    %3631 = vmatpush1.bf16.msra.mxu0 0
    %3632 = vmatprep.subr.bf16.mxu0 0
    %3633 = vmatpush1.bf16.msra.mxu0 0
    %3634 = vmatprep.subr.bf16.mxu0 0
    %3635 = vmatpush1.bf16.msra.mxu0 0
    %3636 = vmatprep.subr.bf16.mxu0 0
    %3637 = vmatpush1.bf16.msra.mxu0 0
    %3638 = vmatprep.subr.bf16.mxu0 0
    %3639 = vmatpush1.bf16.msra.mxu0 0
    %3640 = vmatprep.subr.bf16.mxu0 0
    %3641 = vmatpush1.bf16.msra.mxu0 0
    %3642 = vmatprep.subr.bf16.mxu0 0
    %3643 = vmatpush1.bf16.msra.mxu0 0
    %3644 = vmatprep.mubr.bf16.mxu0 0
    %3645 = vmatmul.mubr.bf16.gmra.mrb[0].mxu0 %v3610
    %v3646 = vpop.f32.mrb[0].mxu0
    %v3647 = vadd.f32 0.0, %v3646
    %v3648 = vpop.f32.mrb[0].mxu0
    %v3649 = vpop.f32.mrb[0].mxu0
    %v3650 = vpop.f32.mrb[0].mxu0
    %3651 = vdwg.mxu0
    %v3653 = vsel %vm487, %v3564, 0
    %3655 = vmatprep.subr.bf16.mxu0 0
    %3656 = vmatpush1.bf16.msra.mxu0 %v2875
    %3657 = vmatprep.subr.bf16.mxu0 0
    %3658 = vmatpush1.bf16.msra.mxu0 0
    %3659 = vmatprep.subr.bf16.mxu0 0
    %3660 = vmatpush1.bf16.msra.mxu0 0
    %3661 = vmatprep.subr.bf16.mxu0 0
    %3662 = vmatpush1.bf16.msra.mxu0 0
    %3663 = vmatprep.subr.bf16.mxu0 0
    %3664 = vmatpush1.bf16.msra.mxu0 0
    %3665 = vmatprep.subr.bf16.mxu0 0
    %3666 = vmatpush1.bf16.msra.mxu0 0
    %3667 = vmatprep.subr.bf16.mxu0 0
    %3668 = vmatpush1.bf16.msra.mxu0 0
    %3669 = vmatprep.subr.bf16.mxu0 0
    %3670 = vmatpush1.bf16.msra.mxu0 0
    %3671 = vmatprep.subr.bf16.mxu0 0
    %3672 = vmatpush1.bf16.msra.mxu0 0
    %3673 = vmatprep.subr.bf16.mxu0 0
    %3674 = vmatpush1.bf16.msra.mxu0 0
    %3675 = vmatprep.subr.bf16.mxu0 0
    %3676 = vmatpush1.bf16.msra.mxu0 0
    %3677 = vmatprep.subr.bf16.mxu0 0
    %3678 = vmatpush1.bf16.msra.mxu0 0
    %3679 = vmatprep.subr.bf16.mxu0 0
    %3680 = vmatpush1.bf16.msra.mxu0 0
    %3681 = vmatprep.subr.bf16.mxu0 0
    %3682 = vmatpush1.bf16.msra.mxu0 0
    %3683 = vmatprep.subr.bf16.mxu0 0
    %3684 = vmatpush1.bf16.msra.mxu0 0
    %3685 = vmatprep.subr.bf16.mxu0 0
    %3686 = vmatpush1.bf16.msra.mxu0 0
    %3687 = vmatprep.mubr.bf16.mxu0 0
    %3688 = vmatmul.mubr.bf16.gmra.mrb[0].mxu0 %v3653
    %v3689 = vpop.f32.mrb[0].mxu0
    %v3690 = vadd.f32 0.0, %v3689
    %v3691 = vpop.f32.mrb[0].mxu0
    %v3692 = vpop.f32.mrb[0].mxu0
    %v3693 = vpop.f32.mrb[0].mxu0
    %3694 = vdwg.mxu0
    %v3696 = vsel %vm487, %v3565, 0
    %3698 = vmatprep.subr.bf16.mxu0 0
    %3699 = vmatpush1.bf16.msra.mxu0 %v2921
    %3700 = vmatprep.subr.bf16.mxu0 0
    %3701 = vmatpush1.bf16.msra.mxu0 0
    %3702 = vmatprep.subr.bf16.mxu0 0
    %3703 = vmatpush1.bf16.msra.mxu0 0
    %3704 = vmatprep.subr.bf16.mxu0 0
    %3705 = vmatpush1.bf16.msra.mxu0 0
    %3706 = vmatprep.subr.bf16.mxu0 0
    %3707 = vmatpush1.bf16.msra.mxu0 0
    %3708 = vmatprep.subr.bf16.mxu0 0
    %3709 = vmatpush1.bf16.msra.mxu0 0
    %3710 = vmatprep.subr.bf16.mxu0 0
    %3711 = vmatpush1.bf16.msra.mxu0 0
    %3712 = vmatprep.subr.bf16.mxu0 0
    %3713 = vmatpush1.bf16.msra.mxu0 0
    %3714 = vmatprep.subr.bf16.mxu0 0
    %3715 = vmatpush1.bf16.msra.mxu0 0
    %3716 = vmatprep.subr.bf16.mxu0 0
    %3717 = vmatpush1.bf16.msra.mxu0 0
    %3718 = vmatprep.subr.bf16.mxu0 0
    %3719 = vmatpush1.bf16.msra.mxu0 0
    %3720 = vmatprep.subr.bf16.mxu0 0
    %3721 = vmatpush1.bf16.msra.mxu0 0
    %3722 = vmatprep.subr.bf16.mxu0 0
    %3723 = vmatpush1.bf16.msra.mxu0 0
    %3724 = vmatprep.subr.bf16.mxu0 0
    %3725 = vmatpush1.bf16.msra.mxu0 0
    %3726 = vmatprep.subr.bf16.mxu0 0
    %3727 = vmatpush1.bf16.msra.mxu0 0
    %3728 = vmatprep.subr.bf16.mxu0 0
    %3729 = vmatpush1.bf16.msra.mxu0 0
    %3730 = vmatprep.mubr.bf16.mxu0 0
    %3731 = vmatmul.mubr.bf16.gmra.mrb[0].mxu0 %v3696
    %v3732 = vpop.f32.mrb[0].mxu0
    %v3733 = vadd.f32 0.0, %v3732
    %v3734 = vpop.f32.mrb[0].mxu0
    %v3735 = vpop.f32.mrb[0].mxu0
    %v3736 = vpop.f32.mrb[0].mxu0
    %3737 = vdwg.mxu0
    %v3738 = vsel %vm120, %v3604, 0.0
    %v3739 = vsel %vm120, %v3647, 0.0
    %v3740 = vadd.f32 %v3738, %v3739
    %v3741 = vsel %vm120, %v3690, 0.0
    %v3742 = vadd.f32 %v3740, %v3741
    %v3743 = vsel %vm120, %v3733, 0.0
    %v3744 = vadd.f32 %v3742, %v3743
    %v3745 = vlaneseq
    %v3746 = vshrl.u32 %v3745, 7
    %v3747 = vsub.s32 3, %v3746
    %v3748 = vrot.slane %v69, %v3747
    %v3749 = vadd.f32 %v2969, %v3748
    %v3750 = vadd.f32 %v3744, %v3748
    %v3751 = vadd.f32 %v3749, %v1930
    %v3752 = vadd.f32 %v3750, %v1931
    %v3753 = vsel %vm120, %v3751, 0.0
    %3754 = vadd.xlane.f32.xlu0 %v3753
    %v3755 = vpop.xlane.xlu0 %3754
    %v3756 = vsel %vm120, %v3752, 0.0
    %3757 = vadd.xlane.f32.xlu0 %v3756
    %v3758 = vpop.xlane.xlu0 %3757
    %v3759 = vmul.f32 %v3755, %v1899
    %v3760 = vmul.f32 %v3758, %v1899
    %v3761 = vsub.f32 %v3751, %v3759
    %v3762 = vsub.f32 %v3752, %v3760
    %v3763 = vmul.f32 %v3761, %v3761
    %v3764 = vmul.f32 %v3762, %v3762
    %v3765 = vsel %vm120, %v3763, 0.0
    %3766 = vadd.xlane.f32.xlu0 %v3765
    %v3767 = vpop.xlane.xlu0 %3766
    %v3768 = vsel %vm120, %v3764, 0.0
    %3769 = vadd.xlane.f32.xlu0 %v3768
    %v3770 = vpop.xlane.xlu0 %3769
    %v3771 = vmul.f32 %v3767, %v1899
    %v3772 = vmul.f32 %v3770, %v1899
    %v3773 = vadd.f32 %v3771, 1e-05
    %v3774 = vadd.f32 %v3772, 1e-05
    %v3775 = vrsqrt.pop %v3773
    %v3776 = vrsqrt.pop %v3774
    %v3777 = vmul.f32 %v3761, %v3775
    %v3778 = vmul.f32 %v3762, %v3776
    %v3779 = vlaneseq
    %v3780 = vshrl.u32 %v3779, 7
    %v3781 = vsub.s32 4, %v3780
    %v3782 = vrot.slane %v69, %v3781
    %v3783 = vmul.f32 %v3777, %v3782
    %v3784 = vmul.f32 %v3778, %v3782
    %v3785 = vlaneseq
    %v3786 = vshrl.u32 %v3785, 7
    %v3787 = vsub.s32 5, %v3786
    %v3788 = vrot.slane %v69, %v3787
    %v3789 = vadd.f32 %v3783, %v3788
    %v3790 = vadd.f32 %v3784, %v3788
    %v3791 = vpack.c.bf16 %v3790, %v3789
    %v3792 = vld [vmem:[%s7] sm:$0xf]
    %v3793 = vld [vmem:[%s7 + $0x4] sm:$0xf]
    %v3794 = vld [vmem:[%s7 + $0x8] sm:$0xf]
    %v3795 = vld [vmem:[%s7 + $0xc] sm:$0xf]
    %v3796 = vld [vmem:[%s7 + $0x10] sm:$0xf]
    %v3797 = vld [vmem:[%s7 + $0x14] sm:$0xf]
    %v3798 = vld [vmem:[%s7 + $0x18] sm:$0xf]
    %v3799 = vld [vmem:[%s7 + $0x1c] sm:$0xf]
    %v3800 = vld [vmem:[%s8] sm:$0x1]
    %v3802 = vlaneseq
    %v3803 = vshrl.u32 %v3802, 7
    %v3804 = vsub.s32 0, %v3803
    %v3805 = vrot.slane %v3800, %v3804
    %v3815 = vunpack.c.l.b16 %v3792
    %v3816 = vunpack.c.l.b16 %v3793
    %v3817 = vunpack.c.l.b16 %v3794
    %v3818 = vunpack.c.l.b16 %v3795
    %v3819 = vunpack.c.l.b16 %v3796
    %v3820 = vunpack.c.l.b16 %v3797
    %v3821 = vunpack.c.l.b16 %v3798
    %v3822 = vunpack.c.l.b16 %v3799
    %v3823 = vpack.c.b16 %v3816, %v3815
    %v3824 = vpack.c.b16 %v3818, %v3817
    %v3825 = vpack.c.b16 %v3820, %v3819
    %v3826 = vpack.c.b16 %v3822, %v3821
    %v3828 = vsel %vm120, %v3791, 0
    %v3831 = vsel %vm120, %v3823, 0
    %v3834 = vsel %vm120, %v3824, 0
    %v3837 = vsel %vm120, %v3825, 0
    %v3840 = vsel %vm120, %v3826, 0
    %3842 = vmatprep.subr.bf16.mxu0 0
    %3843 = vmatpush1.bf16.xpose.msra.mxu0 %v3831
    %3844 = vmatprep.subr.bf16.mxu0 0
    %3845 = vmatpush1.bf16.xpose.msra.mxu0 %v3834
    %3846 = vmatprep.subr.bf16.mxu0 0
    %3847 = vmatpush1.bf16.xpose.msra.mxu0 %v3837
    %3848 = vmatprep.subr.bf16.mxu0 0
    %3849 = vmatpush1.bf16.xpose.msra.mxu0 %v3840
    %3850 = vmatprep.subr.bf16.mxu0 0
    %3851 = vmatpush1.bf16.xpose.msra.mxu0 0
    %3852 = vmatprep.subr.bf16.mxu0 0
    %3853 = vmatpush1.bf16.xpose.msra.mxu0 0
    %3854 = vmatprep.subr.bf16.mxu0 0
    %3855 = vmatpush1.bf16.xpose.msra.mxu0 0
    %3856 = vmatprep.subr.bf16.mxu0 0
    %3857 = vmatpush1.bf16.xpose.msra.mxu0 0
    %3858 = vmatprep.subr.bf16.mxu0 0
    %3859 = vmatpush1.bf16.xpose.msra.mxu0 0
    %3860 = vmatprep.subr.bf16.mxu0 0
    %3861 = vmatpush1.bf16.xpose.msra.mxu0 0
    %3862 = vmatprep.subr.bf16.mxu0 0
    %3863 = vmatpush1.bf16.xpose.msra.mxu0 0
    %3864 = vmatprep.subr.bf16.mxu0 0
    %3865 = vmatpush1.bf16.xpose.msra.mxu0 0
    %3866 = vmatprep.subr.bf16.mxu0 0
    %3867 = vmatpush1.bf16.xpose.msra.mxu0 0
    %3868 = vmatprep.subr.bf16.mxu0 0
    %3869 = vmatpush1.bf16.xpose.msra.mxu0 0
    %3870 = vmatprep.subr.bf16.mxu0 0
    %3871 = vmatpush1.bf16.xpose.msra.mxu0 0
    %3872 = vmatprep.subr.bf16.mxu0 0
    %3873 = vmatpush1.bf16.xpose.msra.mxu0 0
    %3874 = vmatprep.mubr.bf16.mxu0 0
    %3875 = vmatmul.mubr.bf16.gmra.mrb[0].mxu0 %v3828
    %v3876 = vpop.f32.mrb[0].mxu0
    %v3877 = vadd.f32 %v3805, %v3876
    %v3878 = vpop.f32.mrb[0].mxu0
    %v3879 = vpop.f32.mrb[0].mxu0
    %v3880 = vadd.f32 %v3805, %v3879
    %v3881 = vpop.f32.mrb[0].mxu0
    %3882 = vdwg.mxu0
    %v3883 = vmax.f32 %v3877, 0.0
    %v3884 = vmax.f32 %v3880, 0.0
    %v3885 = vpack.c.bf16 %v3884, %v3883
    %v3886 = vld [vmem:[%s9] sm:$0xf]
    %v3887 = vld [vmem:[%s9 + $0x4] sm:$0xf]
    %v3888 = vld [vmem:[%s9 + $0x8] sm:$0xf]
    %v3889 = vld [vmem:[%s9 + $0xc] sm:$0xf]
    %v3890 = vlaneseq
    %v3891 = vshrl.u32 %v3890, 7
    %v3892 = vsub.s32 6, %v3891
    %v3893 = vrot.slane %v69, %v3892
    %v3898 = vunpack.c.l.b16 %v3886
    %v3899 = vunpack.c.l.b16 %v3887
    %v3900 = vunpack.c.l.b16 %v3888
    %v3901 = vunpack.c.l.b16 %v3889
    %v3902 = vpack.c.b16 %v3899, %v3898
    %v3903 = vpack.c.b16 %v3901, %v3900
    %vm3904 = vcmask 523264
    %v3906 = vsel %vm3904, %v3885, 0
    %v3909 = vsel %vm3904, %v3902, 0
    %v3912 = vsel %vm3904, %v3903, 0
    %3914 = vmatprep.subr.bf16.mxu0 0
    %3915 = vmatpush1.bf16.xpose.msra.mxu0 %v3909
    %3916 = vmatprep.subr.bf16.mxu0 0
    %3917 = vmatpush1.bf16.xpose.msra.mxu0 %v3912
    %3918 = vmatprep.subr.bf16.mxu0 0
    %3919 = vmatpush1.bf16.xpose.msra.mxu0 0
    %3920 = vmatprep.subr.bf16.mxu0 0
    %3921 = vmatpush1.bf16.xpose.msra.mxu0 0
    %3922 = vmatprep.subr.bf16.mxu0 0
    %3923 = vmatpush1.bf16.xpose.msra.mxu0 0
    %3924 = vmatprep.subr.bf16.mxu0 0
    %3925 = vmatpush1.bf16.xpose.msra.mxu0 0
    %3926 = vmatprep.subr.bf16.mxu0 0
    %3927 = vmatpush1.bf16.xpose.msra.mxu0 0
    %3928 = vmatprep.subr.bf16.mxu0 0
    %3929 = vmatpush1.bf16.xpose.msra.mxu0 0
    %3930 = vmatprep.subr.bf16.mxu0 0
    %3931 = vmatpush1.bf16.xpose.msra.mxu0 0
    %3932 = vmatprep.subr.bf16.mxu0 0
    %3933 = vmatpush1.bf16.xpose.msra.mxu0 0
    %3934 = vmatprep.subr.bf16.mxu0 0
    %3935 = vmatpush1.bf16.xpose.msra.mxu0 0
    %3936 = vmatprep.subr.bf16.mxu0 0
    %3937 = vmatpush1.bf16.xpose.msra.mxu0 0
    %3938 = vmatprep.subr.bf16.mxu0 0
    %3939 = vmatpush1.bf16.xpose.msra.mxu0 0
    %3940 = vmatprep.subr.bf16.mxu0 0
    %3941 = vmatpush1.bf16.xpose.msra.mxu0 0
    %3942 = vmatprep.subr.bf16.mxu0 0
    %3943 = vmatpush1.bf16.xpose.msra.mxu0 0
    %3944 = vmatprep.subr.bf16.mxu0 0
    %3945 = vmatpush1.bf16.xpose.msra.mxu0 0
    %3946 = vmatprep.mubr.bf16.mxu0 0
    %3947 = vmatmul.mubr.bf16.gmra.mrb[0].mxu0 %v3906
    %v3948 = vpop.f32.mrb[0].mxu0
    %v3949 = vadd.f32 %v3893, %v3948
    %v3950 = vpop.f32.mrb[0].mxu0
    %v3951 = vpop.f32.mrb[0].mxu0
    %v3952 = vadd.f32 %v3893, %v3951
    %v3953 = vpop.f32.mrb[0].mxu0
    %3954 = vdwg.mxu0
    %v3955 = vadd.f32 %v3949, %v3789
    %v3956 = vadd.f32 %v3952, %v3790
    %v3957 = vsel %vm120, %v3955, 0.0
    %3958 = vadd.xlane.f32.xlu0 %v3957
    %v3959 = vpop.xlane.xlu0 %3958
    %v3960 = vsel %vm120, %v3956, 0.0
    %3961 = vadd.xlane.f32.xlu0 %v3960
    %v3962 = vpop.xlane.xlu0 %3961
    %v3963 = vmul.f32 %v3959, %v1899
    %v3964 = vmul.f32 %v3962, %v1899
    %v3965 = vsub.f32 %v3955, %v3963
    %v3966 = vsub.f32 %v3956, %v3964
    %v3967 = vmul.f32 %v3965, %v3965
    %v3968 = vmul.f32 %v3966, %v3966
    %v3969 = vsel %vm120, %v3967, 0.0
    %3970 = vadd.xlane.f32.xlu0 %v3969
    %v3971 = vpop.xlane.xlu0 %3970
    %v3972 = vsel %vm120, %v3968, 0.0
    %3973 = vadd.xlane.f32.xlu0 %v3972
    %v3974 = vpop.xlane.xlu0 %3973
    %v3975 = vmul.f32 %v3971, %v1899
    %v3976 = vmul.f32 %v3974, %v1899
    %v3977 = vadd.f32 %v3975, 1e-05
    %v3978 = vadd.f32 %v3976, 1e-05
    %v3979 = vrsqrt.pop %v3977
    %v3980 = vrsqrt.pop %v3978
    %v3981 = vmul.f32 %v3965, %v3979
    %v3982 = vmul.f32 %v3966, %v3980
    %v3983 = vlaneseq
    %v3984 = vshrl.u32 %v3983, 7
    %v3985 = vsub.s32 7, %v3984
    %v3986 = vrot.slane %v69, %v3985
    %v3987 = vmul.f32 %v3981, %v3986
    %v3988 = vmul.f32 %v3982, %v3986
    %v3989 = vlaneseq
    %v3990 = vshrl.u32 %v3989, 7
    %v3991 = vsub.s32 0, %v3990
    %v3992 = vrot.slane %v70, %v3991
    %v3993 = vadd.f32 %v3987, %v3992
    %v3994 = vadd.f32 %v3988, %v3992
    %3995 = vst.msk [vmem:[#allocation7] sm:$0xff] %vm120, %v3993
    %3996 = vst.msk [vmem:[#allocation7 + $0x8] sm:$0xff] %vm120, %v3994
    // Predicated region
    $region50: #{tpu_custom_call.1} parent=1 // pred_check
      _
    $region51: #{tpu_custom_call.1} parent=1 // pred_check_branch
      %3998 = sbr.rel (0) target = $region53
    $region52: #{tpu_custom_call.1} parent=1 // pred_region
      %s4000 = ssub.s32 256, 256
      %4001 = vsyncadd [#allocation4], %s4000
      %s4002 = sshll.u32 [#allocation7], 4
      %s4003 = int_to_ptr.vmem [resolvable:$true] %s4002
      %4008 = dma.vmem_to_hbm [thread:$0]  %s4003, 256, %s10, [#allocation4], 128, 128, 8
    $region53: #{tpu_custom_call.1} parent=1 // pred_fallthru
      _
    // Predicated region
    $region54: #{tpu_custom_call.1} parent=1 // pred_check
      _
    $region55: #{tpu_custom_call.1} parent=1 // pred_check_branch
      %4010 = sbr.rel (0) target = $region57
    $region56: #{tpu_custom_call.1} parent=1 // pred_region
      %4011 = dma.done [#allocation4], 256
    $region57: #{tpu_custom_call.1} parent=1 // pred_fallthru
      _
    %4012 = vsyncpa [#allocation3], 1
    %4013 = vsyncpa [#allocation6], 1
    %4014 = vsyncpa [#allocation4], 1

</llo_original>
